<compile_context>
chip_gen: v7x
topology: tpu7x:2x2x1
jax: 0.10.0
libtpu: 0.0.40
codegen_flags: <defaults>
</compile_context>

<pallas_src>
import numpy as np
import jax
import jax.numpy as jnp
from jax.experimental import pallas as pl
from jax.experimental.pallas import tpu as pltpu


# --------------------------- in-kernel building blocks ---------------------------

def _mish(x):
    # Mish(x) = x * tanh(softplus(x)).  Single-exp rewrite:
    #   t = 1 + e^x  =>  tanh(log t) = (t^2 - 1) / (t^2 + 1)
    t = 1.0 + jnp.exp(jnp.minimum(x, 20.0))
    tt = t * t
    return x * (tt - 1.0) / (tt + 1.0)


def _pw_bn(x, w, b, act):
    """1x1 conv (BN scale pre-folded into w: (Cout,Cin)) + bias [+ Mish] on (Cin, HW)."""
    cout, cin = w.shape
    acc = w[:, 0:1] * x[0:1, :]                          # exact-f32 broadcast-MAC, C <= 8
    for ci in range(1, cin):
        acc = acc + w[:, ci:ci + 1] * x[ci:ci + 1, :]    # (Cout,1)*(1,HW)
    y = acc + b                                          # per-channel bias (Cout,1)
    return _mish(y) if act else y


def _make_edge_masks(HW, W, P):
    """Column-edge keep-masks on the padded flat-spatial axis, built once per kernel."""
    HWp = HW + 2 * P
    q = jax.lax.broadcasted_iota(jnp.int32, (1, HWp), 1)
    off = (W - (P % W)) % W                              # static: col(q) == (q - P) mod W
    col = (q + off) & (W - 1) if (W & (W - 1)) == 0 else (q + off) % W
    mask_m1 = (col != (W - 1)).astype(jnp.float32)       # legal sources for dx = -1 taps
    mask_p1 = (col != 0).astype(jnp.float32)             # legal sources for dx = +1 taps
    return mask_m1, mask_p1


def _dw_bn_mish(x, w9, b, W, P, mask_m1, mask_p1):
    """3x3 depthwise conv (stride 1, pad 1), BN scale pre-folded into w9, + bias + Mish.

    x: (C, HW) flat-spatial.  Halo handled in-kernel: zero-pad P lanes on each side,
    shifted static slices per tap, column wraps removed via two pre-masked source copies.
    """
    C, HW = x.shape
    pad = jnp.zeros((C, P), jnp.float32)
    xp = jnp.concatenate([pad, x, pad], axis=1)          # (C, HW + 2P), stays on-chip
    src = {-1: xp * mask_m1, 0: xp, 1: xp * mask_p1}     # sublane-broadcast of (1,HWp) masks
    acc = None
    for dy in (-1, 0, 1):
        for dx in (-1, 0, 1):
            k = (dy + 1) * 3 + (dx + 1)
            start = P + dy * W + dx                      # static lane shift
            t = src[dx][:, start:start + HW]
            term = w9[:, k:k + 1] * t                    # per-channel tap weight (C,1)
            acc = term if acc is None else acc + term
    return _mish(acc + b)


def _se(x, wr, br, we, be):
    """SqueezeExcite on (C, HW): spatial mean -> 1x1(+Mish) -> 1x1 -> sigmoid gate.
    Kept lane-dense: the (linear) reduce-conv is applied before the spatial mean."""
    C, HW = x.shape
    Cr = wr.shape[0]
    xr = wr[:, 0:1] * x[0:1, :]
    for c in range(1, C):
        xr = xr + wr[:, c:c + 1] * x[c:c + 1, :]
    red = _mish(jnp.sum(xr, axis=1, keepdims=True) * (1.0 / HW) + br)   # (Cr, 1)
    redb = jnp.broadcast_to(red, (Cr, HW))
    glog = we[:, 0:1] * redb[0:1, :]
    for cr in range(1, Cr):
        glog = glog + we[:, cr:cr + 1] * redb[cr:cr + 1, :]
    gate = jax.nn.sigmoid(glog + be)
    return x * gate


def _inverted_residual(y, g, name, W, P, m_m1, m_p1):
    r = y                                                # residual never leaves VMEM
    z = _pw_bn(y, g(f'{name}_pw'), g(f'{name}_bn1_b'), act=True)
    z = _dw_bn_mish(z, g(f'{name}_dw'), g(f'{name}_bn2_b'), W, P, m_m1, m_p1)
    z = _se(z, g(f'{name}_se_wr'), g(f'{name}_se_br'),
            g(f'{name}_se_we'), g(f'{name}_se_be'))
    z = _pw_bn(z, g(f'{name}_pwl'), g(f'{name}_bn3_b'), act=False)
    return z + r


# ----------------------------------- kernel --------------------------------------

_IR_KEYS = ('pw', 'bn1_b', 'dw', 'bn2_b', 'se_wr', 'se_br', 'se_we', 'se_be', 'pwl', 'bn3_b')
_PARAM_ORDER = tuple(
    ['ds1_dw', 'ds1_bn1_b', 'ds1_pw', 'ds1_bn2_b']
    + [f'ir1_{k}' for k in _IR_KEYS]
    + ['ds2_dw', 'ds2_bn1_b', 'ds2_pw', 'ds2_bn2_b']
    + [f'ir2_{k}' for k in _IR_KEYS]
)


def _make_block_kernel(names, H, W):
    HW = H * W
    P = W + 1                                            # halo for |dy|<=1, |dx|<=1

    def kernel(x_ref, *rest):
        o_ref = rest[-1]
        refs = dict(zip(names, rest[:-1]))
        g = lambda k: refs[k][...]

        m_m1, m_p1 = _make_edge_masks(HW, W, P)          # built once, reused by 4 dw convs
        x = x_ref[...]                                   # (Cin, H*W), lane-dense
        # ---- ds1 (Cin != Cout -> no skip) ----
        y = _dw_bn_mish(x, g('ds1_dw'), g('ds1_bn1_b'), W, P, m_m1, m_p1)
        y = _pw_bn(y, g('ds1_pw'), g('ds1_bn2_b'), act=False)
        # ---- ir1 ----
        y = _inverted_residual(y, g, 'ir1', W, P, m_m1, m_p1)
        # ---- ds2 (Cin == Cout, stride 1 -> skip) ----
        r = y
        z = _dw_bn_mish(y, g('ds2_dw'), g('ds2_bn1_b'), W, P, m_m1, m_p1)
        y = _pw_bn(z, g('ds2_pw'), g('ds2_bn2_b'), act=False) + r
        # ---- ir2 (drop_path = identity at eval) ----
        y = _inverted_residual(y, g, 'ir2', W, P, m_m1, m_p1)

        o_ref[...] = y.astype(o_ref.dtype)
    return kernel


def _fold_bn(p):
    """Fold eval-mode BN scale into the preceding conv weights (host-side, once)."""
    q = {}
    q['ds1_dw'] = p['ds1_dw'] * p['ds1_bn1_s']
    q['ds1_bn1_b'] = p['ds1_bn1_b']
    q['ds1_pw'] = p['ds1_pw'] * p['ds1_bn2_s']
    q['ds1_bn2_b'] = p['ds1_bn2_b']
    for n in ('ir1', 'ir2'):
        q[f'{n}_pw'] = p[f'{n}_pw'] * p[f'{n}_bn1_s']
        q[f'{n}_bn1_b'] = p[f'{n}_bn1_b']
        q[f'{n}_dw'] = p[f'{n}_dw'] * p[f'{n}_bn2_s']
        q[f'{n}_bn2_b'] = p[f'{n}_bn2_b']
        q[f'{n}_se_wr'] = p[f'{n}_se_wr']
        q[f'{n}_se_br'] = p[f'{n}_se_br']
        q[f'{n}_se_we'] = p[f'{n}_se_we']
        q[f'{n}_se_be'] = p[f'{n}_se_be']
        q[f'{n}_pwl'] = p[f'{n}_pwl'] * p[f'{n}_bn3_s']
        q[f'{n}_bn3_b'] = p[f'{n}_bn3_b']
    q['ds2_dw'] = p['ds2_dw'] * p['ds2_bn1_s']
    q['ds2_bn1_b'] = p['ds2_bn1_b']
    q['ds2_pw'] = p['ds2_pw'] * p['ds2_bn2_s']
    q['ds2_bn2_b'] = p['ds2_bn2_b']
    return q


def efficient_unet_block(x_nchw, p):
    """PyTorch-equivalent eval-mode forward.  Input/output: NCHW float32."""
    N, Cin, H, W = x_nchw.shape
    Cout = p['ds1_pw'].shape[0]
    HW = H * W

    q = _fold_bn(p)                                      # tiny host-side weight fold
    names = list(_PARAM_ORDER)
    flat = [q[k].astype(jnp.float32) for k in names]

    # NCHW -> (N, C, H*W): pure reshape (no HBM transpose); spatial lands on lanes.
    xf = x_nchw.reshape(N, Cin, HW)

    in_specs = [pl.BlockSpec((None, Cin, HW), lambda b: (b, 0, 0))]
    for arr in flat:
        in_specs.append(pl.BlockSpec(arr.shape, lambda b: (0, 0)))

    yf = pl.pallas_call(
        _make_block_kernel(names, H, W),
        out_shape=jax.ShapeDtypeStruct((N, Cout, HW), x_nchw.dtype),
        grid=(N,),
        in_specs=in_specs,
        out_specs=pl.BlockSpec((None, Cout, HW), lambda b: (b, 0, 0)),
        compiler_params=pltpu.CompilerParams(
            dimension_semantics=("parallel",),
            vmem_limit_bytes=32 * 1024 * 1024),
    )(xf, *flat)
    return yf.reshape(N, Cout, H, W)


# ------------------------------ pure-JAX reference --------------------------------

_HI = jax.lax.Precision.HIGHEST


def _ref_mish(x):
    return x * jnp.tanh(jnp.logaddexp(x, 0.0))


def _ref_dw_bn_mish(x, w9, s, b):
    C = x.shape[1]
    w = w9.reshape(C, 1, 3, 3)
    y = jax.lax.conv_general_dilated(
        x, w, window_strides=(1, 1), padding=((1, 1), (1, 1)),
        dimension_numbers=('NCHW', 'OIHW', 'NCHW'),
        feature_group_count=C, precision=_HI)
    return _ref_mish(y * s.reshape(1, C, 1, 1) + b.reshape(1, C, 1, 1))


def _ref_pw_bn(x, w, s, b, act=False, res=None):
    Cout = w.shape[0]
    y = jnp.einsum('nchw,dc->ndhw', x, w, precision=_HI)
    y = y * s.reshape(1, Cout, 1, 1) + b.reshape(1, Cout, 1, 1)
    if act:
        y = _ref_mish(y)
    if res is not None:
        y = y + res
    return y


def _ref_se(x, wr, br, we, be):
    m = jnp.mean(x, axis=(2, 3))                                       # (N, C)
    red = _ref_mish(jnp.dot(m, wr.T, precision=_HI) + br[:, 0])        # (N, Cr)
    gate = jax.nn.sigmoid(jnp.dot(red, we.T, precision=_HI) + be[:, 0])
    return x * gate[:, :, None, None]


def _ref_ir(y, p, name):
    r = y
    z = _ref_pw_bn(y, p[f'{name}_pw'], p[f'{name}_bn1_s'], p[f'{name}_bn1_b'], act=True)
    z = _ref_dw_bn_mish(z, p[f'{name}_dw'], p[f'{name}_bn2_s'], p[f'{name}_bn2_b'])
    z = _ref_se(z, p[f'{name}_se_wr'], p[f'{name}_se_br'],
                p[f'{name}_se_we'], p[f'{name}_se_be'])
    z = _ref_pw_bn(z, p[f'{name}_pwl'], p[f'{name}_bn3_s'], p[f'{name}_bn3_b'],
                   act=False, res=r)
    return z


def efficient_unet_block_ref(x, p):
    y = _ref_dw_bn_mish(x, p['ds1_dw'], p['ds1_bn1_s'], p['ds1_bn1_b'])
    y = _ref_pw_bn(y, p['ds1_pw'], p['ds1_bn2_s'], p['ds1_bn2_b'], act=False)
    y = _ref_ir(y, p, 'ir1')
    r = y
    z = _ref_dw_bn_mish(y, p['ds2_dw'], p['ds2_bn1_s'], p['ds2_bn1_b'])
    y = _ref_pw_bn(z, p['ds2_pw'], p['ds2_bn2_s'], p['ds2_bn2_b'], act=False, res=r)
    y = _ref_ir(y, p, 'ir2')
    return y


# ---------------------------------- parameters ------------------------------------

def init_params(key, cin, cout):
    keys = iter(jax.random.split(key, 128))

    def conv_w(shape, fan_in):
        return (jax.random.normal(next(keys), shape) / np.sqrt(fan_in)).astype(jnp.float32)

    def bn(c):
        gamma = jax.random.uniform(next(keys), (c,), minval=0.5, maxval=1.5)
        beta = 0.1 * jax.random.normal(next(keys), (c,))
        rmean = 0.1 * jax.random.normal(next(keys), (c,))
        rvar = jax.random.uniform(next(keys), (c,), minval=0.5, maxval=1.5)
        s = gamma * jax.lax.rsqrt(rvar + 1e-5)
        b = beta - rmean * s
        return (s.reshape(c, 1).astype(jnp.float32), b.reshape(c, 1).astype(jnp.float32))

    cr = max(1, int(cout * 0.25))
    p = {}
    # ds1
    p['ds1_dw'] = conv_w((cin, 9), 9)
    p['ds1_bn1_s'], p['ds1_bn1_b'] = bn(cin)
    p['ds1_pw'] = conv_w((cout, cin), cin)
    p['ds1_bn2_s'], p['ds1_bn2_b'] = bn(cout)
    # ir1 / ir2 (exp_ratio=1.0 -> mid == cout; SE reduced chs = cout * 0.25)
    for name in ('ir1', 'ir2'):
        p[f'{name}_pw'] = conv_w((cout, cout), cout)
        p[f'{name}_bn1_s'], p[f'{name}_bn1_b'] = bn(cout)
        p[f'{name}_dw'] = conv_w((cout, 9), 9)
        p[f'{name}_bn2_s'], p[f'{name}_bn2_b'] = bn(cout)
        p[f'{name}_se_wr'] = conv_w((cr, cout), cout)
        p[f'{name}_se_br'] = (0.1 * jax.random.normal(next(keys), (cr, 1))).astype(jnp.float32)
        p[f'{name}_se_we'] = conv_w((cout, cr), cr)
        p[f'{name}_se_be'] = (0.1 * jax.random.normal(next(keys), (cout, 1))).astype(jnp.float32)
        p[f'{name}_pwl'] = conv_w((cout, cout), cout)
        p[f'{name}_bn3_s'], p[f'{name}_bn3_b'] = bn(cout)
    # ds2
    p['ds2_dw'] = conv_w((cout, 9), 9)
    p['ds2_bn1_s'], p['ds2_bn1_b'] = bn(cout)
    p['ds2_pw'] = conv_w((cout, cout), cout)
    p['ds2_bn2_s'], p['ds2_bn2_b'] = bn(cout)
    return p


# ------------------------------------- main ----------------------------------------

if __name__ == "__main__":
    key = jax.random.PRNGKey(0)
    kx, kp = jax.random.split(key)

    N, Cin, H, W = 2, 4, 16, 16
    Cout = 8
    x = jax.random.normal(kx, (N, Cin, H, W), dtype=jnp.float32)   # PyTorch NCHW
    params = init_params(kp, Cin, Cout)

    out = jax.block_until_ready(efficient_unet_block(x, params))
    assert out.shape == (N, Cout, H, W), out.shape

    ref = jax.block_until_ready(efficient_unet_block_ref(x, params))
    np.testing.assert_allclose(np.asarray(out), np.asarray(ref), rtol=1e-4, atol=1e-4)

    print("KERNEL_OK")
</pallas_src>

<mosaic_0001>
module attributes {stable_mosaic.version = 11 : i64} {
  func.func @kernel(%arg0: i32, %arg1: memref<1x4x256xf32, #tpu.memory_space<vmem>>, %arg2: memref<4x9xf32, #tpu.memory_space<vmem>>, %arg3: memref<4x1xf32, #tpu.memory_space<vmem>>, %arg4: memref<8x4xf32, #tpu.memory_space<vmem>>, %arg5: memref<8x1xf32, #tpu.memory_space<vmem>>, %arg6: memref<8x8xf32, #tpu.memory_space<vmem>>, %arg7: memref<8x1xf32, #tpu.memory_space<vmem>>, %arg8: memref<8x9xf32, #tpu.memory_space<vmem>>, %arg9: memref<8x1xf32, #tpu.memory_space<vmem>>, %arg10: memref<2x8xf32, #tpu.memory_space<vmem>>, %arg11: memref<2x1xf32, #tpu.memory_space<vmem>>, %arg12: memref<8x2xf32, #tpu.memory_space<vmem>>, %arg13: memref<8x1xf32, #tpu.memory_space<vmem>>, %arg14: memref<8x8xf32, #tpu.memory_space<vmem>>, %arg15: memref<8x1xf32, #tpu.memory_space<vmem>>, %arg16: memref<8x9xf32, #tpu.memory_space<vmem>>, %arg17: memref<8x1xf32, #tpu.memory_space<vmem>>, %arg18: memref<8x8xf32, #tpu.memory_space<vmem>>, %arg19: memref<8x1xf32, #tpu.memory_space<vmem>>, %arg20: memref<8x8xf32, #tpu.memory_space<vmem>>, %arg21: memref<8x1xf32, #tpu.memory_space<vmem>>, %arg22: memref<8x9xf32, #tpu.memory_space<vmem>>, %arg23: memref<8x1xf32, #tpu.memory_space<vmem>>, %arg24: memref<2x8xf32, #tpu.memory_space<vmem>>, %arg25: memref<2x1xf32, #tpu.memory_space<vmem>>, %arg26: memref<8x2xf32, #tpu.memory_space<vmem>>, %arg27: memref<8x1xf32, #tpu.memory_space<vmem>>, %arg28: memref<8x8xf32, #tpu.memory_space<vmem>>, %arg29: memref<8x1xf32, #tpu.memory_space<vmem>>, %arg30: memref<1x8x256xf32, #tpu.memory_space<vmem>>) attributes {dimension_semantics = [#tpu.dimension_semantics<parallel>], iteration_bounds = array<i64: 2>, scalar_prefetch = 0 : i64, scratch_operands = 0 : i64, tpu.core_type = #tpu.core_type<tc>, window_params = [{transform_indices = @transform_0, window_bounds = array<i64: 1, 4, 256>}, {pipeline_mode = #tpu.pipeline_mode<synchronous>, transform_indices = @transform_1, window_bounds = array<i64: 4, 9>}, {pipeline_mode = #tpu.pipeline_mode<synchronous>, transform_indices = @transform_2, window_bounds = array<i64: 4, 1>}, {pipeline_mode = #tpu.pipeline_mode<synchronous>, transform_indices = @transform_3, window_bounds = array<i64: 8, 4>}, {pipeline_mode = #tpu.pipeline_mode<synchronous>, transform_indices = @transform_4, window_bounds = array<i64: 8, 1>}, {pipeline_mode = #tpu.pipeline_mode<synchronous>, transform_indices = @transform_5, window_bounds = array<i64: 8, 8>}, {pipeline_mode = #tpu.pipeline_mode<synchronous>, transform_indices = @transform_6, window_bounds = array<i64: 8, 1>}, {pipeline_mode = #tpu.pipeline_mode<synchronous>, transform_indices = @transform_7, window_bounds = array<i64: 8, 9>}, {pipeline_mode = #tpu.pipeline_mode<synchronous>, transform_indices = @transform_8, window_bounds = array<i64: 8, 1>}, {pipeline_mode = #tpu.pipeline_mode<synchronous>, transform_indices = @transform_9, window_bounds = array<i64: 2, 8>}, {pipeline_mode = #tpu.pipeline_mode<synchronous>, transform_indices = @transform_10, window_bounds = array<i64: 2, 1>}, {pipeline_mode = #tpu.pipeline_mode<synchronous>, transform_indices = @transform_11, window_bounds = array<i64: 8, 2>}, {pipeline_mode = #tpu.pipeline_mode<synchronous>, transform_indices = @transform_12, window_bounds = array<i64: 8, 1>}, {pipeline_mode = #tpu.pipeline_mode<synchronous>, transform_indices = @transform_13, window_bounds = array<i64: 8, 8>}, {pipeline_mode = #tpu.pipeline_mode<synchronous>, transform_indices = @transform_14, window_bounds = array<i64: 8, 1>}, {pipeline_mode = #tpu.pipeline_mode<synchronous>, transform_indices = @transform_15, window_bounds = array<i64: 8, 9>}, {pipeline_mode = #tpu.pipeline_mode<synchronous>, transform_indices = @transform_16, window_bounds = array<i64: 8, 1>}, {pipeline_mode = #tpu.pipeline_mode<synchronous>, transform_indices = @transform_17, window_bounds = array<i64: 8, 8>}, {pipeline_mode = #tpu.pipeline_mode<synchronous>, transform_indices = @transform_18, window_bounds = array<i64: 8, 1>}, {pipeline_mode = #tpu.pipeline_mode<synchronous>, transform_indices = @transform_19, window_bounds = array<i64: 8, 8>}, {pipeline_mode = #tpu.pipeline_mode<synchronous>, transform_indices = @transform_20, window_bounds = array<i64: 8, 1>}, {pipeline_mode = #tpu.pipeline_mode<synchronous>, transform_indices = @transform_21, window_bounds = array<i64: 8, 9>}, {pipeline_mode = #tpu.pipeline_mode<synchronous>, transform_indices = @transform_22, window_bounds = array<i64: 8, 1>}, {pipeline_mode = #tpu.pipeline_mode<synchronous>, transform_indices = @transform_23, window_bounds = array<i64: 2, 8>}, {pipeline_mode = #tpu.pipeline_mode<synchronous>, transform_indices = @transform_24, window_bounds = array<i64: 2, 1>}, {pipeline_mode = #tpu.pipeline_mode<synchronous>, transform_indices = @transform_25, window_bounds = array<i64: 8, 2>}, {pipeline_mode = #tpu.pipeline_mode<synchronous>, transform_indices = @transform_26, window_bounds = array<i64: 8, 1>}, {pipeline_mode = #tpu.pipeline_mode<synchronous>, transform_indices = @transform_27, window_bounds = array<i64: 8, 8>}, {pipeline_mode = #tpu.pipeline_mode<synchronous>, transform_indices = @transform_28, window_bounds = array<i64: 8, 1>}, {transform_indices = @transform_29, window_bounds = array<i64: 1, 8, 256>}]} {
    %0 = tpu.iota {dimensions = array<i32: 1>} : vector<1x290xi32>
    %c15_i32 = arith.constant 15 : i32
    %1 = vector.broadcast %c15_i32 : i32 to vector<1x290xi32>
    %2 = arith.addi %0, %1 : vector<1x290xi32>
    %c15_i32_0 = arith.constant 15 : i32
    %3 = vector.broadcast %c15_i32_0 : i32 to vector<1x290xi32>
    %4 = arith.andi %2, %3 : vector<1x290xi32>
    %c15_i32_1 = arith.constant 15 : i32
    %5 = vector.broadcast %c15_i32_1 : i32 to vector<1x290xi32>
    %6 = arith.cmpi ne, %4, %5 : vector<1x290xi32>
    %7 = arith.extui %6 : vector<1x290xi1> to vector<1x290xi32>
    %8 = arith.sitofp %7 : vector<1x290xi32> to vector<1x290xf32>
    %c0_i32 = arith.constant 0 : i32
    %9 = vector.broadcast %c0_i32 : i32 to vector<1x290xi32>
    %10 = arith.cmpi ne, %4, %9 : vector<1x290xi32>
    %11 = arith.extui %10 : vector<1x290xi1> to vector<1x290xi32>
    %12 = arith.sitofp %11 : vector<1x290xi32> to vector<1x290xf32>
    %c0 = arith.constant 0 : index
    %c0_2 = arith.constant 0 : index
    %c0_3 = arith.constant 0 : index
    %13 = vector.load %arg1[%c0, %c0_2, %c0_3] : memref<1x4x256xf32, #tpu.memory_space<vmem>>, vector<1x4x256xf32>
    %14 = vector.shape_cast %13 : vector<1x4x256xf32> to vector<4x256xf32>
    %c0_4 = arith.constant 0 : index
    %c0_5 = arith.constant 0 : index
    %15 = vector.load %arg2[%c0_4, %c0_5] : memref<4x9xf32, #tpu.memory_space<vmem>>, vector<4x9xf32>
    %c0_6 = arith.constant 0 : index
    %c0_7 = arith.constant 0 : index
    %16 = vector.load %arg3[%c0_6, %c0_7] : memref<4x1xf32, #tpu.memory_space<vmem>>, vector<4x1xf32>
    %cst = arith.constant 0.000000e+00 : f32
    %17 = vector.broadcast %cst : f32 to vector<4x17xf32>
    %18 = tpu.concatenate %17, %14, %17 in 1 : vector<4x17xf32>, vector<4x256xf32>, vector<4x17xf32> -> vector<4x290xf32>
    %19 = vector.broadcast %8 : vector<1x290xf32> to vector<4x290xf32>
    %20 = arith.mulf %18, %19 : vector<4x290xf32>
    %21 = vector.broadcast %12 : vector<1x290xf32> to vector<4x290xf32>
    %22 = arith.mulf %18, %21 : vector<4x290xf32>
    %23 = vector.extract_strided_slice %20 {offsets = [0, 0], sizes = [4, 256], strides = [1, 1]} : vector<4x290xf32> to vector<4x256xf32>
    %24 = vector.extract_strided_slice %15 {offsets = [0, 0], sizes = [4, 1], strides = [1, 1]} : vector<4x9xf32> to vector<4x1xf32>
    %25 = vector.broadcast %24 : vector<4x1xf32> to vector<4x256xf32>
    %26 = arith.mulf %25, %23 : vector<4x256xf32>
    %27 = vector.extract_strided_slice %18 {offsets = [0, 1], sizes = [4, 256], strides = [1, 1]} : vector<4x290xf32> to vector<4x256xf32>
    %28 = vector.extract_strided_slice %15 {offsets = [0, 1], sizes = [4, 1], strides = [1, 1]} : vector<4x9xf32> to vector<4x1xf32>
    %29 = vector.broadcast %28 : vector<4x1xf32> to vector<4x256xf32>
    %30 = arith.mulf %29, %27 : vector<4x256xf32>
    %31 = arith.addf %26, %30 : vector<4x256xf32>
    %32 = vector.extract_strided_slice %22 {offsets = [0, 2], sizes = [4, 256], strides = [1, 1]} : vector<4x290xf32> to vector<4x256xf32>
    %33 = vector.extract_strided_slice %15 {offsets = [0, 2], sizes = [4, 1], strides = [1, 1]} : vector<4x9xf32> to vector<4x1xf32>
    %34 = vector.broadcast %33 : vector<4x1xf32> to vector<4x256xf32>
    %35 = arith.mulf %34, %32 : vector<4x256xf32>
    %36 = arith.addf %31, %35 : vector<4x256xf32>
    %37 = vector.extract_strided_slice %20 {offsets = [0, 16], sizes = [4, 256], strides = [1, 1]} : vector<4x290xf32> to vector<4x256xf32>
    %38 = vector.extract_strided_slice %15 {offsets = [0, 3], sizes = [4, 1], strides = [1, 1]} : vector<4x9xf32> to vector<4x1xf32>
    %39 = vector.broadcast %38 : vector<4x1xf32> to vector<4x256xf32>
    %40 = arith.mulf %39, %37 : vector<4x256xf32>
    %41 = arith.addf %36, %40 : vector<4x256xf32>
    %42 = vector.extract_strided_slice %18 {offsets = [0, 17], sizes = [4, 256], strides = [1, 1]} : vector<4x290xf32> to vector<4x256xf32>
    %43 = vector.extract_strided_slice %15 {offsets = [0, 4], sizes = [4, 1], strides = [1, 1]} : vector<4x9xf32> to vector<4x1xf32>
    %44 = vector.broadcast %43 : vector<4x1xf32> to vector<4x256xf32>
    %45 = arith.mulf %44, %42 : vector<4x256xf32>
    %46 = arith.addf %41, %45 : vector<4x256xf32>
    %47 = vector.extract_strided_slice %22 {offsets = [0, 18], sizes = [4, 256], strides = [1, 1]} : vector<4x290xf32> to vector<4x256xf32>
    %48 = vector.extract_strided_slice %15 {offsets = [0, 5], sizes = [4, 1], strides = [1, 1]} : vector<4x9xf32> to vector<4x1xf32>
    %49 = vector.broadcast %48 : vector<4x1xf32> to vector<4x256xf32>
    %50 = arith.mulf %49, %47 : vector<4x256xf32>
    %51 = arith.addf %46, %50 : vector<4x256xf32>
    %52 = vector.extract_strided_slice %20 {offsets = [0, 32], sizes = [4, 256], strides = [1, 1]} : vector<4x290xf32> to vector<4x256xf32>
    %53 = vector.extract_strided_slice %15 {offsets = [0, 6], sizes = [4, 1], strides = [1, 1]} : vector<4x9xf32> to vector<4x1xf32>
    %54 = vector.broadcast %53 : vector<4x1xf32> to vector<4x256xf32>
    %55 = arith.mulf %54, %52 : vector<4x256xf32>
    %56 = arith.addf %51, %55 : vector<4x256xf32>
    %57 = vector.extract_strided_slice %18 {offsets = [0, 33], sizes = [4, 256], strides = [1, 1]} : vector<4x290xf32> to vector<4x256xf32>
    %58 = vector.extract_strided_slice %15 {offsets = [0, 7], sizes = [4, 1], strides = [1, 1]} : vector<4x9xf32> to vector<4x1xf32>
    %59 = vector.broadcast %58 : vector<4x1xf32> to vector<4x256xf32>
    %60 = arith.mulf %59, %57 : vector<4x256xf32>
    %61 = arith.addf %56, %60 : vector<4x256xf32>
    %62 = vector.extract_strided_slice %22 {offsets = [0, 34], sizes = [4, 256], strides = [1, 1]} : vector<4x290xf32> to vector<4x256xf32>
    %63 = vector.extract_strided_slice %15 {offsets = [0, 8], sizes = [4, 1], strides = [1, 1]} : vector<4x9xf32> to vector<4x1xf32>
    %64 = vector.broadcast %63 : vector<4x1xf32> to vector<4x256xf32>
    %65 = arith.mulf %64, %62 : vector<4x256xf32>
    %66 = arith.addf %61, %65 : vector<4x256xf32>
    %67 = vector.broadcast %16 : vector<4x1xf32> to vector<4x256xf32>
    %68 = arith.addf %66, %67 : vector<4x256xf32>
    %cst_8 = arith.constant 2.000000e+01 : f32
    %69 = vector.broadcast %cst_8 : f32 to vector<4x256xf32>
    %70 = arith.minimumf %68, %69 : vector<4x256xf32>
    %71 = math.exp %70 : vector<4x256xf32>
    %cst_9 = arith.constant 1.000000e+00 : f32
    %72 = vector.broadcast %cst_9 : f32 to vector<4x256xf32>
    %73 = arith.addf %72, %71 : vector<4x256xf32>
    %74 = arith.mulf %73, %73 : vector<4x256xf32>
    %cst_10 = arith.constant 1.000000e+00 : f32
    %75 = vector.broadcast %cst_10 : f32 to vector<4x256xf32>
    %76 = arith.subf %74, %75 : vector<4x256xf32>
    %77 = arith.mulf %68, %76 : vector<4x256xf32>
    %cst_11 = arith.constant 1.000000e+00 : f32
    %78 = vector.broadcast %cst_11 : f32 to vector<4x256xf32>
    %79 = arith.addf %74, %78 : vector<4x256xf32>
    %80 = arith.divf %77, %79 : vector<4x256xf32>
    %c0_12 = arith.constant 0 : index
    %c0_13 = arith.constant 0 : index
    %81 = vector.load %arg4[%c0_12, %c0_13] : memref<8x4xf32, #tpu.memory_space<vmem>>, vector<8x4xf32>
    %c0_14 = arith.constant 0 : index
    %c0_15 = arith.constant 0 : index
    %82 = vector.load %arg5[%c0_14, %c0_15] : memref<8x1xf32, #tpu.memory_space<vmem>>, vector<8x1xf32>
    %83 = vector.extract_strided_slice %81 {offsets = [0, 0], sizes = [8, 1], strides = [1, 1]} : vector<8x4xf32> to vector<8x1xf32>
    %84 = vector.extract_strided_slice %80 {offsets = [0, 0], sizes = [1, 256], strides = [1, 1]} : vector<4x256xf32> to vector<1x256xf32>
    %85 = vector.broadcast %83 : vector<8x1xf32> to vector<8x256xf32>
    %86 = vector.broadcast %84 : vector<1x256xf32> to vector<8x256xf32>
    %87 = arith.mulf %85, %86 : vector<8x256xf32>
    %88 = vector.extract_strided_slice %81 {offsets = [0, 1], sizes = [8, 1], strides = [1, 1]} : vector<8x4xf32> to vector<8x1xf32>
    %89 = vector.extract_strided_slice %80 {offsets = [1, 0], sizes = [1, 256], strides = [1, 1]} : vector<4x256xf32> to vector<1x256xf32>
    %90 = vector.broadcast %88 : vector<8x1xf32> to vector<8x256xf32>
    %91 = vector.broadcast %89 : vector<1x256xf32> to vector<8x256xf32>
    %92 = arith.mulf %90, %91 : vector<8x256xf32>
    %93 = arith.addf %87, %92 : vector<8x256xf32>
    %94 = vector.extract_strided_slice %81 {offsets = [0, 2], sizes = [8, 1], strides = [1, 1]} : vector<8x4xf32> to vector<8x1xf32>
    %95 = vector.extract_strided_slice %80 {offsets = [2, 0], sizes = [1, 256], strides = [1, 1]} : vector<4x256xf32> to vector<1x256xf32>
    %96 = vector.broadcast %94 : vector<8x1xf32> to vector<8x256xf32>
    %97 = vector.broadcast %95 : vector<1x256xf32> to vector<8x256xf32>
    %98 = arith.mulf %96, %97 : vector<8x256xf32>
    %99 = arith.addf %93, %98 : vector<8x256xf32>
    %100 = vector.extract_strided_slice %81 {offsets = [0, 3], sizes = [8, 1], strides = [1, 1]} : vector<8x4xf32> to vector<8x1xf32>
    %101 = vector.extract_strided_slice %80 {offsets = [3, 0], sizes = [1, 256], strides = [1, 1]} : vector<4x256xf32> to vector<1x256xf32>
    %102 = vector.broadcast %100 : vector<8x1xf32> to vector<8x256xf32>
    %103 = vector.broadcast %101 : vector<1x256xf32> to vector<8x256xf32>
    %104 = arith.mulf %102, %103 : vector<8x256xf32>
    %105 = arith.addf %99, %104 : vector<8x256xf32>
    %106 = vector.broadcast %82 : vector<8x1xf32> to vector<8x256xf32>
    %107 = arith.addf %105, %106 : vector<8x256xf32>
    %c0_16 = arith.constant 0 : index
    %c0_17 = arith.constant 0 : index
    %108 = vector.load %arg6[%c0_16, %c0_17] : memref<8x8xf32, #tpu.memory_space<vmem>>, vector<8x8xf32>
    %c0_18 = arith.constant 0 : index
    %c0_19 = arith.constant 0 : index
    %109 = vector.load %arg7[%c0_18, %c0_19] : memref<8x1xf32, #tpu.memory_space<vmem>>, vector<8x1xf32>
    %110 = vector.extract_strided_slice %108 {offsets = [0, 0], sizes = [8, 1], strides = [1, 1]} : vector<8x8xf32> to vector<8x1xf32>
    %111 = vector.extract_strided_slice %107 {offsets = [0, 0], sizes = [1, 256], strides = [1, 1]} : vector<8x256xf32> to vector<1x256xf32>
    %112 = vector.broadcast %110 : vector<8x1xf32> to vector<8x256xf32>
    %113 = vector.broadcast %111 : vector<1x256xf32> to vector<8x256xf32>
    %114 = arith.mulf %112, %113 : vector<8x256xf32>
    %115 = vector.extract_strided_slice %108 {offsets = [0, 1], sizes = [8, 1], strides = [1, 1]} : vector<8x8xf32> to vector<8x1xf32>
    %116 = vector.extract_strided_slice %107 {offsets = [1, 0], sizes = [1, 256], strides = [1, 1]} : vector<8x256xf32> to vector<1x256xf32>
    %117 = vector.broadcast %115 : vector<8x1xf32> to vector<8x256xf32>
    %118 = vector.broadcast %116 : vector<1x256xf32> to vector<8x256xf32>
    %119 = arith.mulf %117, %118 : vector<8x256xf32>
    %120 = arith.addf %114, %119 : vector<8x256xf32>
    %121 = vector.extract_strided_slice %108 {offsets = [0, 2], sizes = [8, 1], strides = [1, 1]} : vector<8x8xf32> to vector<8x1xf32>
    %122 = vector.extract_strided_slice %107 {offsets = [2, 0], sizes = [1, 256], strides = [1, 1]} : vector<8x256xf32> to vector<1x256xf32>
    %123 = vector.broadcast %121 : vector<8x1xf32> to vector<8x256xf32>
    %124 = vector.broadcast %122 : vector<1x256xf32> to vector<8x256xf32>
    %125 = arith.mulf %123, %124 : vector<8x256xf32>
    %126 = arith.addf %120, %125 : vector<8x256xf32>
    %127 = vector.extract_strided_slice %108 {offsets = [0, 3], sizes = [8, 1], strides = [1, 1]} : vector<8x8xf32> to vector<8x1xf32>
    %128 = vector.extract_strided_slice %107 {offsets = [3, 0], sizes = [1, 256], strides = [1, 1]} : vector<8x256xf32> to vector<1x256xf32>
    %129 = vector.broadcast %127 : vector<8x1xf32> to vector<8x256xf32>
    %130 = vector.broadcast %128 : vector<1x256xf32> to vector<8x256xf32>
    %131 = arith.mulf %129, %130 : vector<8x256xf32>
    %132 = arith.addf %126, %131 : vector<8x256xf32>
    %133 = vector.extract_strided_slice %108 {offsets = [0, 4], sizes = [8, 1], strides = [1, 1]} : vector<8x8xf32> to vector<8x1xf32>
    %134 = vector.extract_strided_slice %107 {offsets = [4, 0], sizes = [1, 256], strides = [1, 1]} : vector<8x256xf32> to vector<1x256xf32>
    %135 = vector.broadcast %133 : vector<8x1xf32> to vector<8x256xf32>
    %136 = vector.broadcast %134 : vector<1x256xf32> to vector<8x256xf32>
    %137 = arith.mulf %135, %136 : vector<8x256xf32>
    %138 = arith.addf %132, %137 : vector<8x256xf32>
    %139 = vector.extract_strided_slice %108 {offsets = [0, 5], sizes = [8, 1], strides = [1, 1]} : vector<8x8xf32> to vector<8x1xf32>
    %140 = vector.extract_strided_slice %107 {offsets = [5, 0], sizes = [1, 256], strides = [1, 1]} : vector<8x256xf32> to vector<1x256xf32>
    %141 = vector.broadcast %139 : vector<8x1xf32> to vector<8x256xf32>
    %142 = vector.broadcast %140 : vector<1x256xf32> to vector<8x256xf32>
    %143 = arith.mulf %141, %142 : vector<8x256xf32>
    %144 = arith.addf %138, %143 : vector<8x256xf32>
    %145 = vector.extract_strided_slice %108 {offsets = [0, 6], sizes = [8, 1], strides = [1, 1]} : vector<8x8xf32> to vector<8x1xf32>
    %146 = vector.extract_strided_slice %107 {offsets = [6, 0], sizes = [1, 256], strides = [1, 1]} : vector<8x256xf32> to vector<1x256xf32>
    %147 = vector.broadcast %145 : vector<8x1xf32> to vector<8x256xf32>
    %148 = vector.broadcast %146 : vector<1x256xf32> to vector<8x256xf32>
    %149 = arith.mulf %147, %148 : vector<8x256xf32>
    %150 = arith.addf %144, %149 : vector<8x256xf32>
    %151 = vector.extract_strided_slice %108 {offsets = [0, 7], sizes = [8, 1], strides = [1, 1]} : vector<8x8xf32> to vector<8x1xf32>
    %152 = vector.extract_strided_slice %107 {offsets = [7, 0], sizes = [1, 256], strides = [1, 1]} : vector<8x256xf32> to vector<1x256xf32>
    %153 = vector.broadcast %151 : vector<8x1xf32> to vector<8x256xf32>
    %154 = vector.broadcast %152 : vector<1x256xf32> to vector<8x256xf32>
    %155 = arith.mulf %153, %154 : vector<8x256xf32>
    %156 = arith.addf %150, %155 : vector<8x256xf32>
    %157 = vector.broadcast %109 : vector<8x1xf32> to vector<8x256xf32>
    %158 = arith.addf %156, %157 : vector<8x256xf32>
    %cst_20 = arith.constant 2.000000e+01 : f32
    %159 = vector.broadcast %cst_20 : f32 to vector<8x256xf32>
    %160 = arith.minimumf %158, %159 : vector<8x256xf32>
    %161 = math.exp %160 : vector<8x256xf32>
    %cst_21 = arith.constant 1.000000e+00 : f32
    %162 = vector.broadcast %cst_21 : f32 to vector<8x256xf32>
    %163 = arith.addf %162, %161 : vector<8x256xf32>
    %164 = arith.mulf %163, %163 : vector<8x256xf32>
    %cst_22 = arith.constant 1.000000e+00 : f32
    %165 = vector.broadcast %cst_22 : f32 to vector<8x256xf32>
    %166 = arith.subf %164, %165 : vector<8x256xf32>
    %167 = arith.mulf %158, %166 : vector<8x256xf32>
    %cst_23 = arith.constant 1.000000e+00 : f32
    %168 = vector.broadcast %cst_23 : f32 to vector<8x256xf32>
    %169 = arith.addf %164, %168 : vector<8x256xf32>
    %170 = arith.divf %167, %169 : vector<8x256xf32>
    %c0_24 = arith.constant 0 : index
    %c0_25 = arith.constant 0 : index
    %171 = vector.load %arg8[%c0_24, %c0_25] : memref<8x9xf32, #tpu.memory_space<vmem>>, vector<8x9xf32>
    %c0_26 = arith.constant 0 : index
    %c0_27 = arith.constant 0 : index
    %172 = vector.load %arg9[%c0_26, %c0_27] : memref<8x1xf32, #tpu.memory_space<vmem>>, vector<8x1xf32>
    %cst_28 = arith.constant 0.000000e+00 : f32
    %173 = vector.broadcast %cst_28 : f32 to vector<8x17xf32>
    %174 = tpu.concatenate %173, %170, %173 in 1 : vector<8x17xf32>, vector<8x256xf32>, vector<8x17xf32> -> vector<8x290xf32>
    %175 = vector.broadcast %8 : vector<1x290xf32> to vector<8x290xf32>
    %176 = arith.mulf %174, %175 : vector<8x290xf32>
    %177 = vector.broadcast %12 : vector<1x290xf32> to vector<8x290xf32>
    %178 = arith.mulf %174, %177 : vector<8x290xf32>
    %179 = vector.extract_strided_slice %176 {offsets = [0, 0], sizes = [8, 256], strides = [1, 1]} : vector<8x290xf32> to vector<8x256xf32>
    %180 = vector.extract_strided_slice %171 {offsets = [0, 0], sizes = [8, 1], strides = [1, 1]} : vector<8x9xf32> to vector<8x1xf32>
    %181 = vector.broadcast %180 : vector<8x1xf32> to vector<8x256xf32>
    %182 = arith.mulf %181, %179 : vector<8x256xf32>
    %183 = vector.extract_strided_slice %174 {offsets = [0, 1], sizes = [8, 256], strides = [1, 1]} : vector<8x290xf32> to vector<8x256xf32>
    %184 = vector.extract_strided_slice %171 {offsets = [0, 1], sizes = [8, 1], strides = [1, 1]} : vector<8x9xf32> to vector<8x1xf32>
    %185 = vector.broadcast %184 : vector<8x1xf32> to vector<8x256xf32>
    %186 = arith.mulf %185, %183 : vector<8x256xf32>
    %187 = arith.addf %182, %186 : vector<8x256xf32>
    %188 = vector.extract_strided_slice %178 {offsets = [0, 2], sizes = [8, 256], strides = [1, 1]} : vector<8x290xf32> to vector<8x256xf32>
    %189 = vector.extract_strided_slice %171 {offsets = [0, 2], sizes = [8, 1], strides = [1, 1]} : vector<8x9xf32> to vector<8x1xf32>
    %190 = vector.broadcast %189 : vector<8x1xf32> to vector<8x256xf32>
    %191 = arith.mulf %190, %188 : vector<8x256xf32>
    %192 = arith.addf %187, %191 : vector<8x256xf32>
    %193 = vector.extract_strided_slice %176 {offsets = [0, 16], sizes = [8, 256], strides = [1, 1]} : vector<8x290xf32> to vector<8x256xf32>
    %194 = vector.extract_strided_slice %171 {offsets = [0, 3], sizes = [8, 1], strides = [1, 1]} : vector<8x9xf32> to vector<8x1xf32>
    %195 = vector.broadcast %194 : vector<8x1xf32> to vector<8x256xf32>
    %196 = arith.mulf %195, %193 : vector<8x256xf32>
    %197 = arith.addf %192, %196 : vector<8x256xf32>
    %198 = vector.extract_strided_slice %174 {offsets = [0, 17], sizes = [8, 256], strides = [1, 1]} : vector<8x290xf32> to vector<8x256xf32>
    %199 = vector.extract_strided_slice %171 {offsets = [0, 4], sizes = [8, 1], strides = [1, 1]} : vector<8x9xf32> to vector<8x1xf32>
    %200 = vector.broadcast %199 : vector<8x1xf32> to vector<8x256xf32>
    %201 = arith.mulf %200, %198 : vector<8x256xf32>
    %202 = arith.addf %197, %201 : vector<8x256xf32>
    %203 = vector.extract_strided_slice %178 {offsets = [0, 18], sizes = [8, 256], strides = [1, 1]} : vector<8x290xf32> to vector<8x256xf32>
    %204 = vector.extract_strided_slice %171 {offsets = [0, 5], sizes = [8, 1], strides = [1, 1]} : vector<8x9xf32> to vector<8x1xf32>
    %205 = vector.broadcast %204 : vector<8x1xf32> to vector<8x256xf32>
    %206 = arith.mulf %205, %203 : vector<8x256xf32>
    %207 = arith.addf %202, %206 : vector<8x256xf32>
    %208 = vector.extract_strided_slice %176 {offsets = [0, 32], sizes = [8, 256], strides = [1, 1]} : vector<8x290xf32> to vector<8x256xf32>
    %209 = vector.extract_strided_slice %171 {offsets = [0, 6], sizes = [8, 1], strides = [1, 1]} : vector<8x9xf32> to vector<8x1xf32>
    %210 = vector.broadcast %209 : vector<8x1xf32> to vector<8x256xf32>
    %211 = arith.mulf %210, %208 : vector<8x256xf32>
    %212 = arith.addf %207, %211 : vector<8x256xf32>
    %213 = vector.extract_strided_slice %174 {offsets = [0, 33], sizes = [8, 256], strides = [1, 1]} : vector<8x290xf32> to vector<8x256xf32>
    %214 = vector.extract_strided_slice %171 {offsets = [0, 7], sizes = [8, 1], strides = [1, 1]} : vector<8x9xf32> to vector<8x1xf32>
    %215 = vector.broadcast %214 : vector<8x1xf32> to vector<8x256xf32>
    %216 = arith.mulf %215, %213 : vector<8x256xf32>
    %217 = arith.addf %212, %216 : vector<8x256xf32>
    %218 = vector.extract_strided_slice %178 {offsets = [0, 34], sizes = [8, 256], strides = [1, 1]} : vector<8x290xf32> to vector<8x256xf32>
    %219 = vector.extract_strided_slice %171 {offsets = [0, 8], sizes = [8, 1], strides = [1, 1]} : vector<8x9xf32> to vector<8x1xf32>
    %220 = vector.broadcast %219 : vector<8x1xf32> to vector<8x256xf32>
    %221 = arith.mulf %220, %218 : vector<8x256xf32>
    %222 = arith.addf %217, %221 : vector<8x256xf32>
    %223 = vector.broadcast %172 : vector<8x1xf32> to vector<8x256xf32>
    %224 = arith.addf %222, %223 : vector<8x256xf32>
    %cst_29 = arith.constant 2.000000e+01 : f32
    %225 = vector.broadcast %cst_29 : f32 to vector<8x256xf32>
    %226 = arith.minimumf %224, %225 : vector<8x256xf32>
    %227 = math.exp %226 : vector<8x256xf32>
    %cst_30 = arith.constant 1.000000e+00 : f32
    %228 = vector.broadcast %cst_30 : f32 to vector<8x256xf32>
    %229 = arith.addf %228, %227 : vector<8x256xf32>
    %230 = arith.mulf %229, %229 : vector<8x256xf32>
    %cst_31 = arith.constant 1.000000e+00 : f32
    %231 = vector.broadcast %cst_31 : f32 to vector<8x256xf32>
    %232 = arith.subf %230, %231 : vector<8x256xf32>
    %233 = arith.mulf %224, %232 : vector<8x256xf32>
    %cst_32 = arith.constant 1.000000e+00 : f32
    %234 = vector.broadcast %cst_32 : f32 to vector<8x256xf32>
    %235 = arith.addf %230, %234 : vector<8x256xf32>
    %236 = arith.divf %233, %235 : vector<8x256xf32>
    %c0_33 = arith.constant 0 : index
    %c0_34 = arith.constant 0 : index
    %237 = vector.load %arg10[%c0_33, %c0_34] : memref<2x8xf32, #tpu.memory_space<vmem>>, vector<2x8xf32>
    %c0_35 = arith.constant 0 : index
    %c0_36 = arith.constant 0 : index
    %238 = vector.load %arg11[%c0_35, %c0_36] : memref<2x1xf32, #tpu.memory_space<vmem>>, vector<2x1xf32>
    %c0_37 = arith.constant 0 : index
    %c0_38 = arith.constant 0 : index
    %239 = vector.load %arg12[%c0_37, %c0_38] : memref<8x2xf32, #tpu.memory_space<vmem>>, vector<8x2xf32>
    %c0_39 = arith.constant 0 : index
    %c0_40 = arith.constant 0 : index
    %240 = vector.load %arg13[%c0_39, %c0_40] : memref<8x1xf32, #tpu.memory_space<vmem>>, vector<8x1xf32>
    %241 = vector.extract_strided_slice %237 {offsets = [0, 0], sizes = [2, 1], strides = [1, 1]} : vector<2x8xf32> to vector<2x1xf32>
    %242 = vector.extract_strided_slice %236 {offsets = [0, 0], sizes = [1, 256], strides = [1, 1]} : vector<8x256xf32> to vector<1x256xf32>
    %243 = vector.broadcast %241 : vector<2x1xf32> to vector<2x256xf32>
    %244 = vector.broadcast %242 : vector<1x256xf32> to vector<2x256xf32>
    %245 = arith.mulf %243, %244 : vector<2x256xf32>
    %246 = vector.extract_strided_slice %237 {offsets = [0, 1], sizes = [2, 1], strides = [1, 1]} : vector<2x8xf32> to vector<2x1xf32>
    %247 = vector.extract_strided_slice %236 {offsets = [1, 0], sizes = [1, 256], strides = [1, 1]} : vector<8x256xf32> to vector<1x256xf32>
    %248 = vector.broadcast %246 : vector<2x1xf32> to vector<2x256xf32>
    %249 = vector.broadcast %247 : vector<1x256xf32> to vector<2x256xf32>
    %250 = arith.mulf %248, %249 : vector<2x256xf32>
    %251 = arith.addf %245, %250 : vector<2x256xf32>
    %252 = vector.extract_strided_slice %237 {offsets = [0, 2], sizes = [2, 1], strides = [1, 1]} : vector<2x8xf32> to vector<2x1xf32>
    %253 = vector.extract_strided_slice %236 {offsets = [2, 0], sizes = [1, 256], strides = [1, 1]} : vector<8x256xf32> to vector<1x256xf32>
    %254 = vector.broadcast %252 : vector<2x1xf32> to vector<2x256xf32>
    %255 = vector.broadcast %253 : vector<1x256xf32> to vector<2x256xf32>
    %256 = arith.mulf %254, %255 : vector<2x256xf32>
    %257 = arith.addf %251, %256 : vector<2x256xf32>
    %258 = vector.extract_strided_slice %237 {offsets = [0, 3], sizes = [2, 1], strides = [1, 1]} : vector<2x8xf32> to vector<2x1xf32>
    %259 = vector.extract_strided_slice %236 {offsets = [3, 0], sizes = [1, 256], strides = [1, 1]} : vector<8x256xf32> to vector<1x256xf32>
    %260 = vector.broadcast %258 : vector<2x1xf32> to vector<2x256xf32>
    %261 = vector.broadcast %259 : vector<1x256xf32> to vector<2x256xf32>
    %262 = arith.mulf %260, %261 : vector<2x256xf32>
    %263 = arith.addf %257, %262 : vector<2x256xf32>
    %264 = vector.extract_strided_slice %237 {offsets = [0, 4], sizes = [2, 1], strides = [1, 1]} : vector<2x8xf32> to vector<2x1xf32>
    %265 = vector.extract_strided_slice %236 {offsets = [4, 0], sizes = [1, 256], strides = [1, 1]} : vector<8x256xf32> to vector<1x256xf32>
    %266 = vector.broadcast %264 : vector<2x1xf32> to vector<2x256xf32>
    %267 = vector.broadcast %265 : vector<1x256xf32> to vector<2x256xf32>
    %268 = arith.mulf %266, %267 : vector<2x256xf32>
    %269 = arith.addf %263, %268 : vector<2x256xf32>
    %270 = vector.extract_strided_slice %237 {offsets = [0, 5], sizes = [2, 1], strides = [1, 1]} : vector<2x8xf32> to vector<2x1xf32>
    %271 = vector.extract_strided_slice %236 {offsets = [5, 0], sizes = [1, 256], strides = [1, 1]} : vector<8x256xf32> to vector<1x256xf32>
    %272 = vector.broadcast %270 : vector<2x1xf32> to vector<2x256xf32>
    %273 = vector.broadcast %271 : vector<1x256xf32> to vector<2x256xf32>
    %274 = arith.mulf %272, %273 : vector<2x256xf32>
    %275 = arith.addf %269, %274 : vector<2x256xf32>
    %276 = vector.extract_strided_slice %237 {offsets = [0, 6], sizes = [2, 1], strides = [1, 1]} : vector<2x8xf32> to vector<2x1xf32>
    %277 = vector.extract_strided_slice %236 {offsets = [6, 0], sizes = [1, 256], strides = [1, 1]} : vector<8x256xf32> to vector<1x256xf32>
    %278 = vector.broadcast %276 : vector<2x1xf32> to vector<2x256xf32>
    %279 = vector.broadcast %277 : vector<1x256xf32> to vector<2x256xf32>
    %280 = arith.mulf %278, %279 : vector<2x256xf32>
    %281 = arith.addf %275, %280 : vector<2x256xf32>
    %282 = vector.extract_strided_slice %237 {offsets = [0, 7], sizes = [2, 1], strides = [1, 1]} : vector<2x8xf32> to vector<2x1xf32>
    %283 = vector.extract_strided_slice %236 {offsets = [7, 0], sizes = [1, 256], strides = [1, 1]} : vector<8x256xf32> to vector<1x256xf32>
    %284 = vector.broadcast %282 : vector<2x1xf32> to vector<2x256xf32>
    %285 = vector.broadcast %283 : vector<1x256xf32> to vector<2x256xf32>
    %286 = arith.mulf %284, %285 : vector<2x256xf32>
    %287 = arith.addf %281, %286 : vector<2x256xf32>
    %cst_41 = arith.constant dense<0.000000e+00> : vector<2xf32>
    %288 = vector.multi_reduction <add>, %287, %cst_41 [1] : vector<2x256xf32> to vector<2xf32>
    %289 = vector.shape_cast %288 : vector<2xf32> to vector<2x1xf32>
    %cst_42 = arith.constant 3.906250e-03 : f32
    %290 = vector.broadcast %cst_42 : f32 to vector<2x1xf32>
    %291 = arith.mulf %289, %290 : vector<2x1xf32>
    %292 = arith.addf %291, %238 : vector<2x1xf32>
    %cst_43 = arith.constant 2.000000e+01 : f32
    %293 = vector.broadcast %cst_43 : f32 to vector<2x1xf32>
    %294 = arith.minimumf %292, %293 : vector<2x1xf32>
    %295 = math.exp %294 : vector<2x1xf32>
    %cst_44 = arith.constant 1.000000e+00 : f32
    %296 = vector.broadcast %cst_44 : f32 to vector<2x1xf32>
    %297 = arith.addf %296, %295 : vector<2x1xf32>
    %298 = arith.mulf %297, %297 : vector<2x1xf32>
    %cst_45 = arith.constant 1.000000e+00 : f32
    %299 = vector.broadcast %cst_45 : f32 to vector<2x1xf32>
    %300 = arith.subf %298, %299 : vector<2x1xf32>
    %301 = arith.mulf %292, %300 : vector<2x1xf32>
    %cst_46 = arith.constant 1.000000e+00 : f32
    %302 = vector.broadcast %cst_46 : f32 to vector<2x1xf32>
    %303 = arith.addf %298, %302 : vector<2x1xf32>
    %304 = arith.divf %301, %303 : vector<2x1xf32>
    %305 = vector.shape_cast %304 : vector<2x1xf32> to vector<2x1xf32>
    %306 = vector.broadcast %305 : vector<2x1xf32> to vector<2x256xf32>
    %307 = vector.extract_strided_slice %239 {offsets = [0, 0], sizes = [8, 1], strides = [1, 1]} : vector<8x2xf32> to vector<8x1xf32>
    %308 = vector.extract_strided_slice %306 {offsets = [0, 0], sizes = [1, 256], strides = [1, 1]} : vector<2x256xf32> to vector<1x256xf32>
    %309 = vector.broadcast %307 : vector<8x1xf32> to vector<8x256xf32>
    %310 = vector.broadcast %308 : vector<1x256xf32> to vector<8x256xf32>
    %311 = arith.mulf %309, %310 : vector<8x256xf32>
    %312 = vector.extract_strided_slice %239 {offsets = [0, 1], sizes = [8, 1], strides = [1, 1]} : vector<8x2xf32> to vector<8x1xf32>
    %313 = vector.extract_strided_slice %306 {offsets = [1, 0], sizes = [1, 256], strides = [1, 1]} : vector<2x256xf32> to vector<1x256xf32>
    %314 = vector.broadcast %312 : vector<8x1xf32> to vector<8x256xf32>
    %315 = vector.broadcast %313 : vector<1x256xf32> to vector<8x256xf32>
    %316 = arith.mulf %314, %315 : vector<8x256xf32>
    %317 = arith.addf %311, %316 : vector<8x256xf32>
    %318 = vector.broadcast %240 : vector<8x1xf32> to vector<8x256xf32>
    %319 = arith.addf %317, %318 : vector<8x256xf32>
    %320 = arith.negf %319 : vector<8x256xf32>
    %321 = math.exp %320 : vector<8x256xf32>
    %cst_47 = arith.constant 1.000000e+00 : f32
    %322 = vector.broadcast %cst_47 : f32 to vector<8x256xf32>
    %323 = arith.addf %322, %321 : vector<8x256xf32>
    %324 = arith.divf %322, %323 : vector<8x256xf32>
    %325 = arith.mulf %236, %324 : vector<8x256xf32>
    %c0_48 = arith.constant 0 : index
    %c0_49 = arith.constant 0 : index
    %326 = vector.load %arg14[%c0_48, %c0_49] : memref<8x8xf32, #tpu.memory_space<vmem>>, vector<8x8xf32>
    %c0_50 = arith.constant 0 : index
    %c0_51 = arith.constant 0 : index
    %327 = vector.load %arg15[%c0_50, %c0_51] : memref<8x1xf32, #tpu.memory_space<vmem>>, vector<8x1xf32>
    %328 = vector.extract_strided_slice %326 {offsets = [0, 0], sizes = [8, 1], strides = [1, 1]} : vector<8x8xf32> to vector<8x1xf32>
    %329 = vector.extract_strided_slice %325 {offsets = [0, 0], sizes = [1, 256], strides = [1, 1]} : vector<8x256xf32> to vector<1x256xf32>
    %330 = vector.broadcast %328 : vector<8x1xf32> to vector<8x256xf32>
    %331 = vector.broadcast %329 : vector<1x256xf32> to vector<8x256xf32>
    %332 = arith.mulf %330, %331 : vector<8x256xf32>
    %333 = vector.extract_strided_slice %326 {offsets = [0, 1], sizes = [8, 1], strides = [1, 1]} : vector<8x8xf32> to vector<8x1xf32>
    %334 = vector.extract_strided_slice %325 {offsets = [1, 0], sizes = [1, 256], strides = [1, 1]} : vector<8x256xf32> to vector<1x256xf32>
    %335 = vector.broadcast %333 : vector<8x1xf32> to vector<8x256xf32>
    %336 = vector.broadcast %334 : vector<1x256xf32> to vector<8x256xf32>
    %337 = arith.mulf %335, %336 : vector<8x256xf32>
    %338 = arith.addf %332, %337 : vector<8x256xf32>
    %339 = vector.extract_strided_slice %326 {offsets = [0, 2], sizes = [8, 1], strides = [1, 1]} : vector<8x8xf32> to vector<8x1xf32>
    %340 = vector.extract_strided_slice %325 {offsets = [2, 0], sizes = [1, 256], strides = [1, 1]} : vector<8x256xf32> to vector<1x256xf32>
    %341 = vector.broadcast %339 : vector<8x1xf32> to vector<8x256xf32>
    %342 = vector.broadcast %340 : vector<1x256xf32> to vector<8x256xf32>
    %343 = arith.mulf %341, %342 : vector<8x256xf32>
    %344 = arith.addf %338, %343 : vector<8x256xf32>
    %345 = vector.extract_strided_slice %326 {offsets = [0, 3], sizes = [8, 1], strides = [1, 1]} : vector<8x8xf32> to vector<8x1xf32>
    %346 = vector.extract_strided_slice %325 {offsets = [3, 0], sizes = [1, 256], strides = [1, 1]} : vector<8x256xf32> to vector<1x256xf32>
    %347 = vector.broadcast %345 : vector<8x1xf32> to vector<8x256xf32>
    %348 = vector.broadcast %346 : vector<1x256xf32> to vector<8x256xf32>
    %349 = arith.mulf %347, %348 : vector<8x256xf32>
    %350 = arith.addf %344, %349 : vector<8x256xf32>
    %351 = vector.extract_strided_slice %326 {offsets = [0, 4], sizes = [8, 1], strides = [1, 1]} : vector<8x8xf32> to vector<8x1xf32>
    %352 = vector.extract_strided_slice %325 {offsets = [4, 0], sizes = [1, 256], strides = [1, 1]} : vector<8x256xf32> to vector<1x256xf32>
    %353 = vector.broadcast %351 : vector<8x1xf32> to vector<8x256xf32>
    %354 = vector.broadcast %352 : vector<1x256xf32> to vector<8x256xf32>
    %355 = arith.mulf %353, %354 : vector<8x256xf32>
    %356 = arith.addf %350, %355 : vector<8x256xf32>
    %357 = vector.extract_strided_slice %326 {offsets = [0, 5], sizes = [8, 1], strides = [1, 1]} : vector<8x8xf32> to vector<8x1xf32>
    %358 = vector.extract_strided_slice %325 {offsets = [5, 0], sizes = [1, 256], strides = [1, 1]} : vector<8x256xf32> to vector<1x256xf32>
    %359 = vector.broadcast %357 : vector<8x1xf32> to vector<8x256xf32>
    %360 = vector.broadcast %358 : vector<1x256xf32> to vector<8x256xf32>
    %361 = arith.mulf %359, %360 : vector<8x256xf32>
    %362 = arith.addf %356, %361 : vector<8x256xf32>
    %363 = vector.extract_strided_slice %326 {offsets = [0, 6], sizes = [8, 1], strides = [1, 1]} : vector<8x8xf32> to vector<8x1xf32>
    %364 = vector.extract_strided_slice %325 {offsets = [6, 0], sizes = [1, 256], strides = [1, 1]} : vector<8x256xf32> to vector<1x256xf32>
    %365 = vector.broadcast %363 : vector<8x1xf32> to vector<8x256xf32>
    %366 = vector.broadcast %364 : vector<1x256xf32> to vector<8x256xf32>
    %367 = arith.mulf %365, %366 : vector<8x256xf32>
    %368 = arith.addf %362, %367 : vector<8x256xf32>
    %369 = vector.extract_strided_slice %326 {offsets = [0, 7], sizes = [8, 1], strides = [1, 1]} : vector<8x8xf32> to vector<8x1xf32>
    %370 = vector.extract_strided_slice %325 {offsets = [7, 0], sizes = [1, 256], strides = [1, 1]} : vector<8x256xf32> to vector<1x256xf32>
    %371 = vector.broadcast %369 : vector<8x1xf32> to vector<8x256xf32>
    %372 = vector.broadcast %370 : vector<1x256xf32> to vector<8x256xf32>
    %373 = arith.mulf %371, %372 : vector<8x256xf32>
    %374 = arith.addf %368, %373 : vector<8x256xf32>
    %375 = vector.broadcast %327 : vector<8x1xf32> to vector<8x256xf32>
    %376 = arith.addf %374, %375 : vector<8x256xf32>
    %377 = arith.addf %376, %107 : vector<8x256xf32>
    %c0_52 = arith.constant 0 : index
    %c0_53 = arith.constant 0 : index
    %378 = vector.load %arg16[%c0_52, %c0_53] : memref<8x9xf32, #tpu.memory_space<vmem>>, vector<8x9xf32>
    %c0_54 = arith.constant 0 : index
    %c0_55 = arith.constant 0 : index
    %379 = vector.load %arg17[%c0_54, %c0_55] : memref<8x1xf32, #tpu.memory_space<vmem>>, vector<8x1xf32>
    %cst_56 = arith.constant 0.000000e+00 : f32
    %380 = vector.broadcast %cst_56 : f32 to vector<8x17xf32>
    %381 = tpu.concatenate %380, %377, %380 in 1 : vector<8x17xf32>, vector<8x256xf32>, vector<8x17xf32> -> vector<8x290xf32>
    %382 = vector.broadcast %8 : vector<1x290xf32> to vector<8x290xf32>
    %383 = arith.mulf %381, %382 : vector<8x290xf32>
    %384 = vector.broadcast %12 : vector<1x290xf32> to vector<8x290xf32>
    %385 = arith.mulf %381, %384 : vector<8x290xf32>
    %386 = vector.extract_strided_slice %383 {offsets = [0, 0], sizes = [8, 256], strides = [1, 1]} : vector<8x290xf32> to vector<8x256xf32>
    %387 = vector.extract_strided_slice %378 {offsets = [0, 0], sizes = [8, 1], strides = [1, 1]} : vector<8x9xf32> to vector<8x1xf32>
    %388 = vector.broadcast %387 : vector<8x1xf32> to vector<8x256xf32>
    %389 = arith.mulf %388, %386 : vector<8x256xf32>
    %390 = vector.extract_strided_slice %381 {offsets = [0, 1], sizes = [8, 256], strides = [1, 1]} : vector<8x290xf32> to vector<8x256xf32>
    %391 = vector.extract_strided_slice %378 {offsets = [0, 1], sizes = [8, 1], strides = [1, 1]} : vector<8x9xf32> to vector<8x1xf32>
    %392 = vector.broadcast %391 : vector<8x1xf32> to vector<8x256xf32>
    %393 = arith.mulf %392, %390 : vector<8x256xf32>
    %394 = arith.addf %389, %393 : vector<8x256xf32>
    %395 = vector.extract_strided_slice %385 {offsets = [0, 2], sizes = [8, 256], strides = [1, 1]} : vector<8x290xf32> to vector<8x256xf32>
    %396 = vector.extract_strided_slice %378 {offsets = [0, 2], sizes = [8, 1], strides = [1, 1]} : vector<8x9xf32> to vector<8x1xf32>
    %397 = vector.broadcast %396 : vector<8x1xf32> to vector<8x256xf32>
    %398 = arith.mulf %397, %395 : vector<8x256xf32>
    %399 = arith.addf %394, %398 : vector<8x256xf32>
    %400 = vector.extract_strided_slice %383 {offsets = [0, 16], sizes = [8, 256], strides = [1, 1]} : vector<8x290xf32> to vector<8x256xf32>
    %401 = vector.extract_strided_slice %378 {offsets = [0, 3], sizes = [8, 1], strides = [1, 1]} : vector<8x9xf32> to vector<8x1xf32>
    %402 = vector.broadcast %401 : vector<8x1xf32> to vector<8x256xf32>
    %403 = arith.mulf %402, %400 : vector<8x256xf32>
    %404 = arith.addf %399, %403 : vector<8x256xf32>
    %405 = vector.extract_strided_slice %381 {offsets = [0, 17], sizes = [8, 256], strides = [1, 1]} : vector<8x290xf32> to vector<8x256xf32>
    %406 = vector.extract_strided_slice %378 {offsets = [0, 4], sizes = [8, 1], strides = [1, 1]} : vector<8x9xf32> to vector<8x1xf32>
    %407 = vector.broadcast %406 : vector<8x1xf32> to vector<8x256xf32>
    %408 = arith.mulf %407, %405 : vector<8x256xf32>
    %409 = arith.addf %404, %408 : vector<8x256xf32>
    %410 = vector.extract_strided_slice %385 {offsets = [0, 18], sizes = [8, 256], strides = [1, 1]} : vector<8x290xf32> to vector<8x256xf32>
    %411 = vector.extract_strided_slice %378 {offsets = [0, 5], sizes = [8, 1], strides = [1, 1]} : vector<8x9xf32> to vector<8x1xf32>
    %412 = vector.broadcast %411 : vector<8x1xf32> to vector<8x256xf32>
    %413 = arith.mulf %412, %410 : vector<8x256xf32>
    %414 = arith.addf %409, %413 : vector<8x256xf32>
    %415 = vector.extract_strided_slice %383 {offsets = [0, 32], sizes = [8, 256], strides = [1, 1]} : vector<8x290xf32> to vector<8x256xf32>
    %416 = vector.extract_strided_slice %378 {offsets = [0, 6], sizes = [8, 1], strides = [1, 1]} : vector<8x9xf32> to vector<8x1xf32>
    %417 = vector.broadcast %416 : vector<8x1xf32> to vector<8x256xf32>
    %418 = arith.mulf %417, %415 : vector<8x256xf32>
    %419 = arith.addf %414, %418 : vector<8x256xf32>
    %420 = vector.extract_strided_slice %381 {offsets = [0, 33], sizes = [8, 256], strides = [1, 1]} : vector<8x290xf32> to vector<8x256xf32>
    %421 = vector.extract_strided_slice %378 {offsets = [0, 7], sizes = [8, 1], strides = [1, 1]} : vector<8x9xf32> to vector<8x1xf32>
    %422 = vector.broadcast %421 : vector<8x1xf32> to vector<8x256xf32>
    %423 = arith.mulf %422, %420 : vector<8x256xf32>
    %424 = arith.addf %419, %423 : vector<8x256xf32>
    %425 = vector.extract_strided_slice %385 {offsets = [0, 34], sizes = [8, 256], strides = [1, 1]} : vector<8x290xf32> to vector<8x256xf32>
    %426 = vector.extract_strided_slice %378 {offsets = [0, 8], sizes = [8, 1], strides = [1, 1]} : vector<8x9xf32> to vector<8x1xf32>
    %427 = vector.broadcast %426 : vector<8x1xf32> to vector<8x256xf32>
    %428 = arith.mulf %427, %425 : vector<8x256xf32>
    %429 = arith.addf %424, %428 : vector<8x256xf32>
    %430 = vector.broadcast %379 : vector<8x1xf32> to vector<8x256xf32>
    %431 = arith.addf %429, %430 : vector<8x256xf32>
    %cst_57 = arith.constant 2.000000e+01 : f32
    %432 = vector.broadcast %cst_57 : f32 to vector<8x256xf32>
    %433 = arith.minimumf %431, %432 : vector<8x256xf32>
    %434 = math.exp %433 : vector<8x256xf32>
    %cst_58 = arith.constant 1.000000e+00 : f32
    %435 = vector.broadcast %cst_58 : f32 to vector<8x256xf32>
    %436 = arith.addf %435, %434 : vector<8x256xf32>
    %437 = arith.mulf %436, %436 : vector<8x256xf32>
    %cst_59 = arith.constant 1.000000e+00 : f32
    %438 = vector.broadcast %cst_59 : f32 to vector<8x256xf32>
    %439 = arith.subf %437, %438 : vector<8x256xf32>
    %440 = arith.mulf %431, %439 : vector<8x256xf32>
    %cst_60 = arith.constant 1.000000e+00 : f32
    %441 = vector.broadcast %cst_60 : f32 to vector<8x256xf32>
    %442 = arith.addf %437, %441 : vector<8x256xf32>
    %443 = arith.divf %440, %442 : vector<8x256xf32>
    %c0_61 = arith.constant 0 : index
    %c0_62 = arith.constant 0 : index
    %444 = vector.load %arg18[%c0_61, %c0_62] : memref<8x8xf32, #tpu.memory_space<vmem>>, vector<8x8xf32>
    %c0_63 = arith.constant 0 : index
    %c0_64 = arith.constant 0 : index
    %445 = vector.load %arg19[%c0_63, %c0_64] : memref<8x1xf32, #tpu.memory_space<vmem>>, vector<8x1xf32>
    %446 = vector.extract_strided_slice %444 {offsets = [0, 0], sizes = [8, 1], strides = [1, 1]} : vector<8x8xf32> to vector<8x1xf32>
    %447 = vector.extract_strided_slice %443 {offsets = [0, 0], sizes = [1, 256], strides = [1, 1]} : vector<8x256xf32> to vector<1x256xf32>
    %448 = vector.broadcast %446 : vector<8x1xf32> to vector<8x256xf32>
    %449 = vector.broadcast %447 : vector<1x256xf32> to vector<8x256xf32>
    %450 = arith.mulf %448, %449 : vector<8x256xf32>
    %451 = vector.extract_strided_slice %444 {offsets = [0, 1], sizes = [8, 1], strides = [1, 1]} : vector<8x8xf32> to vector<8x1xf32>
    %452 = vector.extract_strided_slice %443 {offsets = [1, 0], sizes = [1, 256], strides = [1, 1]} : vector<8x256xf32> to vector<1x256xf32>
    %453 = vector.broadcast %451 : vector<8x1xf32> to vector<8x256xf32>
    %454 = vector.broadcast %452 : vector<1x256xf32> to vector<8x256xf32>
    %455 = arith.mulf %453, %454 : vector<8x256xf32>
    %456 = arith.addf %450, %455 : vector<8x256xf32>
    %457 = vector.extract_strided_slice %444 {offsets = [0, 2], sizes = [8, 1], strides = [1, 1]} : vector<8x8xf32> to vector<8x1xf32>
    %458 = vector.extract_strided_slice %443 {offsets = [2, 0], sizes = [1, 256], strides = [1, 1]} : vector<8x256xf32> to vector<1x256xf32>
    %459 = vector.broadcast %457 : vector<8x1xf32> to vector<8x256xf32>
    %460 = vector.broadcast %458 : vector<1x256xf32> to vector<8x256xf32>
    %461 = arith.mulf %459, %460 : vector<8x256xf32>
    %462 = arith.addf %456, %461 : vector<8x256xf32>
    %463 = vector.extract_strided_slice %444 {offsets = [0, 3], sizes = [8, 1], strides = [1, 1]} : vector<8x8xf32> to vector<8x1xf32>
    %464 = vector.extract_strided_slice %443 {offsets = [3, 0], sizes = [1, 256], strides = [1, 1]} : vector<8x256xf32> to vector<1x256xf32>
    %465 = vector.broadcast %463 : vector<8x1xf32> to vector<8x256xf32>
    %466 = vector.broadcast %464 : vector<1x256xf32> to vector<8x256xf32>
    %467 = arith.mulf %465, %466 : vector<8x256xf32>
    %468 = arith.addf %462, %467 : vector<8x256xf32>
    %469 = vector.extract_strided_slice %444 {offsets = [0, 4], sizes = [8, 1], strides = [1, 1]} : vector<8x8xf32> to vector<8x1xf32>
    %470 = vector.extract_strided_slice %443 {offsets = [4, 0], sizes = [1, 256], strides = [1, 1]} : vector<8x256xf32> to vector<1x256xf32>
    %471 = vector.broadcast %469 : vector<8x1xf32> to vector<8x256xf32>
    %472 = vector.broadcast %470 : vector<1x256xf32> to vector<8x256xf32>
    %473 = arith.mulf %471, %472 : vector<8x256xf32>
    %474 = arith.addf %468, %473 : vector<8x256xf32>
    %475 = vector.extract_strided_slice %444 {offsets = [0, 5], sizes = [8, 1], strides = [1, 1]} : vector<8x8xf32> to vector<8x1xf32>
    %476 = vector.extract_strided_slice %443 {offsets = [5, 0], sizes = [1, 256], strides = [1, 1]} : vector<8x256xf32> to vector<1x256xf32>
    %477 = vector.broadcast %475 : vector<8x1xf32> to vector<8x256xf32>
    %478 = vector.broadcast %476 : vector<1x256xf32> to vector<8x256xf32>
    %479 = arith.mulf %477, %478 : vector<8x256xf32>
    %480 = arith.addf %474, %479 : vector<8x256xf32>
    %481 = vector.extract_strided_slice %444 {offsets = [0, 6], sizes = [8, 1], strides = [1, 1]} : vector<8x8xf32> to vector<8x1xf32>
    %482 = vector.extract_strided_slice %443 {offsets = [6, 0], sizes = [1, 256], strides = [1, 1]} : vector<8x256xf32> to vector<1x256xf32>
    %483 = vector.broadcast %481 : vector<8x1xf32> to vector<8x256xf32>
    %484 = vector.broadcast %482 : vector<1x256xf32> to vector<8x256xf32>
    %485 = arith.mulf %483, %484 : vector<8x256xf32>
    %486 = arith.addf %480, %485 : vector<8x256xf32>
    %487 = vector.extract_strided_slice %444 {offsets = [0, 7], sizes = [8, 1], strides = [1, 1]} : vector<8x8xf32> to vector<8x1xf32>
    %488 = vector.extract_strided_slice %443 {offsets = [7, 0], sizes = [1, 256], strides = [1, 1]} : vector<8x256xf32> to vector<1x256xf32>
    %489 = vector.broadcast %487 : vector<8x1xf32> to vector<8x256xf32>
    %490 = vector.broadcast %488 : vector<1x256xf32> to vector<8x256xf32>
    %491 = arith.mulf %489, %490 : vector<8x256xf32>
    %492 = arith.addf %486, %491 : vector<8x256xf32>
    %493 = vector.broadcast %445 : vector<8x1xf32> to vector<8x256xf32>
    %494 = arith.addf %492, %493 : vector<8x256xf32>
    %495 = arith.addf %494, %377 : vector<8x256xf32>
    %c0_65 = arith.constant 0 : index
    %c0_66 = arith.constant 0 : index
    %496 = vector.load %arg20[%c0_65, %c0_66] : memref<8x8xf32, #tpu.memory_space<vmem>>, vector<8x8xf32>
    %c0_67 = arith.constant 0 : index
    %c0_68 = arith.constant 0 : index
    %497 = vector.load %arg21[%c0_67, %c0_68] : memref<8x1xf32, #tpu.memory_space<vmem>>, vector<8x1xf32>
    %498 = vector.extract_strided_slice %496 {offsets = [0, 0], sizes = [8, 1], strides = [1, 1]} : vector<8x8xf32> to vector<8x1xf32>
    %499 = vector.extract_strided_slice %495 {offsets = [0, 0], sizes = [1, 256], strides = [1, 1]} : vector<8x256xf32> to vector<1x256xf32>
    %500 = vector.broadcast %498 : vector<8x1xf32> to vector<8x256xf32>
    %501 = vector.broadcast %499 : vector<1x256xf32> to vector<8x256xf32>
    %502 = arith.mulf %500, %501 : vector<8x256xf32>
    %503 = vector.extract_strided_slice %496 {offsets = [0, 1], sizes = [8, 1], strides = [1, 1]} : vector<8x8xf32> to vector<8x1xf32>
    %504 = vector.extract_strided_slice %495 {offsets = [1, 0], sizes = [1, 256], strides = [1, 1]} : vector<8x256xf32> to vector<1x256xf32>
    %505 = vector.broadcast %503 : vector<8x1xf32> to vector<8x256xf32>
    %506 = vector.broadcast %504 : vector<1x256xf32> to vector<8x256xf32>
    %507 = arith.mulf %505, %506 : vector<8x256xf32>
    %508 = arith.addf %502, %507 : vector<8x256xf32>
    %509 = vector.extract_strided_slice %496 {offsets = [0, 2], sizes = [8, 1], strides = [1, 1]} : vector<8x8xf32> to vector<8x1xf32>
    %510 = vector.extract_strided_slice %495 {offsets = [2, 0], sizes = [1, 256], strides = [1, 1]} : vector<8x256xf32> to vector<1x256xf32>
    %511 = vector.broadcast %509 : vector<8x1xf32> to vector<8x256xf32>
    %512 = vector.broadcast %510 : vector<1x256xf32> to vector<8x256xf32>
    %513 = arith.mulf %511, %512 : vector<8x256xf32>
    %514 = arith.addf %508, %513 : vector<8x256xf32>
    %515 = vector.extract_strided_slice %496 {offsets = [0, 3], sizes = [8, 1], strides = [1, 1]} : vector<8x8xf32> to vector<8x1xf32>
    %516 = vector.extract_strided_slice %495 {offsets = [3, 0], sizes = [1, 256], strides = [1, 1]} : vector<8x256xf32> to vector<1x256xf32>
    %517 = vector.broadcast %515 : vector<8x1xf32> to vector<8x256xf32>
    %518 = vector.broadcast %516 : vector<1x256xf32> to vector<8x256xf32>
    %519 = arith.mulf %517, %518 : vector<8x256xf32>
    %520 = arith.addf %514, %519 : vector<8x256xf32>
    %521 = vector.extract_strided_slice %496 {offsets = [0, 4], sizes = [8, 1], strides = [1, 1]} : vector<8x8xf32> to vector<8x1xf32>
    %522 = vector.extract_strided_slice %495 {offsets = [4, 0], sizes = [1, 256], strides = [1, 1]} : vector<8x256xf32> to vector<1x256xf32>
    %523 = vector.broadcast %521 : vector<8x1xf32> to vector<8x256xf32>
    %524 = vector.broadcast %522 : vector<1x256xf32> to vector<8x256xf32>
    %525 = arith.mulf %523, %524 : vector<8x256xf32>
    %526 = arith.addf %520, %525 : vector<8x256xf32>
    %527 = vector.extract_strided_slice %496 {offsets = [0, 5], sizes = [8, 1], strides = [1, 1]} : vector<8x8xf32> to vector<8x1xf32>
    %528 = vector.extract_strided_slice %495 {offsets = [5, 0], sizes = [1, 256], strides = [1, 1]} : vector<8x256xf32> to vector<1x256xf32>
    %529 = vector.broadcast %527 : vector<8x1xf32> to vector<8x256xf32>
    %530 = vector.broadcast %528 : vector<1x256xf32> to vector<8x256xf32>
    %531 = arith.mulf %529, %530 : vector<8x256xf32>
    %532 = arith.addf %526, %531 : vector<8x256xf32>
    %533 = vector.extract_strided_slice %496 {offsets = [0, 6], sizes = [8, 1], strides = [1, 1]} : vector<8x8xf32> to vector<8x1xf32>
    %534 = vector.extract_strided_slice %495 {offsets = [6, 0], sizes = [1, 256], strides = [1, 1]} : vector<8x256xf32> to vector<1x256xf32>
    %535 = vector.broadcast %533 : vector<8x1xf32> to vector<8x256xf32>
    %536 = vector.broadcast %534 : vector<1x256xf32> to vector<8x256xf32>
    %537 = arith.mulf %535, %536 : vector<8x256xf32>
    %538 = arith.addf %532, %537 : vector<8x256xf32>
    %539 = vector.extract_strided_slice %496 {offsets = [0, 7], sizes = [8, 1], strides = [1, 1]} : vector<8x8xf32> to vector<8x1xf32>
    %540 = vector.extract_strided_slice %495 {offsets = [7, 0], sizes = [1, 256], strides = [1, 1]} : vector<8x256xf32> to vector<1x256xf32>
    %541 = vector.broadcast %539 : vector<8x1xf32> to vector<8x256xf32>
    %542 = vector.broadcast %540 : vector<1x256xf32> to vector<8x256xf32>
    %543 = arith.mulf %541, %542 : vector<8x256xf32>
    %544 = arith.addf %538, %543 : vector<8x256xf32>
    %545 = vector.broadcast %497 : vector<8x1xf32> to vector<8x256xf32>
    %546 = arith.addf %544, %545 : vector<8x256xf32>
    %cst_69 = arith.constant 2.000000e+01 : f32
    %547 = vector.broadcast %cst_69 : f32 to vector<8x256xf32>
    %548 = arith.minimumf %546, %547 : vector<8x256xf32>
    %549 = math.exp %548 : vector<8x256xf32>
    %cst_70 = arith.constant 1.000000e+00 : f32
    %550 = vector.broadcast %cst_70 : f32 to vector<8x256xf32>
    %551 = arith.addf %550, %549 : vector<8x256xf32>
    %552 = arith.mulf %551, %551 : vector<8x256xf32>
    %cst_71 = arith.constant 1.000000e+00 : f32
    %553 = vector.broadcast %cst_71 : f32 to vector<8x256xf32>
    %554 = arith.subf %552, %553 : vector<8x256xf32>
    %555 = arith.mulf %546, %554 : vector<8x256xf32>
    %cst_72 = arith.constant 1.000000e+00 : f32
    %556 = vector.broadcast %cst_72 : f32 to vector<8x256xf32>
    %557 = arith.addf %552, %556 : vector<8x256xf32>
    %558 = arith.divf %555, %557 : vector<8x256xf32>
    %c0_73 = arith.constant 0 : index
    %c0_74 = arith.constant 0 : index
    %559 = vector.load %arg22[%c0_73, %c0_74] : memref<8x9xf32, #tpu.memory_space<vmem>>, vector<8x9xf32>
    %c0_75 = arith.constant 0 : index
    %c0_76 = arith.constant 0 : index
    %560 = vector.load %arg23[%c0_75, %c0_76] : memref<8x1xf32, #tpu.memory_space<vmem>>, vector<8x1xf32>
    %cst_77 = arith.constant 0.000000e+00 : f32
    %561 = vector.broadcast %cst_77 : f32 to vector<8x17xf32>
    %562 = tpu.concatenate %561, %558, %561 in 1 : vector<8x17xf32>, vector<8x256xf32>, vector<8x17xf32> -> vector<8x290xf32>
    %563 = vector.broadcast %8 : vector<1x290xf32> to vector<8x290xf32>
    %564 = arith.mulf %562, %563 : vector<8x290xf32>
    %565 = vector.broadcast %12 : vector<1x290xf32> to vector<8x290xf32>
    %566 = arith.mulf %562, %565 : vector<8x290xf32>
    %567 = vector.extract_strided_slice %564 {offsets = [0, 0], sizes = [8, 256], strides = [1, 1]} : vector<8x290xf32> to vector<8x256xf32>
    %568 = vector.extract_strided_slice %559 {offsets = [0, 0], sizes = [8, 1], strides = [1, 1]} : vector<8x9xf32> to vector<8x1xf32>
    %569 = vector.broadcast %568 : vector<8x1xf32> to vector<8x256xf32>
    %570 = arith.mulf %569, %567 : vector<8x256xf32>
    %571 = vector.extract_strided_slice %562 {offsets = [0, 1], sizes = [8, 256], strides = [1, 1]} : vector<8x290xf32> to vector<8x256xf32>
    %572 = vector.extract_strided_slice %559 {offsets = [0, 1], sizes = [8, 1], strides = [1, 1]} : vector<8x9xf32> to vector<8x1xf32>
    %573 = vector.broadcast %572 : vector<8x1xf32> to vector<8x256xf32>
    %574 = arith.mulf %573, %571 : vector<8x256xf32>
    %575 = arith.addf %570, %574 : vector<8x256xf32>
    %576 = vector.extract_strided_slice %566 {offsets = [0, 2], sizes = [8, 256], strides = [1, 1]} : vector<8x290xf32> to vector<8x256xf32>
    %577 = vector.extract_strided_slice %559 {offsets = [0, 2], sizes = [8, 1], strides = [1, 1]} : vector<8x9xf32> to vector<8x1xf32>
    %578 = vector.broadcast %577 : vector<8x1xf32> to vector<8x256xf32>
    %579 = arith.mulf %578, %576 : vector<8x256xf32>
    %580 = arith.addf %575, %579 : vector<8x256xf32>
    %581 = vector.extract_strided_slice %564 {offsets = [0, 16], sizes = [8, 256], strides = [1, 1]} : vector<8x290xf32> to vector<8x256xf32>
    %582 = vector.extract_strided_slice %559 {offsets = [0, 3], sizes = [8, 1], strides = [1, 1]} : vector<8x9xf32> to vector<8x1xf32>
    %583 = vector.broadcast %582 : vector<8x1xf32> to vector<8x256xf32>
    %584 = arith.mulf %583, %581 : vector<8x256xf32>
    %585 = arith.addf %580, %584 : vector<8x256xf32>
    %586 = vector.extract_strided_slice %562 {offsets = [0, 17], sizes = [8, 256], strides = [1, 1]} : vector<8x290xf32> to vector<8x256xf32>
    %587 = vector.extract_strided_slice %559 {offsets = [0, 4], sizes = [8, 1], strides = [1, 1]} : vector<8x9xf32> to vector<8x1xf32>
    %588 = vector.broadcast %587 : vector<8x1xf32> to vector<8x256xf32>
    %589 = arith.mulf %588, %586 : vector<8x256xf32>
    %590 = arith.addf %585, %589 : vector<8x256xf32>
    %591 = vector.extract_strided_slice %566 {offsets = [0, 18], sizes = [8, 256], strides = [1, 1]} : vector<8x290xf32> to vector<8x256xf32>
    %592 = vector.extract_strided_slice %559 {offsets = [0, 5], sizes = [8, 1], strides = [1, 1]} : vector<8x9xf32> to vector<8x1xf32>
    %593 = vector.broadcast %592 : vector<8x1xf32> to vector<8x256xf32>
    %594 = arith.mulf %593, %591 : vector<8x256xf32>
    %595 = arith.addf %590, %594 : vector<8x256xf32>
    %596 = vector.extract_strided_slice %564 {offsets = [0, 32], sizes = [8, 256], strides = [1, 1]} : vector<8x290xf32> to vector<8x256xf32>
    %597 = vector.extract_strided_slice %559 {offsets = [0, 6], sizes = [8, 1], strides = [1, 1]} : vector<8x9xf32> to vector<8x1xf32>
    %598 = vector.broadcast %597 : vector<8x1xf32> to vector<8x256xf32>
    %599 = arith.mulf %598, %596 : vector<8x256xf32>
    %600 = arith.addf %595, %599 : vector<8x256xf32>
    %601 = vector.extract_strided_slice %562 {offsets = [0, 33], sizes = [8, 256], strides = [1, 1]} : vector<8x290xf32> to vector<8x256xf32>
    %602 = vector.extract_strided_slice %559 {offsets = [0, 7], sizes = [8, 1], strides = [1, 1]} : vector<8x9xf32> to vector<8x1xf32>
    %603 = vector.broadcast %602 : vector<8x1xf32> to vector<8x256xf32>
    %604 = arith.mulf %603, %601 : vector<8x256xf32>
    %605 = arith.addf %600, %604 : vector<8x256xf32>
    %606 = vector.extract_strided_slice %566 {offsets = [0, 34], sizes = [8, 256], strides = [1, 1]} : vector<8x290xf32> to vector<8x256xf32>
    %607 = vector.extract_strided_slice %559 {offsets = [0, 8], sizes = [8, 1], strides = [1, 1]} : vector<8x9xf32> to vector<8x1xf32>
    %608 = vector.broadcast %607 : vector<8x1xf32> to vector<8x256xf32>
    %609 = arith.mulf %608, %606 : vector<8x256xf32>
    %610 = arith.addf %605, %609 : vector<8x256xf32>
    %611 = vector.broadcast %560 : vector<8x1xf32> to vector<8x256xf32>
    %612 = arith.addf %610, %611 : vector<8x256xf32>
    %cst_78 = arith.constant 2.000000e+01 : f32
    %613 = vector.broadcast %cst_78 : f32 to vector<8x256xf32>
    %614 = arith.minimumf %612, %613 : vector<8x256xf32>
    %615 = math.exp %614 : vector<8x256xf32>
    %cst_79 = arith.constant 1.000000e+00 : f32
    %616 = vector.broadcast %cst_79 : f32 to vector<8x256xf32>
    %617 = arith.addf %616, %615 : vector<8x256xf32>
    %618 = arith.mulf %617, %617 : vector<8x256xf32>
    %cst_80 = arith.constant 1.000000e+00 : f32
    %619 = vector.broadcast %cst_80 : f32 to vector<8x256xf32>
    %620 = arith.subf %618, %619 : vector<8x256xf32>
    %621 = arith.mulf %612, %620 : vector<8x256xf32>
    %cst_81 = arith.constant 1.000000e+00 : f32
    %622 = vector.broadcast %cst_81 : f32 to vector<8x256xf32>
    %623 = arith.addf %618, %622 : vector<8x256xf32>
    %624 = arith.divf %621, %623 : vector<8x256xf32>
    %c0_82 = arith.constant 0 : index
    %c0_83 = arith.constant 0 : index
    %625 = vector.load %arg24[%c0_82, %c0_83] : memref<2x8xf32, #tpu.memory_space<vmem>>, vector<2x8xf32>
    %c0_84 = arith.constant 0 : index
    %c0_85 = arith.constant 0 : index
    %626 = vector.load %arg25[%c0_84, %c0_85] : memref<2x1xf32, #tpu.memory_space<vmem>>, vector<2x1xf32>
    %c0_86 = arith.constant 0 : index
    %c0_87 = arith.constant 0 : index
    %627 = vector.load %arg26[%c0_86, %c0_87] : memref<8x2xf32, #tpu.memory_space<vmem>>, vector<8x2xf32>
    %c0_88 = arith.constant 0 : index
    %c0_89 = arith.constant 0 : index
    %628 = vector.load %arg27[%c0_88, %c0_89] : memref<8x1xf32, #tpu.memory_space<vmem>>, vector<8x1xf32>
    %629 = vector.extract_strided_slice %625 {offsets = [0, 0], sizes = [2, 1], strides = [1, 1]} : vector<2x8xf32> to vector<2x1xf32>
    %630 = vector.extract_strided_slice %624 {offsets = [0, 0], sizes = [1, 256], strides = [1, 1]} : vector<8x256xf32> to vector<1x256xf32>
    %631 = vector.broadcast %629 : vector<2x1xf32> to vector<2x256xf32>
    %632 = vector.broadcast %630 : vector<1x256xf32> to vector<2x256xf32>
    %633 = arith.mulf %631, %632 : vector<2x256xf32>
    %634 = vector.extract_strided_slice %625 {offsets = [0, 1], sizes = [2, 1], strides = [1, 1]} : vector<2x8xf32> to vector<2x1xf32>
    %635 = vector.extract_strided_slice %624 {offsets = [1, 0], sizes = [1, 256], strides = [1, 1]} : vector<8x256xf32> to vector<1x256xf32>
    %636 = vector.broadcast %634 : vector<2x1xf32> to vector<2x256xf32>
    %637 = vector.broadcast %635 : vector<1x256xf32> to vector<2x256xf32>
    %638 = arith.mulf %636, %637 : vector<2x256xf32>
    %639 = arith.addf %633, %638 : vector<2x256xf32>
    %640 = vector.extract_strided_slice %625 {offsets = [0, 2], sizes = [2, 1], strides = [1, 1]} : vector<2x8xf32> to vector<2x1xf32>
    %641 = vector.extract_strided_slice %624 {offsets = [2, 0], sizes = [1, 256], strides = [1, 1]} : vector<8x256xf32> to vector<1x256xf32>
    %642 = vector.broadcast %640 : vector<2x1xf32> to vector<2x256xf32>
    %643 = vector.broadcast %641 : vector<1x256xf32> to vector<2x256xf32>
    %644 = arith.mulf %642, %643 : vector<2x256xf32>
    %645 = arith.addf %639, %644 : vector<2x256xf32>
    %646 = vector.extract_strided_slice %625 {offsets = [0, 3], sizes = [2, 1], strides = [1, 1]} : vector<2x8xf32> to vector<2x1xf32>
    %647 = vector.extract_strided_slice %624 {offsets = [3, 0], sizes = [1, 256], strides = [1, 1]} : vector<8x256xf32> to vector<1x256xf32>
    %648 = vector.broadcast %646 : vector<2x1xf32> to vector<2x256xf32>
    %649 = vector.broadcast %647 : vector<1x256xf32> to vector<2x256xf32>
    %650 = arith.mulf %648, %649 : vector<2x256xf32>
    %651 = arith.addf %645, %650 : vector<2x256xf32>
    %652 = vector.extract_strided_slice %625 {offsets = [0, 4], sizes = [2, 1], strides = [1, 1]} : vector<2x8xf32> to vector<2x1xf32>
    %653 = vector.extract_strided_slice %624 {offsets = [4, 0], sizes = [1, 256], strides = [1, 1]} : vector<8x256xf32> to vector<1x256xf32>
    %654 = vector.broadcast %652 : vector<2x1xf32> to vector<2x256xf32>
    %655 = vector.broadcast %653 : vector<1x256xf32> to vector<2x256xf32>
    %656 = arith.mulf %654, %655 : vector<2x256xf32>
    %657 = arith.addf %651, %656 : vector<2x256xf32>
    %658 = vector.extract_strided_slice %625 {offsets = [0, 5], sizes = [2, 1], strides = [1, 1]} : vector<2x8xf32> to vector<2x1xf32>
    %659 = vector.extract_strided_slice %624 {offsets = [5, 0], sizes = [1, 256], strides = [1, 1]} : vector<8x256xf32> to vector<1x256xf32>
    %660 = vector.broadcast %658 : vector<2x1xf32> to vector<2x256xf32>
    %661 = vector.broadcast %659 : vector<1x256xf32> to vector<2x256xf32>
    %662 = arith.mulf %660, %661 : vector<2x256xf32>
    %663 = arith.addf %657, %662 : vector<2x256xf32>
    %664 = vector.extract_strided_slice %625 {offsets = [0, 6], sizes = [2, 1], strides = [1, 1]} : vector<2x8xf32> to vector<2x1xf32>
    %665 = vector.extract_strided_slice %624 {offsets = [6, 0], sizes = [1, 256], strides = [1, 1]} : vector<8x256xf32> to vector<1x256xf32>
    %666 = vector.broadcast %664 : vector<2x1xf32> to vector<2x256xf32>
    %667 = vector.broadcast %665 : vector<1x256xf32> to vector<2x256xf32>
    %668 = arith.mulf %666, %667 : vector<2x256xf32>
    %669 = arith.addf %663, %668 : vector<2x256xf32>
    %670 = vector.extract_strided_slice %625 {offsets = [0, 7], sizes = [2, 1], strides = [1, 1]} : vector<2x8xf32> to vector<2x1xf32>
    %671 = vector.extract_strided_slice %624 {offsets = [7, 0], sizes = [1, 256], strides = [1, 1]} : vector<8x256xf32> to vector<1x256xf32>
    %672 = vector.broadcast %670 : vector<2x1xf32> to vector<2x256xf32>
    %673 = vector.broadcast %671 : vector<1x256xf32> to vector<2x256xf32>
    %674 = arith.mulf %672, %673 : vector<2x256xf32>
    %675 = arith.addf %669, %674 : vector<2x256xf32>
    %cst_90 = arith.constant dense<0.000000e+00> : vector<2xf32>
    %676 = vector.multi_reduction <add>, %675, %cst_90 [1] : vector<2x256xf32> to vector<2xf32>
    %677 = vector.shape_cast %676 : vector<2xf32> to vector<2x1xf32>
    %cst_91 = arith.constant 3.906250e-03 : f32
    %678 = vector.broadcast %cst_91 : f32 to vector<2x1xf32>
    %679 = arith.mulf %677, %678 : vector<2x1xf32>
    %680 = arith.addf %679, %626 : vector<2x1xf32>
    %cst_92 = arith.constant 2.000000e+01 : f32
    %681 = vector.broadcast %cst_92 : f32 to vector<2x1xf32>
    %682 = arith.minimumf %680, %681 : vector<2x1xf32>
    %683 = math.exp %682 : vector<2x1xf32>
    %cst_93 = arith.constant 1.000000e+00 : f32
    %684 = vector.broadcast %cst_93 : f32 to vector<2x1xf32>
    %685 = arith.addf %684, %683 : vector<2x1xf32>
    %686 = arith.mulf %685, %685 : vector<2x1xf32>
    %cst_94 = arith.constant 1.000000e+00 : f32
    %687 = vector.broadcast %cst_94 : f32 to vector<2x1xf32>
    %688 = arith.subf %686, %687 : vector<2x1xf32>
    %689 = arith.mulf %680, %688 : vector<2x1xf32>
    %cst_95 = arith.constant 1.000000e+00 : f32
    %690 = vector.broadcast %cst_95 : f32 to vector<2x1xf32>
    %691 = arith.addf %686, %690 : vector<2x1xf32>
    %692 = arith.divf %689, %691 : vector<2x1xf32>
    %693 = vector.shape_cast %692 : vector<2x1xf32> to vector<2x1xf32>
    %694 = vector.broadcast %693 : vector<2x1xf32> to vector<2x256xf32>
    %695 = vector.extract_strided_slice %627 {offsets = [0, 0], sizes = [8, 1], strides = [1, 1]} : vector<8x2xf32> to vector<8x1xf32>
    %696 = vector.extract_strided_slice %694 {offsets = [0, 0], sizes = [1, 256], strides = [1, 1]} : vector<2x256xf32> to vector<1x256xf32>
    %697 = vector.broadcast %695 : vector<8x1xf32> to vector<8x256xf32>
    %698 = vector.broadcast %696 : vector<1x256xf32> to vector<8x256xf32>
    %699 = arith.mulf %697, %698 : vector<8x256xf32>
    %700 = vector.extract_strided_slice %627 {offsets = [0, 1], sizes = [8, 1], strides = [1, 1]} : vector<8x2xf32> to vector<8x1xf32>
    %701 = vector.extract_strided_slice %694 {offsets = [1, 0], sizes = [1, 256], strides = [1, 1]} : vector<2x256xf32> to vector<1x256xf32>
    %702 = vector.broadcast %700 : vector<8x1xf32> to vector<8x256xf32>
    %703 = vector.broadcast %701 : vector<1x256xf32> to vector<8x256xf32>
    %704 = arith.mulf %702, %703 : vector<8x256xf32>
    %705 = arith.addf %699, %704 : vector<8x256xf32>
    %706 = vector.broadcast %628 : vector<8x1xf32> to vector<8x256xf32>
    %707 = arith.addf %705, %706 : vector<8x256xf32>
    %708 = arith.negf %707 : vector<8x256xf32>
    %709 = math.exp %708 : vector<8x256xf32>
    %cst_96 = arith.constant 1.000000e+00 : f32
    %710 = vector.broadcast %cst_96 : f32 to vector<8x256xf32>
    %711 = arith.addf %710, %709 : vector<8x256xf32>
    %712 = arith.divf %710, %711 : vector<8x256xf32>
    %713 = arith.mulf %624, %712 : vector<8x256xf32>
    %c0_97 = arith.constant 0 : index
    %c0_98 = arith.constant 0 : index
    %714 = vector.load %arg28[%c0_97, %c0_98] : memref<8x8xf32, #tpu.memory_space<vmem>>, vector<8x8xf32>
    %c0_99 = arith.constant 0 : index
    %c0_100 = arith.constant 0 : index
    %715 = vector.load %arg29[%c0_99, %c0_100] : memref<8x1xf32, #tpu.memory_space<vmem>>, vector<8x1xf32>
    %716 = vector.extract_strided_slice %714 {offsets = [0, 0], sizes = [8, 1], strides = [1, 1]} : vector<8x8xf32> to vector<8x1xf32>
    %717 = vector.extract_strided_slice %713 {offsets = [0, 0], sizes = [1, 256], strides = [1, 1]} : vector<8x256xf32> to vector<1x256xf32>
    %718 = vector.broadcast %716 : vector<8x1xf32> to vector<8x256xf32>
    %719 = vector.broadcast %717 : vector<1x256xf32> to vector<8x256xf32>
    %720 = arith.mulf %718, %719 : vector<8x256xf32>
    %721 = vector.extract_strided_slice %714 {offsets = [0, 1], sizes = [8, 1], strides = [1, 1]} : vector<8x8xf32> to vector<8x1xf32>
    %722 = vector.extract_strided_slice %713 {offsets = [1, 0], sizes = [1, 256], strides = [1, 1]} : vector<8x256xf32> to vector<1x256xf32>
    %723 = vector.broadcast %721 : vector<8x1xf32> to vector<8x256xf32>
    %724 = vector.broadcast %722 : vector<1x256xf32> to vector<8x256xf32>
    %725 = arith.mulf %723, %724 : vector<8x256xf32>
    %726 = arith.addf %720, %725 : vector<8x256xf32>
    %727 = vector.extract_strided_slice %714 {offsets = [0, 2], sizes = [8, 1], strides = [1, 1]} : vector<8x8xf32> to vector<8x1xf32>
    %728 = vector.extract_strided_slice %713 {offsets = [2, 0], sizes = [1, 256], strides = [1, 1]} : vector<8x256xf32> to vector<1x256xf32>
    %729 = vector.broadcast %727 : vector<8x1xf32> to vector<8x256xf32>
    %730 = vector.broadcast %728 : vector<1x256xf32> to vector<8x256xf32>
    %731 = arith.mulf %729, %730 : vector<8x256xf32>
    %732 = arith.addf %726, %731 : vector<8x256xf32>
    %733 = vector.extract_strided_slice %714 {offsets = [0, 3], sizes = [8, 1], strides = [1, 1]} : vector<8x8xf32> to vector<8x1xf32>
    %734 = vector.extract_strided_slice %713 {offsets = [3, 0], sizes = [1, 256], strides = [1, 1]} : vector<8x256xf32> to vector<1x256xf32>
    %735 = vector.broadcast %733 : vector<8x1xf32> to vector<8x256xf32>
    %736 = vector.broadcast %734 : vector<1x256xf32> to vector<8x256xf32>
    %737 = arith.mulf %735, %736 : vector<8x256xf32>
    %738 = arith.addf %732, %737 : vector<8x256xf32>
    %739 = vector.extract_strided_slice %714 {offsets = [0, 4], sizes = [8, 1], strides = [1, 1]} : vector<8x8xf32> to vector<8x1xf32>
    %740 = vector.extract_strided_slice %713 {offsets = [4, 0], sizes = [1, 256], strides = [1, 1]} : vector<8x256xf32> to vector<1x256xf32>
    %741 = vector.broadcast %739 : vector<8x1xf32> to vector<8x256xf32>
    %742 = vector.broadcast %740 : vector<1x256xf32> to vector<8x256xf32>
    %743 = arith.mulf %741, %742 : vector<8x256xf32>
    %744 = arith.addf %738, %743 : vector<8x256xf32>
    %745 = vector.extract_strided_slice %714 {offsets = [0, 5], sizes = [8, 1], strides = [1, 1]} : vector<8x8xf32> to vector<8x1xf32>
    %746 = vector.extract_strided_slice %713 {offsets = [5, 0], sizes = [1, 256], strides = [1, 1]} : vector<8x256xf32> to vector<1x256xf32>
    %747 = vector.broadcast %745 : vector<8x1xf32> to vector<8x256xf32>
    %748 = vector.broadcast %746 : vector<1x256xf32> to vector<8x256xf32>
    %749 = arith.mulf %747, %748 : vector<8x256xf32>
    %750 = arith.addf %744, %749 : vector<8x256xf32>
    %751 = vector.extract_strided_slice %714 {offsets = [0, 6], sizes = [8, 1], strides = [1, 1]} : vector<8x8xf32> to vector<8x1xf32>
    %752 = vector.extract_strided_slice %713 {offsets = [6, 0], sizes = [1, 256], strides = [1, 1]} : vector<8x256xf32> to vector<1x256xf32>
    %753 = vector.broadcast %751 : vector<8x1xf32> to vector<8x256xf32>
    %754 = vector.broadcast %752 : vector<1x256xf32> to vector<8x256xf32>
    %755 = arith.mulf %753, %754 : vector<8x256xf32>
    %756 = arith.addf %750, %755 : vector<8x256xf32>
    %757 = vector.extract_strided_slice %714 {offsets = [0, 7], sizes = [8, 1], strides = [1, 1]} : vector<8x8xf32> to vector<8x1xf32>
    %758 = vector.extract_strided_slice %713 {offsets = [7, 0], sizes = [1, 256], strides = [1, 1]} : vector<8x256xf32> to vector<1x256xf32>
    %759 = vector.broadcast %757 : vector<8x1xf32> to vector<8x256xf32>
    %760 = vector.broadcast %758 : vector<1x256xf32> to vector<8x256xf32>
    %761 = arith.mulf %759, %760 : vector<8x256xf32>
    %762 = arith.addf %756, %761 : vector<8x256xf32>
    %763 = vector.broadcast %715 : vector<8x1xf32> to vector<8x256xf32>
    %764 = arith.addf %762, %763 : vector<8x256xf32>
    %765 = arith.addf %764, %495 : vector<8x256xf32>
    %c0_101 = arith.constant 0 : index
    %c0_102 = arith.constant 0 : index
    %c0_103 = arith.constant 0 : index
    %766 = vector.load %arg30[%c0_101, %c0_102, %c0_103] : memref<1x8x256xf32, #tpu.memory_space<vmem>>, vector<1x8x256xf32>
    %767 = vector.shape_cast %766 : vector<1x8x256xf32> to vector<8x256xf32>
    %768 = vector.shape_cast %765 : vector<8x256xf32> to vector<1x8x256xf32>
    tpu.vector_store %arg30[%c0_101, %c0_102, %c0_103], %768 {strides = array<i32>} : memref<1x8x256xf32, #tpu.memory_space<vmem>>, vector<1x8x256xf32>,
    return
  }
  func.func @transform_0(%arg0: i32) -> (i32, i32, i32) {
    %c0_i32 = arith.constant 0 : i32
    %c0_i32_0 = arith.constant 0 : i32
    %c0_i32_1 = arith.constant 0 : i32
    return %arg0, %c0_i32, %c0_i32_0 : i32, i32, i32
  }
  func.func @transform_1(%arg0: i32) -> (i32, i32) {
    %c0_i32 = arith.constant 0 : i32
    %c0_i32_0 = arith.constant 0 : i32
    %c0_i32_1 = arith.constant 0 : i32
    return %c0_i32, %c0_i32_0 : i32, i32
  }
  func.func @transform_2(%arg0: i32) -> (i32, i32) {
    %c0_i32 = arith.constant 0 : i32
    %c0_i32_0 = arith.constant 0 : i32
    %c0_i32_1 = arith.constant 0 : i32
    return %c0_i32, %c0_i32_0 : i32, i32
  }
  func.func @transform_3(%arg0: i32) -> (i32, i32) {
    %c0_i32 = arith.constant 0 : i32
    %c0_i32_0 = arith.constant 0 : i32
    %c0_i32_1 = arith.constant 0 : i32
    return %c0_i32, %c0_i32_0 : i32, i32
  }
  func.func @transform_4(%arg0: i32) -> (i32, i32) {
    %c0_i32 = arith.constant 0 : i32
    %c0_i32_0 = arith.constant 0 : i32
    %c0_i32_1 = arith.constant 0 : i32
    return %c0_i32, %c0_i32_0 : i32, i32
  }
  func.func @transform_5(%arg0: i32) -> (i32, i32) {
    %c0_i32 = arith.constant 0 : i32
    %c0_i32_0 = arith.constant 0 : i32
    %c0_i32_1 = arith.constant 0 : i32
    return %c0_i32, %c0_i32_0 : i32, i32
  }
  func.func @transform_6(%arg0: i32) -> (i32, i32) {
    %c0_i32 = arith.constant 0 : i32
    %c0_i32_0 = arith.constant 0 : i32
    %c0_i32_1 = arith.constant 0 : i32
    return %c0_i32, %c0_i32_0 : i32, i32
  }
  func.func @transform_7(%arg0: i32) -> (i32, i32) {
    %c0_i32 = arith.constant 0 : i32
    %c0_i32_0 = arith.constant 0 : i32
    %c0_i32_1 = arith.constant 0 : i32
    return %c0_i32, %c0_i32_0 : i32, i32
  }
  func.func @transform_8(%arg0: i32) -> (i32, i32) {
    %c0_i32 = arith.constant 0 : i32
    %c0_i32_0 = arith.constant 0 : i32
    %c0_i32_1 = arith.constant 0 : i32
    return %c0_i32, %c0_i32_0 : i32, i32
  }
  func.func @transform_9(%arg0: i32) -> (i32, i32) {
    %c0_i32 = arith.constant 0 : i32
    %c0_i32_0 = arith.constant 0 : i32
    %c0_i32_1 = arith.constant 0 : i32
    return %c0_i32, %c0_i32_0 : i32, i32
  }
  func.func @transform_10(%arg0: i32) -> (i32, i32) {
    %c0_i32 = arith.constant 0 : i32
    %c0_i32_0 = arith.constant 0 : i32
    %c0_i32_1 = arith.constant 0 : i32
    return %c0_i32, %c0_i32_0 : i32, i32
  }
  func.func @transform_11(%arg0: i32) -> (i32, i32) {
    %c0_i32 = arith.constant 0 : i32
    %c0_i32_0 = arith.constant 0 : i32
    %c0_i32_1 = arith.constant 0 : i32
    return %c0_i32, %c0_i32_0 : i32, i32
  }
  func.func @transform_12(%arg0: i32) -> (i32, i32) {
    %c0_i32 = arith.constant 0 : i32
    %c0_i32_0 = arith.constant 0 : i32
    %c0_i32_1 = arith.constant 0 : i32
    return %c0_i32, %c0_i32_0 : i32, i32
  }
  func.func @transform_13(%arg0: i32) -> (i32, i32) {
    %c0_i32 = arith.constant 0 : i32
    %c0_i32_0 = arith.constant 0 : i32
    %c0_i32_1 = arith.constant 0 : i32
    return %c0_i32, %c0_i32_0 : i32, i32
  }
  func.func @transform_14(%arg0: i32) -> (i32, i32) {
    %c0_i32 = arith.constant 0 : i32
    %c0_i32_0 = arith.constant 0 : i32
    %c0_i32_1 = arith.constant 0 : i32
    return %c0_i32, %c0_i32_0 : i32, i32
  }
  func.func @transform_15(%arg0: i32) -> (i32, i32) {
    %c0_i32 = arith.constant 0 : i32
    %c0_i32_0 = arith.constant 0 : i32
    %c0_i32_1 = arith.constant 0 : i32
    return %c0_i32, %c0_i32_0 : i32, i32
  }
  func.func @transform_16(%arg0: i32) -> (i32, i32) {
    %c0_i32 = arith.constant 0 : i32
    %c0_i32_0 = arith.constant 0 : i32
    %c0_i32_1 = arith.constant 0 : i32
    return %c0_i32, %c0_i32_0 : i32, i32
  }
  func.func @transform_17(%arg0: i32) -> (i32, i32) {
    %c0_i32 = arith.constant 0 : i32
    %c0_i32_0 = arith.constant 0 : i32
    %c0_i32_1 = arith.constant 0 : i32
    return %c0_i32, %c0_i32_0 : i32, i32
  }
  func.func @transform_18(%arg0: i32) -> (i32, i32) {
    %c0_i32 = arith.constant 0 : i32
    %c0_i32_0 = arith.constant 0 : i32
    %c0_i32_1 = arith.constant 0 : i32
    return %c0_i32, %c0_i32_0 : i32, i32
  }
  func.func @transform_19(%arg0: i32) -> (i32, i32) {
    %c0_i32 = arith.constant 0 : i32
    %c0_i32_0 = arith.constant 0 : i32
    %c0_i32_1 = arith.constant 0 : i32
    return %c0_i32, %c0_i32_0 : i32, i32
  }
  func.func @transform_20(%arg0: i32) -> (i32, i32) {
    %c0_i32 = arith.constant 0 : i32
    %c0_i32_0 = arith.constant 0 : i32
    %c0_i32_1 = arith.constant 0 : i32
    return %c0_i32, %c0_i32_0 : i32, i32
  }
  func.func @transform_21(%arg0: i32) -> (i32, i32) {
    %c0_i32 = arith.constant 0 : i32
    %c0_i32_0 = arith.constant 0 : i32
    %c0_i32_1 = arith.constant 0 : i32
    return %c0_i32, %c0_i32_0 : i32, i32
  }
  func.func @transform_22(%arg0: i32) -> (i32, i32) {
    %c0_i32 = arith.constant 0 : i32
    %c0_i32_0 = arith.constant 0 : i32
    %c0_i32_1 = arith.constant 0 : i32
    return %c0_i32, %c0_i32_0 : i32, i32
  }
  func.func @transform_23(%arg0: i32) -> (i32, i32) {
    %c0_i32 = arith.constant 0 : i32
    %c0_i32_0 = arith.constant 0 : i32
    %c0_i32_1 = arith.constant 0 : i32
    return %c0_i32, %c0_i32_0 : i32, i32
  }
  func.func @transform_24(%arg0: i32) -> (i32, i32) {
    %c0_i32 = arith.constant 0 : i32
    %c0_i32_0 = arith.constant 0 : i32
    %c0_i32_1 = arith.constant 0 : i32
    return %c0_i32, %c0_i32_0 : i32, i32
  }
  func.func @transform_25(%arg0: i32) -> (i32, i32) {
    %c0_i32 = arith.constant 0 : i32
    %c0_i32_0 = arith.constant 0 : i32
    %c0_i32_1 = arith.constant 0 : i32
    return %c0_i32, %c0_i32_0 : i32, i32
  }
  func.func @transform_26(%arg0: i32) -> (i32, i32) {
    %c0_i32 = arith.constant 0 : i32
    %c0_i32_0 = arith.constant 0 : i32
    %c0_i32_1 = arith.constant 0 : i32
    return %c0_i32, %c0_i32_0 : i32, i32
  }
  func.func @transform_27(%arg0: i32) -> (i32, i32) {
    %c0_i32 = arith.constant 0 : i32
    %c0_i32_0 = arith.constant 0 : i32
    %c0_i32_1 = arith.constant 0 : i32
    return %c0_i32, %c0_i32_0 : i32, i32
  }
  func.func @transform_28(%arg0: i32) -> (i32, i32) {
    %c0_i32 = arith.constant 0 : i32
    %c0_i32_0 = arith.constant 0 : i32
    %c0_i32_1 = arith.constant 0 : i32
    return %c0_i32, %c0_i32_0 : i32, i32
  }
  func.func @transform_29(%arg0: i32) -> (i32, i32, i32) {
    %c0_i32 = arith.constant 0 : i32
    %c0_i32_0 = arith.constant 0 : i32
    %c0_i32_1 = arith.constant 0 : i32
    return %arg0, %c0_i32, %c0_i32_0 : i32, i32, i32
  }
}

</mosaic_0001>

<llo_original>
// kernel: tpu_custom_call.1
$region0: #{tpu_custom_call.1}
  #allocation0 [shape = 'u32[]', space=smem, size = 0x4, offset = 0x4, fixed_abs, tag = 'smem constant byte address 0x4 - core index']
  #allocation1 [shape = 'u32[144,128]{1,0:T(1,128)}', space=vmem, size = 0x12000, scoped, tag = 'internal scratch']
  %s0 = inlined_call_operand.smem [shape: u32[30], index: -1, kind: input, shape index: {}]
  %s1 = sld [smem:[%s0]]
  %s2 = scalar_lea.smem %s0, 1
  %s3 = sld [smem:[%s2]]
  %s4 = scalar_lea.smem %s0, 2
  %s5 = sld [smem:[%s4]]
  %s6 = scalar_lea.smem %s0, 3
  %s7 = sld [smem:[%s6]]
  %s8 = scalar_lea.smem %s0, 4
  %s9 = sld [smem:[%s8]]
  %s10 = scalar_lea.smem %s0, 5
  %s11 = sld [smem:[%s10]]
  %s12 = scalar_lea.smem %s0, 6
  %s13 = sld [smem:[%s12]]
  %s14 = scalar_lea.smem %s0, 7
  %s15 = sld [smem:[%s14]]
  %s16 = scalar_lea.smem %s0, 8
  %s17 = sld [smem:[%s16]]
  %s18 = scalar_lea.smem %s0, 9
  %s19 = sld [smem:[%s18]]
  %s20 = scalar_lea.smem %s0, 10
  %s21 = sld [smem:[%s20]]
  %s22 = scalar_lea.smem %s0, 11
  %s23 = sld [smem:[%s22]]
  %s24 = scalar_lea.smem %s0, 12
  %s25 = sld [smem:[%s24]]
  %s26 = scalar_lea.smem %s0, 13
  %s27 = sld [smem:[%s26]]
  %s28 = scalar_lea.smem %s0, 14
  %s29 = sld [smem:[%s28]]
  %s30 = scalar_lea.smem %s0, 15
  %s31 = sld [smem:[%s30]]
  %s32 = scalar_lea.smem %s0, 16
  %s33 = sld [smem:[%s32]]
  %s34 = scalar_lea.smem %s0, 17
  %s35 = sld [smem:[%s34]]
  %s36 = scalar_lea.smem %s0, 18
  %s37 = sld [smem:[%s36]]
  %s38 = scalar_lea.smem %s0, 19
  %s39 = sld [smem:[%s38]]
  %s40 = scalar_lea.smem %s0, 20
  %s41 = sld [smem:[%s40]]
  %s42 = scalar_lea.smem %s0, 21
  %s43 = sld [smem:[%s42]]
  %s44 = scalar_lea.smem %s0, 22
  %s45 = sld [smem:[%s44]]
  %s46 = scalar_lea.smem %s0, 23
  %s47 = sld [smem:[%s46]]
  %s48 = scalar_lea.smem %s0, 24
  %s49 = sld [smem:[%s48]]
  %s50 = scalar_lea.smem %s0, 25
  %s51 = sld [smem:[%s50]]
  %s52 = scalar_lea.smem %s0, 26
  %s53 = sld [smem:[%s52]]
  %s54 = scalar_lea.smem %s0, 27
  %s55 = sld [smem:[%s54]]
  %s56 = scalar_lea.smem %s0, 28
  %s57 = sld [smem:[%s56]]
  %s58 = scalar_lea.smem %s0, 29
  %s59 = sld [smem:[%s58]]
  %s60 = sld [smem:[#allocation0]]
  $region149: #{tpu_custom_call.1} parent=0
    _
  %s62 = ssub.s32 1, %s60
  %s63 = scalar_select 0, %s62, %s60
  $region1: #{tpu_custom_call.1} parent=0
    #allocation2 [shape = 'u8[16384]{0}', space=vmem, size = 0x4000, scoped, tag = 'output window, operand 0']
    #allocation3 [shape = 's32[2]{0}', space=sflag, size = 0x8, scoped, tag = 'scoped memory for tpu_custom_call.1']
    %64 = vsyncpa [#allocation3], 0
    %s65 = scalar_lea.sflag [#allocation3], 1
    %66 = vsyncpa %s65, 0
    loop: start=0, step=1, limit=4
    $region2: #{tpu_custom_call.1} parent=1 // loop_pre_header
      _
    $region3: #{tpu_custom_call.1} parent=1 // loop_header
      %s68 = sphi 0, %s72
      %p69 = scmp.ge.s32.totalorder %s68, 4
      %s78 = sphi 0, %s80
      %s81 = sphi 0, %s78
      %s82 = sphi 0, %s81
      %s98 = sphi 0, %s82
      %s102 = sphi 0, %s102
      %s104 = sphi 0, %s102
      %s105 = sphi 0, %s104
      %s119 = sphi 0, %s105
      %s123 = sphi 0, %s123
      %s125 = sphi 0, %s123
      %s126 = sphi 0, %s125
      %s140 = sphi 0, %s126
      %s144 = sphi 0, %s144
      %s146 = sphi 0, %s144
      %s147 = sphi 0, %s146
      %s161 = sphi 0, %s147
      %s165 = sphi 0, %s165
      %s167 = sphi 0, %s165
      %s168 = sphi 0, %s167
      %s182 = sphi 0, %s168
      %s186 = sphi 0, %s186
      %s188 = sphi 0, %s186
      %s189 = sphi 0, %s188
      %s203 = sphi 0, %s189
      %s207 = sphi 0, %s207
      %s209 = sphi 0, %s207
      %s210 = sphi 0, %s209
      %s224 = sphi 0, %s210
      %s228 = sphi 0, %s228
      %s230 = sphi 0, %s228
      %s231 = sphi 0, %s230
      %s245 = sphi 0, %s231
      %s249 = sphi 0, %s249
      %s251 = sphi 0, %s249
      %s252 = sphi 0, %s251
      %s266 = sphi 0, %s252
      %s270 = sphi 0, %s270
      %s272 = sphi 0, %s270
      %s273 = sphi 0, %s272
      %s287 = sphi 0, %s273
      %s291 = sphi 0, %s291
      %s293 = sphi 0, %s291
      %s294 = sphi 0, %s293
      %s308 = sphi 0, %s294
      %s312 = sphi 0, %s312
      %s314 = sphi 0, %s312
      %s315 = sphi 0, %s314
      %s329 = sphi 0, %s315
      %s333 = sphi 0, %s333
      %s335 = sphi 0, %s333
      %s336 = sphi 0, %s335
      %s350 = sphi 0, %s336
      %s354 = sphi 0, %s354
      %s356 = sphi 0, %s354
      %s357 = sphi 0, %s356
      %s371 = sphi 0, %s357
      %s375 = sphi 0, %s375
      %s377 = sphi 0, %s375
      %s378 = sphi 0, %s377
      %s392 = sphi 0, %s378
      %s396 = sphi 0, %s396
      %s398 = sphi 0, %s396
      %s399 = sphi 0, %s398
      %s413 = sphi 0, %s399
      %s417 = sphi 0, %s417
      %s419 = sphi 0, %s417
      %s420 = sphi 0, %s419
      %s434 = sphi 0, %s420
      %s438 = sphi 0, %s438
      %s440 = sphi 0, %s438
      %s441 = sphi 0, %s440
      %s455 = sphi 0, %s441
      %s459 = sphi 0, %s459
      %s461 = sphi 0, %s459
      %s462 = sphi 0, %s461
      %s476 = sphi 0, %s462
      %s480 = sphi 0, %s480
      %s482 = sphi 0, %s480
      %s483 = sphi 0, %s482
      %s497 = sphi 0, %s483
      %s501 = sphi 0, %s501
      %s503 = sphi 0, %s501
      %s504 = sphi 0, %s503
      %s518 = sphi 0, %s504
      %s522 = sphi 0, %s522
      %s524 = sphi 0, %s522
      %s525 = sphi 0, %s524
      %s539 = sphi 0, %s525
      %s543 = sphi 0, %s543
      %s545 = sphi 0, %s543
      %s546 = sphi 0, %s545
      %s560 = sphi 0, %s546
      %s564 = sphi 0, %s564
      %s566 = sphi 0, %s564
      %s567 = sphi 0, %s566
      %s581 = sphi 0, %s567
      %s585 = sphi 0, %s585
      %s587 = sphi 0, %s585
      %s588 = sphi 0, %s587
      %s602 = sphi 0, %s588
      %s606 = sphi 0, %s606
      %s608 = sphi 0, %s606
      %s609 = sphi 0, %s608
      %s623 = sphi 0, %s609
      %s627 = sphi 0, %s627
      %s629 = sphi 0, %s627
      %s630 = sphi 0, %s629
      %s644 = sphi 0, %s630
      %s648 = sphi 0, %s648
      %s650 = sphi 0, %s648
      %s651 = sphi 0, %s650
      %s665 = sphi 0, %s651
      %s669 = sphi 0, %s669
      %s671 = sphi 0, %s669
      %s672 = sphi 0, %s671
      %s686 = sphi 0, %s672
      %s692 = sphi 0, %s694
      %s695 = sphi 0, %s692
      %s696 = sphi 0, %s695
      %s712 = sphi 0, %s696
    $region4: #{tpu_custom_call.1} parent=1 // loop_header_branch
      %71 = sbr.rel (%p69) target = $region8
    $region5: #{tpu_custom_call.1} parent=1 // loop_body
      %s73 = ssub.s32 %s68, 1
      %s74 = ssub.s32 %s68, 2
      %s75 = sadd.s32 %s68, 1
      %s76 = ssub.s32 %s68, %s75
      %p77 = scmp.eq.s32.totalorder %s76, 0
      %s79 = sadd.s32 %s78, 1
      %s80 = scalar_select %p77, %s78, %s79
      %p83 = pneg %p77
      %p84 = scmp.eq.s32.totalorder %s68, 1
      %p85 = por %p83, %p84
      %p86 = scmp.ne.s32.totalorder %s78, %s81
      %p87 = scmp.eq.s32.totalorder %s68, 0
      %p88 = por %p86, %p87
      %p89 = scmp.ne.s32.totalorder %s78, %s81
      %p90 = scmp.eq.s32.totalorder %s73, 1
      %p91 = por %p89, %p90
      %p92 = scmp.ne.s32.totalorder %s81, %s82
      %p93 = scmp.eq.s32.totalorder %s73, 0
      %p94 = por %p92, %p93
      %p95 = scmp.ne.s32.totalorder %s81, %s82
      %p96 = scmp.eq.s32.totalorder %s74, 1
      %p97 = por %p95, %p96
      %p99 = scmp.ne.s32.totalorder %s82, %s98
      %p100 = scmp.eq.s32.totalorder %s74, 0
      %p101 = por %p99, %p100
      %s103 = sadd.s32 %s102, 1
      %p106 = scmp.eq.s32.totalorder %s68, 1
      %p107 = scmp.ne.s32.totalorder %s102, %s104
      %p108 = scmp.eq.s32.totalorder %s68, 0
      %p109 = por %p107, %p108
      %p110 = scmp.ne.s32.totalorder %s102, %s104
      %p111 = scmp.eq.s32.totalorder %s73, 1
      %p112 = por %p110, %p111
      %p113 = scmp.ne.s32.totalorder %s104, %s105
      %p114 = scmp.eq.s32.totalorder %s73, 0
      %p115 = por %p113, %p114
      %p116 = scmp.ne.s32.totalorder %s104, %s105
      %p117 = scmp.eq.s32.totalorder %s74, 1
      %p118 = por %p116, %p117
      %p120 = scmp.ne.s32.totalorder %s105, %s119
      %p121 = scmp.eq.s32.totalorder %s74, 0
      %p122 = por %p120, %p121
      %s124 = sadd.s32 %s123, 1
      %p127 = scmp.eq.s32.totalorder %s68, 1
      %p128 = scmp.ne.s32.totalorder %s123, %s125
      %p129 = scmp.eq.s32.totalorder %s68, 0
      %p130 = por %p128, %p129
      %p131 = scmp.ne.s32.totalorder %s123, %s125
      %p132 = scmp.eq.s32.totalorder %s73, 1
      %p133 = por %p131, %p132
      %p134 = scmp.ne.s32.totalorder %s125, %s126
      %p135 = scmp.eq.s32.totalorder %s73, 0
      %p136 = por %p134, %p135
      %p137 = scmp.ne.s32.totalorder %s125, %s126
      %p138 = scmp.eq.s32.totalorder %s74, 1
      %p139 = por %p137, %p138
      %p141 = scmp.ne.s32.totalorder %s126, %s140
      %p142 = scmp.eq.s32.totalorder %s74, 0
      %p143 = por %p141, %p142
      %s145 = sadd.s32 %s144, 1
      %p148 = scmp.eq.s32.totalorder %s68, 1
      %p149 = scmp.ne.s32.totalorder %s144, %s146
      %p150 = scmp.eq.s32.totalorder %s68, 0
      %p151 = por %p149, %p150
      %p152 = scmp.ne.s32.totalorder %s144, %s146
      %p153 = scmp.eq.s32.totalorder %s73, 1
      %p154 = por %p152, %p153
      %p155 = scmp.ne.s32.totalorder %s146, %s147
      %p156 = scmp.eq.s32.totalorder %s73, 0
      %p157 = por %p155, %p156
      %p158 = scmp.ne.s32.totalorder %s146, %s147
      %p159 = scmp.eq.s32.totalorder %s74, 1
      %p160 = por %p158, %p159
      %p162 = scmp.ne.s32.totalorder %s147, %s161
      %p163 = scmp.eq.s32.totalorder %s74, 0
      %p164 = por %p162, %p163
      %s166 = sadd.s32 %s165, 1
      %p169 = scmp.eq.s32.totalorder %s68, 1
      %p170 = scmp.ne.s32.totalorder %s165, %s167
      %p171 = scmp.eq.s32.totalorder %s68, 0
      %p172 = por %p170, %p171
      %p173 = scmp.ne.s32.totalorder %s165, %s167
      %p174 = scmp.eq.s32.totalorder %s73, 1
      %p175 = por %p173, %p174
      %p176 = scmp.ne.s32.totalorder %s167, %s168
      %p177 = scmp.eq.s32.totalorder %s73, 0
      %p178 = por %p176, %p177
      %p179 = scmp.ne.s32.totalorder %s167, %s168
      %p180 = scmp.eq.s32.totalorder %s74, 1
      %p181 = por %p179, %p180
      %p183 = scmp.ne.s32.totalorder %s168, %s182
      %p184 = scmp.eq.s32.totalorder %s74, 0
      %p185 = por %p183, %p184
      %s187 = sadd.s32 %s186, 1
      %p190 = scmp.eq.s32.totalorder %s68, 1
      %p191 = scmp.ne.s32.totalorder %s186, %s188
      %p192 = scmp.eq.s32.totalorder %s68, 0
      %p193 = por %p191, %p192
      %p194 = scmp.ne.s32.totalorder %s186, %s188
      %p195 = scmp.eq.s32.totalorder %s73, 1
      %p196 = por %p194, %p195
      %p197 = scmp.ne.s32.totalorder %s188, %s189
      %p198 = scmp.eq.s32.totalorder %s73, 0
      %p199 = por %p197, %p198
      %p200 = scmp.ne.s32.totalorder %s188, %s189
      %p201 = scmp.eq.s32.totalorder %s74, 1
      %p202 = por %p200, %p201
      %p204 = scmp.ne.s32.totalorder %s189, %s203
      %p205 = scmp.eq.s32.totalorder %s74, 0
      %p206 = por %p204, %p205
      %s208 = sadd.s32 %s207, 1
      %p211 = scmp.eq.s32.totalorder %s68, 1
      %p212 = scmp.ne.s32.totalorder %s207, %s209
      %p213 = scmp.eq.s32.totalorder %s68, 0
      %p214 = por %p212, %p213
      %p215 = scmp.ne.s32.totalorder %s207, %s209
      %p216 = scmp.eq.s32.totalorder %s73, 1
      %p217 = por %p215, %p216
      %p218 = scmp.ne.s32.totalorder %s209, %s210
      %p219 = scmp.eq.s32.totalorder %s73, 0
      %p220 = por %p218, %p219
      %p221 = scmp.ne.s32.totalorder %s209, %s210
      %p222 = scmp.eq.s32.totalorder %s74, 1
      %p223 = por %p221, %p222
      %p225 = scmp.ne.s32.totalorder %s210, %s224
      %p226 = scmp.eq.s32.totalorder %s74, 0
      %p227 = por %p225, %p226
      %s229 = sadd.s32 %s228, 1
      %p232 = scmp.eq.s32.totalorder %s68, 1
      %p233 = scmp.ne.s32.totalorder %s228, %s230
      %p234 = scmp.eq.s32.totalorder %s68, 0
      %p235 = por %p233, %p234
      %p236 = scmp.ne.s32.totalorder %s228, %s230
      %p237 = scmp.eq.s32.totalorder %s73, 1
      %p238 = por %p236, %p237
      %p239 = scmp.ne.s32.totalorder %s230, %s231
      %p240 = scmp.eq.s32.totalorder %s73, 0
      %p241 = por %p239, %p240
      %p242 = scmp.ne.s32.totalorder %s230, %s231
      %p243 = scmp.eq.s32.totalorder %s74, 1
      %p244 = por %p242, %p243
      %p246 = scmp.ne.s32.totalorder %s231, %s245
      %p247 = scmp.eq.s32.totalorder %s74, 0
      %p248 = por %p246, %p247
      %s250 = sadd.s32 %s249, 1
      %p253 = scmp.eq.s32.totalorder %s68, 1
      %p254 = scmp.ne.s32.totalorder %s249, %s251
      %p255 = scmp.eq.s32.totalorder %s68, 0
      %p256 = por %p254, %p255
      %p257 = scmp.ne.s32.totalorder %s249, %s251
      %p258 = scmp.eq.s32.totalorder %s73, 1
      %p259 = por %p257, %p258
      %p260 = scmp.ne.s32.totalorder %s251, %s252
      %p261 = scmp.eq.s32.totalorder %s73, 0
      %p262 = por %p260, %p261
      %p263 = scmp.ne.s32.totalorder %s251, %s252
      %p264 = scmp.eq.s32.totalorder %s74, 1
      %p265 = por %p263, %p264
      %p267 = scmp.ne.s32.totalorder %s252, %s266
      %p268 = scmp.eq.s32.totalorder %s74, 0
      %p269 = por %p267, %p268
      %s271 = sadd.s32 %s270, 1
      %p274 = scmp.eq.s32.totalorder %s68, 1
      %p275 = scmp.ne.s32.totalorder %s270, %s272
      %p276 = scmp.eq.s32.totalorder %s68, 0
      %p277 = por %p275, %p276
      %p278 = scmp.ne.s32.totalorder %s270, %s272
      %p279 = scmp.eq.s32.totalorder %s73, 1
      %p280 = por %p278, %p279
      %p281 = scmp.ne.s32.totalorder %s272, %s273
      %p282 = scmp.eq.s32.totalorder %s73, 0
      %p283 = por %p281, %p282
      %p284 = scmp.ne.s32.totalorder %s272, %s273
      %p285 = scmp.eq.s32.totalorder %s74, 1
      %p286 = por %p284, %p285
      %p288 = scmp.ne.s32.totalorder %s273, %s287
      %p289 = scmp.eq.s32.totalorder %s74, 0
      %p290 = por %p288, %p289
      %s292 = sadd.s32 %s291, 1
      %p295 = scmp.eq.s32.totalorder %s68, 1
      %p296 = scmp.ne.s32.totalorder %s291, %s293
      %p297 = scmp.eq.s32.totalorder %s68, 0
      %p298 = por %p296, %p297
      %p299 = scmp.ne.s32.totalorder %s291, %s293
      %p300 = scmp.eq.s32.totalorder %s73, 1
      %p301 = por %p299, %p300
      %p302 = scmp.ne.s32.totalorder %s293, %s294
      %p303 = scmp.eq.s32.totalorder %s73, 0
      %p304 = por %p302, %p303
      %p305 = scmp.ne.s32.totalorder %s293, %s294
      %p306 = scmp.eq.s32.totalorder %s74, 1
      %p307 = por %p305, %p306
      %p309 = scmp.ne.s32.totalorder %s294, %s308
      %p310 = scmp.eq.s32.totalorder %s74, 0
      %p311 = por %p309, %p310
      %s313 = sadd.s32 %s312, 1
      %p316 = scmp.eq.s32.totalorder %s68, 1
      %p317 = scmp.ne.s32.totalorder %s312, %s314
      %p318 = scmp.eq.s32.totalorder %s68, 0
      %p319 = por %p317, %p318
      %p320 = scmp.ne.s32.totalorder %s312, %s314
      %p321 = scmp.eq.s32.totalorder %s73, 1
      %p322 = por %p320, %p321
      %p323 = scmp.ne.s32.totalorder %s314, %s315
      %p324 = scmp.eq.s32.totalorder %s73, 0
      %p325 = por %p323, %p324
      %p326 = scmp.ne.s32.totalorder %s314, %s315
      %p327 = scmp.eq.s32.totalorder %s74, 1
      %p328 = por %p326, %p327
      %p330 = scmp.ne.s32.totalorder %s315, %s329
      %p331 = scmp.eq.s32.totalorder %s74, 0
      %p332 = por %p330, %p331
      %s334 = sadd.s32 %s333, 1
      %p337 = scmp.eq.s32.totalorder %s68, 1
      %p338 = scmp.ne.s32.totalorder %s333, %s335
      %p339 = scmp.eq.s32.totalorder %s68, 0
      %p340 = por %p338, %p339
      %p341 = scmp.ne.s32.totalorder %s333, %s335
      %p342 = scmp.eq.s32.totalorder %s73, 1
      %p343 = por %p341, %p342
      %p344 = scmp.ne.s32.totalorder %s335, %s336
      %p345 = scmp.eq.s32.totalorder %s73, 0
      %p346 = por %p344, %p345
      %p347 = scmp.ne.s32.totalorder %s335, %s336
      %p348 = scmp.eq.s32.totalorder %s74, 1
      %p349 = por %p347, %p348
      %p351 = scmp.ne.s32.totalorder %s336, %s350
      %p352 = scmp.eq.s32.totalorder %s74, 0
      %p353 = por %p351, %p352
      %s355 = sadd.s32 %s354, 1
      %p358 = scmp.eq.s32.totalorder %s68, 1
      %p359 = scmp.ne.s32.totalorder %s354, %s356
      %p360 = scmp.eq.s32.totalorder %s68, 0
      %p361 = por %p359, %p360
      %p362 = scmp.ne.s32.totalorder %s354, %s356
      %p363 = scmp.eq.s32.totalorder %s73, 1
      %p364 = por %p362, %p363
      %p365 = scmp.ne.s32.totalorder %s356, %s357
      %p366 = scmp.eq.s32.totalorder %s73, 0
      %p367 = por %p365, %p366
      %p368 = scmp.ne.s32.totalorder %s356, %s357
      %p369 = scmp.eq.s32.totalorder %s74, 1
      %p370 = por %p368, %p369
      %p372 = scmp.ne.s32.totalorder %s357, %s371
      %p373 = scmp.eq.s32.totalorder %s74, 0
      %p374 = por %p372, %p373
      %s376 = sadd.s32 %s375, 1
      %p379 = scmp.eq.s32.totalorder %s68, 1
      %p380 = scmp.ne.s32.totalorder %s375, %s377
      %p381 = scmp.eq.s32.totalorder %s68, 0
      %p382 = por %p380, %p381
      %p383 = scmp.ne.s32.totalorder %s375, %s377
      %p384 = scmp.eq.s32.totalorder %s73, 1
      %p385 = por %p383, %p384
      %p386 = scmp.ne.s32.totalorder %s377, %s378
      %p387 = scmp.eq.s32.totalorder %s73, 0
      %p388 = por %p386, %p387
      %p389 = scmp.ne.s32.totalorder %s377, %s378
      %p390 = scmp.eq.s32.totalorder %s74, 1
      %p391 = por %p389, %p390
      %p393 = scmp.ne.s32.totalorder %s378, %s392
      %p394 = scmp.eq.s32.totalorder %s74, 0
      %p395 = por %p393, %p394
      %s397 = sadd.s32 %s396, 1
      %p400 = scmp.eq.s32.totalorder %s68, 1
      %p401 = scmp.ne.s32.totalorder %s396, %s398
      %p402 = scmp.eq.s32.totalorder %s68, 0
      %p403 = por %p401, %p402
      %p404 = scmp.ne.s32.totalorder %s396, %s398
      %p405 = scmp.eq.s32.totalorder %s73, 1
      %p406 = por %p404, %p405
      %p407 = scmp.ne.s32.totalorder %s398, %s399
      %p408 = scmp.eq.s32.totalorder %s73, 0
      %p409 = por %p407, %p408
      %p410 = scmp.ne.s32.totalorder %s398, %s399
      %p411 = scmp.eq.s32.totalorder %s74, 1
      %p412 = por %p410, %p411
      %p414 = scmp.ne.s32.totalorder %s399, %s413
      %p415 = scmp.eq.s32.totalorder %s74, 0
      %p416 = por %p414, %p415
      %s418 = sadd.s32 %s417, 1
      %p421 = scmp.eq.s32.totalorder %s68, 1
      %p422 = scmp.ne.s32.totalorder %s417, %s419
      %p423 = scmp.eq.s32.totalorder %s68, 0
      %p424 = por %p422, %p423
      %p425 = scmp.ne.s32.totalorder %s417, %s419
      %p426 = scmp.eq.s32.totalorder %s73, 1
      %p427 = por %p425, %p426
      %p428 = scmp.ne.s32.totalorder %s419, %s420
      %p429 = scmp.eq.s32.totalorder %s73, 0
      %p430 = por %p428, %p429
      %p431 = scmp.ne.s32.totalorder %s419, %s420
      %p432 = scmp.eq.s32.totalorder %s74, 1
      %p433 = por %p431, %p432
      %p435 = scmp.ne.s32.totalorder %s420, %s434
      %p436 = scmp.eq.s32.totalorder %s74, 0
      %p437 = por %p435, %p436
      %s439 = sadd.s32 %s438, 1
      %p442 = scmp.eq.s32.totalorder %s68, 1
      %p443 = scmp.ne.s32.totalorder %s438, %s440
      %p444 = scmp.eq.s32.totalorder %s68, 0
      %p445 = por %p443, %p444
      %p446 = scmp.ne.s32.totalorder %s438, %s440
      %p447 = scmp.eq.s32.totalorder %s73, 1
      %p448 = por %p446, %p447
      %p449 = scmp.ne.s32.totalorder %s440, %s441
      %p450 = scmp.eq.s32.totalorder %s73, 0
      %p451 = por %p449, %p450
      %p452 = scmp.ne.s32.totalorder %s440, %s441
      %p453 = scmp.eq.s32.totalorder %s74, 1
      %p454 = por %p452, %p453
      %p456 = scmp.ne.s32.totalorder %s441, %s455
      %p457 = scmp.eq.s32.totalorder %s74, 0
      %p458 = por %p456, %p457
      %s460 = sadd.s32 %s459, 1
      %p463 = scmp.eq.s32.totalorder %s68, 1
      %p464 = scmp.ne.s32.totalorder %s459, %s461
      %p465 = scmp.eq.s32.totalorder %s68, 0
      %p466 = por %p464, %p465
      %p467 = scmp.ne.s32.totalorder %s459, %s461
      %p468 = scmp.eq.s32.totalorder %s73, 1
      %p469 = por %p467, %p468
      %p470 = scmp.ne.s32.totalorder %s461, %s462
      %p471 = scmp.eq.s32.totalorder %s73, 0
      %p472 = por %p470, %p471
      %p473 = scmp.ne.s32.totalorder %s461, %s462
      %p474 = scmp.eq.s32.totalorder %s74, 1
      %p475 = por %p473, %p474
      %p477 = scmp.ne.s32.totalorder %s462, %s476
      %p478 = scmp.eq.s32.totalorder %s74, 0
      %p479 = por %p477, %p478
      %s481 = sadd.s32 %s480, 1
      %p484 = scmp.eq.s32.totalorder %s68, 1
      %p485 = scmp.ne.s32.totalorder %s480, %s482
      %p486 = scmp.eq.s32.totalorder %s68, 0
      %p487 = por %p485, %p486
      %p488 = scmp.ne.s32.totalorder %s480, %s482
      %p489 = scmp.eq.s32.totalorder %s73, 1
      %p490 = por %p488, %p489
      %p491 = scmp.ne.s32.totalorder %s482, %s483
      %p492 = scmp.eq.s32.totalorder %s73, 0
      %p493 = por %p491, %p492
      %p494 = scmp.ne.s32.totalorder %s482, %s483
      %p495 = scmp.eq.s32.totalorder %s74, 1
      %p496 = por %p494, %p495
      %p498 = scmp.ne.s32.totalorder %s483, %s497
      %p499 = scmp.eq.s32.totalorder %s74, 0
      %p500 = por %p498, %p499
      %s502 = sadd.s32 %s501, 1
      %p505 = scmp.eq.s32.totalorder %s68, 1
      %p506 = scmp.ne.s32.totalorder %s501, %s503
      %p507 = scmp.eq.s32.totalorder %s68, 0
      %p508 = por %p506, %p507
      %p509 = scmp.ne.s32.totalorder %s501, %s503
      %p510 = scmp.eq.s32.totalorder %s73, 1
      %p511 = por %p509, %p510
      %p512 = scmp.ne.s32.totalorder %s503, %s504
      %p513 = scmp.eq.s32.totalorder %s73, 0
      %p514 = por %p512, %p513
      %p515 = scmp.ne.s32.totalorder %s503, %s504
      %p516 = scmp.eq.s32.totalorder %s74, 1
      %p517 = por %p515, %p516
      %p519 = scmp.ne.s32.totalorder %s504, %s518
      %p520 = scmp.eq.s32.totalorder %s74, 0
      %p521 = por %p519, %p520
      %s523 = sadd.s32 %s522, 1
      %p526 = scmp.eq.s32.totalorder %s68, 1
      %p527 = scmp.ne.s32.totalorder %s522, %s524
      %p528 = scmp.eq.s32.totalorder %s68, 0
      %p529 = por %p527, %p528
      %p530 = scmp.ne.s32.totalorder %s522, %s524
      %p531 = scmp.eq.s32.totalorder %s73, 1
      %p532 = por %p530, %p531
      %p533 = scmp.ne.s32.totalorder %s524, %s525
      %p534 = scmp.eq.s32.totalorder %s73, 0
      %p535 = por %p533, %p534
      %p536 = scmp.ne.s32.totalorder %s524, %s525
      %p537 = scmp.eq.s32.totalorder %s74, 1
      %p538 = por %p536, %p537
      %p540 = scmp.ne.s32.totalorder %s525, %s539
      %p541 = scmp.eq.s32.totalorder %s74, 0
      %p542 = por %p540, %p541
      %s544 = sadd.s32 %s543, 1
      %p547 = scmp.eq.s32.totalorder %s68, 1
      %p548 = scmp.ne.s32.totalorder %s543, %s545
      %p549 = scmp.eq.s32.totalorder %s68, 0
      %p550 = por %p548, %p549
      %p551 = scmp.ne.s32.totalorder %s543, %s545
      %p552 = scmp.eq.s32.totalorder %s73, 1
      %p553 = por %p551, %p552
      %p554 = scmp.ne.s32.totalorder %s545, %s546
      %p555 = scmp.eq.s32.totalorder %s73, 0
      %p556 = por %p554, %p555
      %p557 = scmp.ne.s32.totalorder %s545, %s546
      %p558 = scmp.eq.s32.totalorder %s74, 1
      %p559 = por %p557, %p558
      %p561 = scmp.ne.s32.totalorder %s546, %s560
      %p562 = scmp.eq.s32.totalorder %s74, 0
      %p563 = por %p561, %p562
      %s565 = sadd.s32 %s564, 1
      %p568 = scmp.eq.s32.totalorder %s68, 1
      %p569 = scmp.ne.s32.totalorder %s564, %s566
      %p570 = scmp.eq.s32.totalorder %s68, 0
      %p571 = por %p569, %p570
      %p572 = scmp.ne.s32.totalorder %s564, %s566
      %p573 = scmp.eq.s32.totalorder %s73, 1
      %p574 = por %p572, %p573
      %p575 = scmp.ne.s32.totalorder %s566, %s567
      %p576 = scmp.eq.s32.totalorder %s73, 0
      %p577 = por %p575, %p576
      %p578 = scmp.ne.s32.totalorder %s566, %s567
      %p579 = scmp.eq.s32.totalorder %s74, 1
      %p580 = por %p578, %p579
      %p582 = scmp.ne.s32.totalorder %s567, %s581
      %p583 = scmp.eq.s32.totalorder %s74, 0
      %p584 = por %p582, %p583
      %s586 = sadd.s32 %s585, 1
      %p589 = scmp.eq.s32.totalorder %s68, 1
      %p590 = scmp.ne.s32.totalorder %s585, %s587
      %p591 = scmp.eq.s32.totalorder %s68, 0
      %p592 = por %p590, %p591
      %p593 = scmp.ne.s32.totalorder %s585, %s587
      %p594 = scmp.eq.s32.totalorder %s73, 1
      %p595 = por %p593, %p594
      %p596 = scmp.ne.s32.totalorder %s587, %s588
      %p597 = scmp.eq.s32.totalorder %s73, 0
      %p598 = por %p596, %p597
      %p599 = scmp.ne.s32.totalorder %s587, %s588
      %p600 = scmp.eq.s32.totalorder %s74, 1
      %p601 = por %p599, %p600
      %p603 = scmp.ne.s32.totalorder %s588, %s602
      %p604 = scmp.eq.s32.totalorder %s74, 0
      %p605 = por %p603, %p604
      %s607 = sadd.s32 %s606, 1
      %p610 = scmp.eq.s32.totalorder %s68, 1
      %p611 = scmp.ne.s32.totalorder %s606, %s608
      %p612 = scmp.eq.s32.totalorder %s68, 0
      %p613 = por %p611, %p612
      %p614 = scmp.ne.s32.totalorder %s606, %s608
      %p615 = scmp.eq.s32.totalorder %s73, 1
      %p616 = por %p614, %p615
      %p617 = scmp.ne.s32.totalorder %s608, %s609
      %p618 = scmp.eq.s32.totalorder %s73, 0
      %p619 = por %p617, %p618
      %p620 = scmp.ne.s32.totalorder %s608, %s609
      %p621 = scmp.eq.s32.totalorder %s74, 1
      %p622 = por %p620, %p621
      %p624 = scmp.ne.s32.totalorder %s609, %s623
      %p625 = scmp.eq.s32.totalorder %s74, 0
      %p626 = por %p624, %p625
      %s628 = sadd.s32 %s627, 1
      %p631 = scmp.eq.s32.totalorder %s68, 1
      %p632 = scmp.ne.s32.totalorder %s627, %s629
      %p633 = scmp.eq.s32.totalorder %s68, 0
      %p634 = por %p632, %p633
      %p635 = scmp.ne.s32.totalorder %s627, %s629
      %p636 = scmp.eq.s32.totalorder %s73, 1
      %p637 = por %p635, %p636
      %p638 = scmp.ne.s32.totalorder %s629, %s630
      %p639 = scmp.eq.s32.totalorder %s73, 0
      %p640 = por %p638, %p639
      %p641 = scmp.ne.s32.totalorder %s629, %s630
      %p642 = scmp.eq.s32.totalorder %s74, 1
      %p643 = por %p641, %p642
      %p645 = scmp.ne.s32.totalorder %s630, %s644
      %p646 = scmp.eq.s32.totalorder %s74, 0
      %p647 = por %p645, %p646
      %s649 = sadd.s32 %s648, 1
      %p652 = scmp.eq.s32.totalorder %s68, 1
      %p653 = scmp.ne.s32.totalorder %s648, %s650
      %p654 = scmp.eq.s32.totalorder %s68, 0
      %p655 = por %p653, %p654
      %p656 = scmp.ne.s32.totalorder %s648, %s650
      %p657 = scmp.eq.s32.totalorder %s73, 1
      %p658 = por %p656, %p657
      %p659 = scmp.ne.s32.totalorder %s650, %s651
      %p660 = scmp.eq.s32.totalorder %s73, 0
      %p661 = por %p659, %p660
      %p662 = scmp.ne.s32.totalorder %s650, %s651
      %p663 = scmp.eq.s32.totalorder %s74, 1
      %p664 = por %p662, %p663
      %p666 = scmp.ne.s32.totalorder %s651, %s665
      %p667 = scmp.eq.s32.totalorder %s74, 0
      %p668 = por %p666, %p667
      %s670 = sadd.s32 %s669, 1
      %p673 = scmp.eq.s32.totalorder %s68, 1
      %p674 = scmp.ne.s32.totalorder %s669, %s671
      %p675 = scmp.eq.s32.totalorder %s68, 0
      %p676 = por %p674, %p675
      %p677 = scmp.ne.s32.totalorder %s669, %s671
      %p678 = scmp.eq.s32.totalorder %s73, 1
      %p679 = por %p677, %p678
      %p680 = scmp.ne.s32.totalorder %s671, %s672
      %p681 = scmp.eq.s32.totalorder %s73, 0
      %p682 = por %p680, %p681
      %p683 = scmp.ne.s32.totalorder %s671, %s672
      %p684 = scmp.eq.s32.totalorder %s74, 1
      %p685 = por %p683, %p684
      %p687 = scmp.ne.s32.totalorder %s672, %s686
      %p688 = scmp.eq.s32.totalorder %s74, 0
      %p689 = por %p687, %p688
      %s690 = ssub.s32 %s68, %s75
      %p691 = scmp.eq.s32.totalorder %s690, 0
      %s693 = sadd.s32 %s692, 1
      %s694 = scalar_select %p691, %s692, %s693
      %p697 = pneg %p691
      %p698 = scmp.eq.s32.totalorder %s68, 1
      %p699 = por %p697, %p698
      %p700 = scmp.ne.s32.totalorder %s692, %s695
      %p701 = scmp.eq.s32.totalorder %s68, 0
      %p702 = por %p700, %p701
      %p703 = scmp.ne.s32.totalorder %s692, %s695
      %p704 = scmp.eq.s32.totalorder %s73, 1
      %p705 = por %p703, %p704
      %p706 = scmp.ne.s32.totalorder %s695, %s696
      %p707 = scmp.eq.s32.totalorder %s73, 0
      %p708 = por %p706, %p707
      %p709 = scmp.ne.s32.totalorder %s695, %s696
      %p710 = scmp.eq.s32.totalorder %s74, 1
      %p711 = por %p709, %p710
      %p713 = scmp.ne.s32.totalorder %s696, %s712
      %p714 = scmp.eq.s32.totalorder %s74, 0
      %p715 = por %p713, %p714
      %p716 = scmp.le.s32.totalorder 1, %s68
      %p717 = scmp.lt.s32.totalorder %s68, 3
      %p718 = pnand %p716, %p717
      %p719 = pneg %p718
      // Predicated region
      $region9: #{tpu_custom_call.1} parent=5 // pred_check
        _
      $region10: #{tpu_custom_call.1} parent=5 // pred_check_branch
        %721 = sbr.rel (%p718) target = $region12
      $region11: #{tpu_custom_call.1} parent=5 // pred_region
        %s722 = ssub.s32 %s68, 1
        // Predicated region
        $region13: #{tpu_custom_call.1} parent=11 // pred_check
          %p723 = pneg %p115
        $region14: #{tpu_custom_call.1} parent=11 // pred_check_branch
          %725 = sbr.rel (%p723) target = $region16
        $region15: #{tpu_custom_call.1} parent=11 // pred_region
          _
        $region16: #{tpu_custom_call.1} parent=11 // pred_fallthru
          _
        // Predicated region
        $region17: #{tpu_custom_call.1} parent=11 // pred_check
          %p726 = pneg %p136
        $region18: #{tpu_custom_call.1} parent=11 // pred_check_branch
          %728 = sbr.rel (%p726) target = $region20
        $region19: #{tpu_custom_call.1} parent=11 // pred_region
          _
        $region20: #{tpu_custom_call.1} parent=11 // pred_fallthru
          _
        // Predicated region
        $region21: #{tpu_custom_call.1} parent=11 // pred_check
          %p729 = pneg %p157
        $region22: #{tpu_custom_call.1} parent=11 // pred_check_branch
          %731 = sbr.rel (%p729) target = $region24
        $region23: #{tpu_custom_call.1} parent=11 // pred_region
          _
        $region24: #{tpu_custom_call.1} parent=11 // pred_fallthru
          _
        // Predicated region
        $region25: #{tpu_custom_call.1} parent=11 // pred_check
          %p732 = pneg %p178
        $region26: #{tpu_custom_call.1} parent=11 // pred_check_branch
          %734 = sbr.rel (%p732) target = $region28
        $region27: #{tpu_custom_call.1} parent=11 // pred_region
          _
        $region28: #{tpu_custom_call.1} parent=11 // pred_fallthru
          _
        // Predicated region
        $region29: #{tpu_custom_call.1} parent=11 // pred_check
          %p735 = pneg %p199
        $region30: #{tpu_custom_call.1} parent=11 // pred_check_branch
          %737 = sbr.rel (%p735) target = $region32
        $region31: #{tpu_custom_call.1} parent=11 // pred_region
          _
        $region32: #{tpu_custom_call.1} parent=11 // pred_fallthru
          _
        // Predicated region
        $region33: #{tpu_custom_call.1} parent=11 // pred_check
          %p738 = pneg %p220
        $region34: #{tpu_custom_call.1} parent=11 // pred_check_branch
          %740 = sbr.rel (%p738) target = $region36
        $region35: #{tpu_custom_call.1} parent=11 // pred_region
          _
        $region36: #{tpu_custom_call.1} parent=11 // pred_fallthru
          _
        // Predicated region
        $region37: #{tpu_custom_call.1} parent=11 // pred_check
          %p741 = pneg %p241
        $region38: #{tpu_custom_call.1} parent=11 // pred_check_branch
          %743 = sbr.rel (%p741) target = $region40
        $region39: #{tpu_custom_call.1} parent=11 // pred_region
          _
        $region40: #{tpu_custom_call.1} parent=11 // pred_fallthru
          _
        // Predicated region
        $region41: #{tpu_custom_call.1} parent=11 // pred_check
          %p744 = pneg %p262
        $region42: #{tpu_custom_call.1} parent=11 // pred_check_branch
          %746 = sbr.rel (%p744) target = $region44
        $region43: #{tpu_custom_call.1} parent=11 // pred_region
          _
        $region44: #{tpu_custom_call.1} parent=11 // pred_fallthru
          _
        // Predicated region
        $region45: #{tpu_custom_call.1} parent=11 // pred_check
          %p747 = pneg %p283
        $region46: #{tpu_custom_call.1} parent=11 // pred_check_branch
          %749 = sbr.rel (%p747) target = $region48
        $region47: #{tpu_custom_call.1} parent=11 // pred_region
          _
        $region48: #{tpu_custom_call.1} parent=11 // pred_fallthru
          _
        // Predicated region
        $region49: #{tpu_custom_call.1} parent=11 // pred_check
          %p750 = pneg %p304
        $region50: #{tpu_custom_call.1} parent=11 // pred_check_branch
          %752 = sbr.rel (%p750) target = $region52
        $region51: #{tpu_custom_call.1} parent=11 // pred_region
          _
        $region52: #{tpu_custom_call.1} parent=11 // pred_fallthru
          _
        // Predicated region
        $region53: #{tpu_custom_call.1} parent=11 // pred_check
          %p753 = pneg %p325
        $region54: #{tpu_custom_call.1} parent=11 // pred_check_branch
          %755 = sbr.rel (%p753) target = $region56
        $region55: #{tpu_custom_call.1} parent=11 // pred_region
          _
        $region56: #{tpu_custom_call.1} parent=11 // pred_fallthru
          _
        // Predicated region
        $region57: #{tpu_custom_call.1} parent=11 // pred_check
          %p756 = pneg %p346
        $region58: #{tpu_custom_call.1} parent=11 // pred_check_branch
          %758 = sbr.rel (%p756) target = $region60
        $region59: #{tpu_custom_call.1} parent=11 // pred_region
          _
        $region60: #{tpu_custom_call.1} parent=11 // pred_fallthru
          _
        // Predicated region
        $region61: #{tpu_custom_call.1} parent=11 // pred_check
          %p759 = pneg %p367
        $region62: #{tpu_custom_call.1} parent=11 // pred_check_branch
          %761 = sbr.rel (%p759) target = $region64
        $region63: #{tpu_custom_call.1} parent=11 // pred_region
          _
        $region64: #{tpu_custom_call.1} parent=11 // pred_fallthru
          _
        // Predicated region
        $region65: #{tpu_custom_call.1} parent=11 // pred_check
          %p762 = pneg %p388
        $region66: #{tpu_custom_call.1} parent=11 // pred_check_branch
          %764 = sbr.rel (%p762) target = $region68
        $region67: #{tpu_custom_call.1} parent=11 // pred_region
          _
        $region68: #{tpu_custom_call.1} parent=11 // pred_fallthru
          _
        // Predicated region
        $region69: #{tpu_custom_call.1} parent=11 // pred_check
          %p765 = pneg %p409
        $region70: #{tpu_custom_call.1} parent=11 // pred_check_branch
          %767 = sbr.rel (%p765) target = $region72
        $region71: #{tpu_custom_call.1} parent=11 // pred_region
          _
        $region72: #{tpu_custom_call.1} parent=11 // pred_fallthru
          _
        // Predicated region
        $region73: #{tpu_custom_call.1} parent=11 // pred_check
          %p768 = pneg %p430
        $region74: #{tpu_custom_call.1} parent=11 // pred_check_branch
          %770 = sbr.rel (%p768) target = $region76
        $region75: #{tpu_custom_call.1} parent=11 // pred_region
          _
        $region76: #{tpu_custom_call.1} parent=11 // pred_fallthru
          _
        // Predicated region
        $region77: #{tpu_custom_call.1} parent=11 // pred_check
          %p771 = pneg %p451
        $region78: #{tpu_custom_call.1} parent=11 // pred_check_branch
          %773 = sbr.rel (%p771) target = $region80
        $region79: #{tpu_custom_call.1} parent=11 // pred_region
          _
        $region80: #{tpu_custom_call.1} parent=11 // pred_fallthru
          _
        // Predicated region
        $region81: #{tpu_custom_call.1} parent=11 // pred_check
          %p774 = pneg %p472
        $region82: #{tpu_custom_call.1} parent=11 // pred_check_branch
          %776 = sbr.rel (%p774) target = $region84
        $region83: #{tpu_custom_call.1} parent=11 // pred_region
          _
        $region84: #{tpu_custom_call.1} parent=11 // pred_fallthru
          _
        // Predicated region
        $region85: #{tpu_custom_call.1} parent=11 // pred_check
          %p777 = pneg %p493
        $region86: #{tpu_custom_call.1} parent=11 // pred_check_branch
          %779 = sbr.rel (%p777) target = $region88
        $region87: #{tpu_custom_call.1} parent=11 // pred_region
          _
        $region88: #{tpu_custom_call.1} parent=11 // pred_fallthru
          _
        // Predicated region
        $region89: #{tpu_custom_call.1} parent=11 // pred_check
          %p780 = pneg %p514
        $region90: #{tpu_custom_call.1} parent=11 // pred_check_branch
          %782 = sbr.rel (%p780) target = $region92
        $region91: #{tpu_custom_call.1} parent=11 // pred_region
          _
        $region92: #{tpu_custom_call.1} parent=11 // pred_fallthru
          _
        // Predicated region
        $region93: #{tpu_custom_call.1} parent=11 // pred_check
          %p783 = pneg %p535
        $region94: #{tpu_custom_call.1} parent=11 // pred_check_branch
          %785 = sbr.rel (%p783) target = $region96
        $region95: #{tpu_custom_call.1} parent=11 // pred_region
          _
        $region96: #{tpu_custom_call.1} parent=11 // pred_fallthru
          _
        // Predicated region
        $region97: #{tpu_custom_call.1} parent=11 // pred_check
          %p786 = pneg %p556
        $region98: #{tpu_custom_call.1} parent=11 // pred_check_branch
          %788 = sbr.rel (%p786) target = $region100
        $region99: #{tpu_custom_call.1} parent=11 // pred_region
          _
        $region100: #{tpu_custom_call.1} parent=11 // pred_fallthru
          _
        // Predicated region
        $region101: #{tpu_custom_call.1} parent=11 // pred_check
          %p789 = pneg %p577
        $region102: #{tpu_custom_call.1} parent=11 // pred_check_branch
          %791 = sbr.rel (%p789) target = $region104
        $region103: #{tpu_custom_call.1} parent=11 // pred_region
          _
        $region104: #{tpu_custom_call.1} parent=11 // pred_fallthru
          _
        // Predicated region
        $region105: #{tpu_custom_call.1} parent=11 // pred_check
          %p792 = pneg %p598
        $region106: #{tpu_custom_call.1} parent=11 // pred_check_branch
          %794 = sbr.rel (%p792) target = $region108
        $region107: #{tpu_custom_call.1} parent=11 // pred_region
          _
        $region108: #{tpu_custom_call.1} parent=11 // pred_fallthru
          _
        // Predicated region
        $region109: #{tpu_custom_call.1} parent=11 // pred_check
          %p795 = pneg %p619
        $region110: #{tpu_custom_call.1} parent=11 // pred_check_branch
          %797 = sbr.rel (%p795) target = $region112
        $region111: #{tpu_custom_call.1} parent=11 // pred_region
          _
        $region112: #{tpu_custom_call.1} parent=11 // pred_fallthru
          _
        // Predicated region
        $region113: #{tpu_custom_call.1} parent=11 // pred_check
          %p798 = pneg %p640
        $region114: #{tpu_custom_call.1} parent=11 // pred_check_branch
          %800 = sbr.rel (%p798) target = $region116
        $region115: #{tpu_custom_call.1} parent=11 // pred_region
          _
        $region116: #{tpu_custom_call.1} parent=11 // pred_fallthru
          _
        // Predicated region
        $region117: #{tpu_custom_call.1} parent=11 // pred_check
          %p801 = pneg %p661
        $region118: #{tpu_custom_call.1} parent=11 // pred_check_branch
          %803 = sbr.rel (%p801) target = $region120
        $region119: #{tpu_custom_call.1} parent=11 // pred_region
          _
        $region120: #{tpu_custom_call.1} parent=11 // pred_fallthru
          _
        // Predicated region
        $region121: #{tpu_custom_call.1} parent=11 // pred_check
          %p804 = pneg %p682
        $region122: #{tpu_custom_call.1} parent=11 // pred_check_branch
          %806 = sbr.rel (%p804) target = $region124
        $region123: #{tpu_custom_call.1} parent=11 // pred_region
          _
        $region124: #{tpu_custom_call.1} parent=11 // pred_fallthru
          _
      $region12: #{tpu_custom_call.1} parent=5 // pred_fallthru
        _
      %p807 = scmp.lt.s32.totalorder %s68, 2
      // Predicated region
      $region125: #{tpu_custom_call.1} parent=5 // pred_check
        %p808 = pneg %p807
      $region126: #{tpu_custom_call.1} parent=5 // pred_check_branch
        %810 = sbr.rel (%p808) target = $region128
      $region127: #{tpu_custom_call.1} parent=5 // pred_region
        // Predicated region
        $region129: #{tpu_custom_call.1} parent=127 // pred_check
          %p811 = pneg %p88
        $region130: #{tpu_custom_call.1} parent=127 // pred_check_branch
          %813 = sbr.rel (%p811) target = $region132
        $region131: #{tpu_custom_call.1} parent=127 // pred_region
          %p814 = scmp.lt.s32.totalorder %s68, 1
          %s815 = scalar_select %p814, %s68, 1
          %s816 = smul.addr %s815, 2
          %s817 = smul.addr %s816, 4
          %s818 = scalar_lea.vmem %s1, %s817
        $region132: #{tpu_custom_call.1} parent=127 // pred_fallthru
          _
      $region128: #{tpu_custom_call.1} parent=5 // pred_fallthru
        _
      %p819 = scmp.le.s32.totalorder 1, %s68
      %p820 = scmp.lt.s32.totalorder %s68, 3
      %p821 = pnand %p819, %p820
      %p822 = pneg %p821
      // Predicated region
      $region133: #{tpu_custom_call.1} parent=5 // pred_check
        _
      $region134: #{tpu_custom_call.1} parent=5 // pred_check_branch
        %824 = sbr.rel (%p821) target = $region136
      $region135: #{tpu_custom_call.1} parent=5 // pred_region
        %s825 = ssub.s32 %s68, 1
        %p826 = scmp.lt.s32.totalorder %s73, 1
        %s827 = scalar_select %p826, %s73, 1
        %s828 = smul.addr %s827, 2
        %s829 = smul.addr %s828, 4
        %s830 = scalar_lea.vmem %s1, %s829
        %p831 = pneg %p94
        %p832 = pneg %p91
        %p833 = pneg %p115
        %p834 = pneg %p112
        %p835 = pneg %p136
        %p836 = pneg %p133
        %p837 = pneg %p157
        %p838 = pneg %p154
        %p839 = pneg %p178
        %p840 = pneg %p175
        %p841 = pneg %p199
        %p842 = pneg %p196
        %p843 = pneg %p220
        %p844 = pneg %p217
        %p845 = pneg %p241
        %p846 = pneg %p238
        %p847 = pneg %p262
        %p848 = pneg %p259
        %p849 = pneg %p283
        %p850 = pneg %p280
        %p851 = pneg %p304
        %p852 = pneg %p301
        %p853 = pneg %p325
        %p854 = pneg %p322
        %p855 = pneg %p346
        %p856 = pneg %p343
        %p857 = pneg %p367
        %p858 = pneg %p364
        %p859 = pneg %p388
        %p860 = pneg %p385
        %p861 = pneg %p409
        %p862 = pneg %p406
        %p863 = pneg %p430
        %p864 = pneg %p427
        %p865 = pneg %p451
        %p866 = pneg %p448
        %p867 = pneg %p472
        %p868 = pneg %p469
        %p869 = pneg %p493
        %p870 = pneg %p490
        %p871 = pneg %p514
        %p872 = pneg %p511
        %p873 = pneg %p535
        %p874 = pneg %p532
        %p875 = pneg %p556
        %p876 = pneg %p553
        %p877 = pneg %p577
        %p878 = pneg %p574
        %p879 = pneg %p598
        %p880 = pneg %p595
        %p881 = pneg %p619
        %p882 = pneg %p616
        %p883 = pneg %p640
        %p884 = pneg %p637
        %p885 = pneg %p661
        %p886 = pneg %p658
        %p887 = pneg %p682
        %p888 = pneg %p679
        %p889 = pneg %p708
        %p890 = pneg %p705
        %s891 = sand.u32 %s695, 1
        %s892 = scalar_lea.sflag [#allocation3], %s891
        %s893 = sand.u32 %s695, 1
        %s894 = smul.addr %s893, 16
        %s895 = scalar_lea.vmem [#allocation2], %s894
        %p896 = scmp.lt.s32.totalorder %s73, 1
        %s897 = scalar_select %p896, %s73, 1
        %s898 = smul.addr %s897, 2
        %s899 = smul.addr %s898, 4
        %s900 = scalar_lea.vmem %s1, %s899
        %v901 = vlaneseq
        %v902 = vand.u32 %v901, 127
        %v903 = vadd.s32 %v902, 128
        %v904 = vadd.s32 %v902, 256
        %v905 = vadd.s32 %v902, 15
        %v906 = vadd.s32 %v903, 15
        %v907 = vadd.s32 %v904, 15
        %v908 = vand.u32 %v905, 15
        %v909 = vand.u32 %v906, 15
        %v910 = vand.u32 %v907, 15
        %vm911 = vcmp.ne.s32.totalorder %v908, 15
        %vm912 = vcmp.ne.s32.totalorder %v909, 15
        %vm913 = vcmp.ne.s32.totalorder %v910, 15
        %v914 = vsel %vm911, 1, 0
        %v915 = vsel %vm912, 1, 0
        %v916 = vsel %vm913, 1, 0
        %v917 = vcvt.s32.f32 %v914
        %v918 = vcvt.s32.f32 %v915
        %v919 = vcvt.s32.f32 %v916
        %vm920 = vcmp.ne.s32.totalorder %v908, 0
        %vm921 = vcmp.ne.s32.totalorder %v909, 0
        %vm922 = vcmp.ne.s32.totalorder %v910, 0
        %v923 = vsel %vm920, 1, 0
        %v924 = vsel %vm921, 1, 0
        %v925 = vsel %vm922, 1, 0
        %v926 = vcvt.s32.f32 %v923
        %v927 = vcvt.s32.f32 %v924
        %v928 = vcvt.s32.f32 %v925
        %v929 = vld [vmem:[%s900] sm:$0xff]
        %v930 = vld [vmem:[%s3] sm:$0xf]
        %v931 = vld [vmem:[%s5] sm:$0xf]
        %v933 = vcombine.high %v929, %v929
        %934 = vrot.lane.b32.xlu0 %v929, 17
        %v935 = vpop.permute.xlu0 %934
        %936 = vrot.lane.b32.xlu0 %v933, 17
        %v937 = vpop.permute.xlu0 %936
        %vm938 = vcmask 138240
        %v939 = vsel %vm938, %v935, %v937
        %v943 = vsel %vm938, 0.0, %v935
        %v944 = vsel %vm938, %v937, 0.0
        %v945 = vmul.f32 %v943, %v917
        %v946 = vmul.f32 %v939, %v918
        %v947 = vmul.f32 %v944, %v919
        %v948 = vmul.f32 %v943, %v926
        %v949 = vmul.f32 %v939, %v927
        %v950 = vmul.f32 %v944, %v928
        %952 = vset.pattern.permute.xlu0 0
        %953 = vperm.xlu0 %952, %v930
        %v954 = vpop.permute.xlu0 %953
        %v956 = vmul.f32 %v954, %v945
        %v957 = vmul.f32 %v954, %v946
        %958 = vset.pattern.permute.xlu0 1
        %959 = vperm.xlu0 %958, %v930
        %v960 = vpop.permute.xlu0 %959
        %v962 = vmul.f32 %v960, %v943
        %v963 = vmul.f32 %v960, %v939
        %v964 = vmul.f32 %v960, %v944
        %968 = vrot.lane.b32.xlu0 %v962, 127
        %v969 = vpop.permute.xlu0 %968
        %970 = vrot.lane.b32.xlu0 %v963, 127
        %v971 = vpop.permute.xlu0 %970
        %972 = vrot.lane.b32.xlu0 %v964, 127
        %v973 = vpop.permute.xlu0 %972
        %vm974 = vcmask 1039360
        %v975 = vsel %vm974, %v969, %v971
        %v976 = vsel %vm974, %v971, %v973
        %v979 = vadd.f32 %v956, %v975
        %v980 = vadd.f32 %v957, %v976
        %981 = vset.pattern.permute.xlu0 2
        %982 = vperm.xlu0 %981, %v930
        %v983 = vpop.permute.xlu0 %982
        %v985 = vmul.f32 %v983, %v948
        %v986 = vmul.f32 %v983, %v949
        %v987 = vmul.f32 %v983, %v950
        %991 = vrot.lane.b32.xlu0 %v985, 126
        %v992 = vpop.permute.xlu0 %991
        %993 = vrot.lane.b32.xlu0 %v986, 126
        %v994 = vpop.permute.xlu0 %993
        %995 = vrot.lane.b32.xlu0 %v987, 126
        %v996 = vpop.permute.xlu0 %995
        %vm997 = vcmask 1031168
        %v998 = vsel %vm997, %v992, %v994
        %v999 = vsel %vm997, %v994, %v996
        %v1002 = vadd.f32 %v979, %v998
        %v1003 = vadd.f32 %v980, %v999
        %1004 = vset.pattern.permute.xlu0 3
        %1005 = vperm.xlu0 %1004, %v930
        %v1006 = vpop.permute.xlu0 %1005
        %v1008 = vmul.f32 %v1006, %v945
        %v1009 = vmul.f32 %v1006, %v946
        %v1010 = vmul.f32 %v1006, %v947
        %1014 = vrot.lane.b32.xlu0 %v1008, 112
        %v1015 = vpop.permute.xlu0 %1014
        %1016 = vrot.lane.b32.xlu0 %v1009, 112
        %v1017 = vpop.permute.xlu0 %1016
        %1018 = vrot.lane.b32.xlu0 %v1010, 112
        %v1019 = vpop.permute.xlu0 %1018
        %vm1020 = vcmask 916480
        %v1021 = vsel %vm1020, %v1015, %v1017
        %v1022 = vsel %vm1020, %v1017, %v1019
        %v1025 = vadd.f32 %v1002, %v1021
        %v1026 = vadd.f32 %v1003, %v1022
        %1027 = vset.pattern.permute.xlu0 4
        %1028 = vperm.xlu0 %1027, %v930
        %v1029 = vpop.permute.xlu0 %1028
        %v1031 = vmul.f32 %v1029, %v943
        %v1032 = vmul.f32 %v1029, %v939
        %v1033 = vmul.f32 %v1029, %v944
        %1037 = vrot.lane.b32.xlu0 %v1031, 111
        %v1038 = vpop.permute.xlu0 %1037
        %1039 = vrot.lane.b32.xlu0 %v1032, 111
        %v1040 = vpop.permute.xlu0 %1039
        %1041 = vrot.lane.b32.xlu0 %v1033, 111
        %v1042 = vpop.permute.xlu0 %1041
        %vm1043 = vcmask 908288
        %v1044 = vsel %vm1043, %v1038, %v1040
        %v1045 = vsel %vm1043, %v1040, %v1042
        %v1048 = vadd.f32 %v1025, %v1044
        %v1049 = vadd.f32 %v1026, %v1045
        %1050 = vset.pattern.permute.xlu0 5
        %1051 = vperm.xlu0 %1050, %v930
        %v1052 = vpop.permute.xlu0 %1051
        %v1054 = vmul.f32 %v1052, %v948
        %v1055 = vmul.f32 %v1052, %v949
        %v1056 = vmul.f32 %v1052, %v950
        %1060 = vrot.lane.b32.xlu0 %v1054, 110
        %v1061 = vpop.permute.xlu0 %1060
        %1062 = vrot.lane.b32.xlu0 %v1055, 110
        %v1063 = vpop.permute.xlu0 %1062
        %1064 = vrot.lane.b32.xlu0 %v1056, 110
        %v1065 = vpop.permute.xlu0 %1064
        %vm1066 = vcmask 900096
        %v1067 = vsel %vm1066, %v1061, %v1063
        %v1068 = vsel %vm1066, %v1063, %v1065
        %v1071 = vadd.f32 %v1048, %v1067
        %v1072 = vadd.f32 %v1049, %v1068
        %1073 = vset.pattern.permute.xlu0 6
        %1074 = vperm.xlu0 %1073, %v930
        %v1075 = vpop.permute.xlu0 %1074
        %v1077 = vmul.f32 %v1075, %v945
        %v1078 = vmul.f32 %v1075, %v946
        %v1079 = vmul.f32 %v1075, %v947
        %1083 = vrot.lane.b32.xlu0 %v1077, 96
        %v1084 = vpop.permute.xlu0 %1083
        %1085 = vrot.lane.b32.xlu0 %v1078, 96
        %v1086 = vpop.permute.xlu0 %1085
        %1087 = vrot.lane.b32.xlu0 %v1079, 96
        %v1088 = vpop.permute.xlu0 %1087
        %vm1089 = vcmask 785408
        %v1090 = vsel %vm1089, %v1084, %v1086
        %v1091 = vsel %vm1089, %v1086, %v1088
        %v1094 = vadd.f32 %v1071, %v1090
        %v1095 = vadd.f32 %v1072, %v1091
        %1096 = vset.pattern.permute.xlu0 7
        %1097 = vperm.xlu0 %1096, %v930
        %v1098 = vpop.permute.xlu0 %1097
        %v1100 = vmul.f32 %v1098, %v943
        %v1101 = vmul.f32 %v1098, %v939
        %v1102 = vmul.f32 %v1098, %v944
        %1106 = vrot.lane.b32.xlu0 %v1100, 95
        %v1107 = vpop.permute.xlu0 %1106
        %1108 = vrot.lane.b32.xlu0 %v1101, 95
        %v1109 = vpop.permute.xlu0 %1108
        %1110 = vrot.lane.b32.xlu0 %v1102, 95
        %v1111 = vpop.permute.xlu0 %1110
        %vm1112 = vcmask 777216
        %v1113 = vsel %vm1112, %v1107, %v1109
        %v1114 = vsel %vm1112, %v1109, %v1111
        %v1117 = vadd.f32 %v1094, %v1113
        %v1118 = vadd.f32 %v1095, %v1114
        %1119 = vset.pattern.permute.xlu0 8
        %1120 = vperm.xlu0 %1119, %v930
        %v1121 = vpop.permute.xlu0 %1120
        %v1123 = vmul.f32 %v1121, %v948
        %v1124 = vmul.f32 %v1121, %v949
        %v1125 = vmul.f32 %v1121, %v950
        %1129 = vrot.lane.b32.xlu0 %v1123, 94
        %v1130 = vpop.permute.xlu0 %1129
        %1131 = vrot.lane.b32.xlu0 %v1124, 94
        %v1132 = vpop.permute.xlu0 %1131
        %1133 = vrot.lane.b32.xlu0 %v1125, 94
        %v1134 = vpop.permute.xlu0 %1133
        %vm1135 = vcmask 769024
        %v1136 = vsel %vm1135, %v1130, %v1132
        %v1137 = vsel %vm1135, %v1132, %v1134
        %v1140 = vadd.f32 %v1117, %v1136
        %v1141 = vadd.f32 %v1118, %v1137
        %1143 = vset.pattern.permute.xlu0 0
        %1144 = vperm.xlu0 %1143, %v931
        %v1145 = vpop.permute.xlu0 %1144
        %v1147 = vadd.f32 %v1140, %v1145
        %v1148 = vadd.f32 %v1141, %v1145
        %v1149 = vmin.f32 %v1147, 20.0
        %v1150 = vmin.f32 %v1148, 20.0
        %v1151 = vmul.f32 %v1149, 1.442695
        %v1152 = vpow.pop %v1151
        %v1153 = vmul.f32 %v1150, 1.442695
        %v1154 = vpow.pop %v1153
        %v1155 = vadd.f32 %v1152, 1.0
        %v1156 = vadd.f32 %v1154, 1.0
        %v1157 = vmul.f32 %v1155, %v1155
        %v1158 = vmul.f32 %v1156, %v1156
        %v1159 = vsub.f32 %v1157, 1.0
        %v1160 = vsub.f32 %v1158, 1.0
        %v1161 = vmul.f32 %v1147, %v1159
        %v1162 = vmul.f32 %v1148, %v1160
        %v1163 = vadd.f32 %v1157, 1.0
        %v1164 = vadd.f32 %v1158, 1.0
        %v1165 = vrcp.pop %v1163
        %v1166 = vmul.f32 %v1161, %v1165
        %v1167 = vrcp.pop %v1164
        %v1168 = vmul.f32 %v1162, %v1167
        %v1169 = vld [vmem:[%s7] sm:$0xff]
        %v1170 = vld [vmem:[%s9] sm:$0xff]
        %1172 = vset.pattern.permute.xlu0 0
        %1173 = vperm.xlu0 %1172, %v1169
        %v1174 = vpop.permute.xlu0 %1173
        %v1176 = vlaneseq
        %v1177 = vshrl.u32 %v1176, 7
        %v1178 = vsub.s32 0, %v1177
        %v1179 = vrot.slane %v1166, %v1178
        %v1180 = vlaneseq
        %v1181 = vshrl.u32 %v1180, 7
        %v1182 = vsub.s32 0, %v1181
        %v1183 = vrot.slane %v1168, %v1182
        %v1184 = vmul.f32 %v1174, %v1179
        %v1185 = vmul.f32 %v1174, %v1183
        %1186 = vset.pattern.permute.xlu0 1
        %1187 = vperm.xlu0 %1186, %v1169
        %v1188 = vpop.permute.xlu0 %1187
        %v1190 = vlaneseq
        %v1191 = vshrl.u32 %v1190, 7
        %v1192 = vsub.s32 1, %v1191
        %v1193 = vrot.slane %v1166, %v1192
        %v1194 = vlaneseq
        %v1195 = vshrl.u32 %v1194, 7
        %v1196 = vsub.s32 1, %v1195
        %v1197 = vrot.slane %v1168, %v1196
        %v1198 = vmul.f32 %v1188, %v1193
        %v1199 = vmul.f32 %v1188, %v1197
        %v1200 = vadd.f32 %v1184, %v1198
        %v1201 = vadd.f32 %v1185, %v1199
        %1202 = vset.pattern.permute.xlu0 2
        %1203 = vperm.xlu0 %1202, %v1169
        %v1204 = vpop.permute.xlu0 %1203
        %v1206 = vlaneseq
        %v1207 = vshrl.u32 %v1206, 7
        %v1208 = vsub.s32 2, %v1207
        %v1209 = vrot.slane %v1166, %v1208
        %v1210 = vlaneseq
        %v1211 = vshrl.u32 %v1210, 7
        %v1212 = vsub.s32 2, %v1211
        %v1213 = vrot.slane %v1168, %v1212
        %v1214 = vmul.f32 %v1204, %v1209
        %v1215 = vmul.f32 %v1204, %v1213
        %v1216 = vadd.f32 %v1200, %v1214
        %v1217 = vadd.f32 %v1201, %v1215
        %1218 = vset.pattern.permute.xlu0 3
        %1219 = vperm.xlu0 %1218, %v1169
        %v1220 = vpop.permute.xlu0 %1219
        %v1222 = vlaneseq
        %v1223 = vshrl.u32 %v1222, 7
        %v1224 = vsub.s32 3, %v1223
        %v1225 = vrot.slane %v1166, %v1224
        %v1226 = vlaneseq
        %v1227 = vshrl.u32 %v1226, 7
        %v1228 = vsub.s32 3, %v1227
        %v1229 = vrot.slane %v1168, %v1228
        %v1230 = vmul.f32 %v1220, %v1225
        %v1231 = vmul.f32 %v1220, %v1229
        %v1232 = vadd.f32 %v1216, %v1230
        %v1233 = vadd.f32 %v1217, %v1231
        %1235 = vset.pattern.permute.xlu0 0
        %1236 = vperm.xlu0 %1235, %v1170
        %v1237 = vpop.permute.xlu0 %1236
        %v1239 = vadd.f32 %v1232, %v1237
        %v1240 = vadd.f32 %v1233, %v1237
        %v1241 = vld [vmem:[%s11] sm:$0xff]
        %v1242 = vld [vmem:[%s13] sm:$0xff]
        %1244 = vset.pattern.permute.xlu0 0
        %1245 = vperm.xlu0 %1244, %v1241
        %v1246 = vpop.permute.xlu0 %1245
        %v1248 = vlaneseq
        %v1249 = vshrl.u32 %v1248, 7
        %v1250 = vsub.s32 0, %v1249
        %v1251 = vrot.slane %v1239, %v1250
        %v1252 = vlaneseq
        %v1253 = vshrl.u32 %v1252, 7
        %v1254 = vsub.s32 0, %v1253
        %v1255 = vrot.slane %v1240, %v1254
        %v1256 = vmul.f32 %v1246, %v1251
        %v1257 = vmul.f32 %v1246, %v1255
        %1258 = vset.pattern.permute.xlu0 1
        %1259 = vperm.xlu0 %1258, %v1241
        %v1260 = vpop.permute.xlu0 %1259
        %v1262 = vlaneseq
        %v1263 = vshrl.u32 %v1262, 7
        %v1264 = vsub.s32 1, %v1263
        %v1265 = vrot.slane %v1239, %v1264
        %v1266 = vlaneseq
        %v1267 = vshrl.u32 %v1266, 7
        %v1268 = vsub.s32 1, %v1267
        %v1269 = vrot.slane %v1240, %v1268
        %v1270 = vmul.f32 %v1260, %v1265
        %v1271 = vmul.f32 %v1260, %v1269
        %v1272 = vadd.f32 %v1256, %v1270
        %v1273 = vadd.f32 %v1257, %v1271
        %1274 = vset.pattern.permute.xlu0 2
        %1275 = vperm.xlu0 %1274, %v1241
        %v1276 = vpop.permute.xlu0 %1275
        %v1278 = vlaneseq
        %v1279 = vshrl.u32 %v1278, 7
        %v1280 = vsub.s32 2, %v1279
        %v1281 = vrot.slane %v1239, %v1280
        %v1282 = vlaneseq
        %v1283 = vshrl.u32 %v1282, 7
        %v1284 = vsub.s32 2, %v1283
        %v1285 = vrot.slane %v1240, %v1284
        %v1286 = vmul.f32 %v1276, %v1281
        %v1287 = vmul.f32 %v1276, %v1285
        %v1288 = vadd.f32 %v1272, %v1286
        %v1289 = vadd.f32 %v1273, %v1287
        %1290 = vset.pattern.permute.xlu0 3
        %1291 = vperm.xlu0 %1290, %v1241
        %v1292 = vpop.permute.xlu0 %1291
        %v1294 = vlaneseq
        %v1295 = vshrl.u32 %v1294, 7
        %v1296 = vsub.s32 3, %v1295
        %v1297 = vrot.slane %v1239, %v1296
        %v1298 = vlaneseq
        %v1299 = vshrl.u32 %v1298, 7
        %v1300 = vsub.s32 3, %v1299
        %v1301 = vrot.slane %v1240, %v1300
        %v1302 = vmul.f32 %v1292, %v1297
        %v1303 = vmul.f32 %v1292, %v1301
        %v1304 = vadd.f32 %v1288, %v1302
        %v1305 = vadd.f32 %v1289, %v1303
        %1306 = vset.pattern.permute.xlu0 4
        %1307 = vperm.xlu0 %1306, %v1241
        %v1308 = vpop.permute.xlu0 %1307
        %v1310 = vlaneseq
        %v1311 = vshrl.u32 %v1310, 7
        %v1312 = vsub.s32 4, %v1311
        %v1313 = vrot.slane %v1239, %v1312
        %v1314 = vlaneseq
        %v1315 = vshrl.u32 %v1314, 7
        %v1316 = vsub.s32 4, %v1315
        %v1317 = vrot.slane %v1240, %v1316
        %v1318 = vmul.f32 %v1308, %v1313
        %v1319 = vmul.f32 %v1308, %v1317
        %v1320 = vadd.f32 %v1304, %v1318
        %v1321 = vadd.f32 %v1305, %v1319
        %1322 = vset.pattern.permute.xlu0 5
        %1323 = vperm.xlu0 %1322, %v1241
        %v1324 = vpop.permute.xlu0 %1323
        %v1326 = vlaneseq
        %v1327 = vshrl.u32 %v1326, 7
        %v1328 = vsub.s32 5, %v1327
        %v1329 = vrot.slane %v1239, %v1328
        %v1330 = vlaneseq
        %v1331 = vshrl.u32 %v1330, 7
        %v1332 = vsub.s32 5, %v1331
        %v1333 = vrot.slane %v1240, %v1332
        %v1334 = vmul.f32 %v1324, %v1329
        %v1335 = vmul.f32 %v1324, %v1333
        %v1336 = vadd.f32 %v1320, %v1334
        %v1337 = vadd.f32 %v1321, %v1335
        %1338 = vset.pattern.permute.xlu0 6
        %1339 = vperm.xlu0 %1338, %v1241
        %v1340 = vpop.permute.xlu0 %1339
        %v1342 = vlaneseq
        %v1343 = vshrl.u32 %v1342, 7
        %v1344 = vsub.s32 6, %v1343
        %v1345 = vrot.slane %v1239, %v1344
        %v1346 = vlaneseq
        %v1347 = vshrl.u32 %v1346, 7
        %v1348 = vsub.s32 6, %v1347
        %v1349 = vrot.slane %v1240, %v1348
        %v1350 = vmul.f32 %v1340, %v1345
        %v1351 = vmul.f32 %v1340, %v1349
        %v1352 = vadd.f32 %v1336, %v1350
        %v1353 = vadd.f32 %v1337, %v1351
        %1354 = vset.pattern.permute.xlu0 7
        %1355 = vperm.xlu0 %1354, %v1241
        %v1356 = vpop.permute.xlu0 %1355
        %v1358 = vlaneseq
        %v1359 = vshrl.u32 %v1358, 7
        %v1360 = vsub.s32 7, %v1359
        %v1361 = vrot.slane %v1239, %v1360
        %v1362 = vlaneseq
        %v1363 = vshrl.u32 %v1362, 7
        %v1364 = vsub.s32 7, %v1363
        %v1365 = vrot.slane %v1240, %v1364
        %v1366 = vmul.f32 %v1356, %v1361
        %v1367 = vmul.f32 %v1356, %v1365
        %v1368 = vadd.f32 %v1352, %v1366
        %v1369 = vadd.f32 %v1353, %v1367
        %1371 = vset.pattern.permute.xlu0 0
        %1372 = vperm.xlu0 %1371, %v1242
        %v1373 = vpop.permute.xlu0 %1372
        %v1375 = vadd.f32 %v1368, %v1373
        %v1376 = vadd.f32 %v1369, %v1373
        %v1377 = vmin.f32 %v1375, 20.0
        %v1378 = vmin.f32 %v1376, 20.0
        %v1379 = vmul.f32 %v1377, 1.442695
        %v1380 = vpow.pop %v1379
        %v1381 = vmul.f32 %v1378, 1.442695
        %v1382 = vpow.pop %v1381
        %v1383 = vadd.f32 %v1380, 1.0
        %v1384 = vadd.f32 %v1382, 1.0
        %v1385 = vmul.f32 %v1383, %v1383
        %v1386 = vmul.f32 %v1384, %v1384
        %v1387 = vsub.f32 %v1385, 1.0
        %v1388 = vsub.f32 %v1386, 1.0
        %v1389 = vmul.f32 %v1375, %v1387
        %v1390 = vmul.f32 %v1376, %v1388
        %v1391 = vadd.f32 %v1385, 1.0
        %v1392 = vadd.f32 %v1386, 1.0
        %v1393 = vrcp.pop %v1391
        %v1394 = vmul.f32 %v1389, %v1393
        %v1395 = vrcp.pop %v1392
        %v1396 = vmul.f32 %v1390, %v1395
        %v1397 = vld [vmem:[%s15] sm:$0xff]
        %v1398 = vld [vmem:[%s17] sm:$0xff]
        %1401 = vrot.lane.b32.xlu0 %v1394, 17
        %v1402 = vpop.permute.xlu0 %1401
        %1403 = vrot.lane.b32.xlu0 %v1396, 17
        %v1404 = vpop.permute.xlu0 %1403
        %v1405 = vsel %vm938, %v1402, %v1404
        %v1409 = vsel %vm938, 0.0, %v1402
        %v1410 = vsel %vm938, %v1404, 0.0
        %v1411 = vmul.f32 %v1409, %v917
        %v1412 = vmul.f32 %v1405, %v918
        %v1413 = vmul.f32 %v1410, %v919
        %v1414 = vmul.f32 %v1409, %v926
        %v1415 = vmul.f32 %v1405, %v927
        %v1416 = vmul.f32 %v1410, %v928
        %1418 = vset.pattern.permute.xlu0 0
        %1419 = vperm.xlu0 %1418, %v1397
        %v1420 = vpop.permute.xlu0 %1419
        %v1422 = vmul.f32 %v1420, %v1411
        %v1423 = vmul.f32 %v1420, %v1412
        %1424 = vset.pattern.permute.xlu0 1
        %1425 = vperm.xlu0 %1424, %v1397
        %v1426 = vpop.permute.xlu0 %1425
        %v1428 = vmul.f32 %v1426, %v1409
        %v1429 = vmul.f32 %v1426, %v1405
        %v1430 = vmul.f32 %v1426, %v1410
        %1434 = vrot.lane.b32.xlu0 %v1428, 127
        %v1435 = vpop.permute.xlu0 %1434
        %1436 = vrot.lane.b32.xlu0 %v1429, 127
        %v1437 = vpop.permute.xlu0 %1436
        %1438 = vrot.lane.b32.xlu0 %v1430, 127
        %v1439 = vpop.permute.xlu0 %1438
        %v1440 = vsel %vm974, %v1435, %v1437
        %v1441 = vsel %vm974, %v1437, %v1439
        %v1444 = vadd.f32 %v1422, %v1440
        %v1445 = vadd.f32 %v1423, %v1441
        %1446 = vset.pattern.permute.xlu0 2
        %1447 = vperm.xlu0 %1446, %v1397
        %v1448 = vpop.permute.xlu0 %1447
        %v1450 = vmul.f32 %v1448, %v1414
        %v1451 = vmul.f32 %v1448, %v1415
        %v1452 = vmul.f32 %v1448, %v1416
        %1456 = vrot.lane.b32.xlu0 %v1450, 126
        %v1457 = vpop.permute.xlu0 %1456
        %1458 = vrot.lane.b32.xlu0 %v1451, 126
        %v1459 = vpop.permute.xlu0 %1458
        %1460 = vrot.lane.b32.xlu0 %v1452, 126
        %v1461 = vpop.permute.xlu0 %1460
        %v1462 = vsel %vm997, %v1457, %v1459
        %v1463 = vsel %vm997, %v1459, %v1461
        %v1466 = vadd.f32 %v1444, %v1462
        %v1467 = vadd.f32 %v1445, %v1463
        %1468 = vset.pattern.permute.xlu0 3
        %1469 = vperm.xlu0 %1468, %v1397
        %v1470 = vpop.permute.xlu0 %1469
        %v1472 = vmul.f32 %v1470, %v1411
        %v1473 = vmul.f32 %v1470, %v1412
        %v1474 = vmul.f32 %v1470, %v1413
        %1478 = vrot.lane.b32.xlu0 %v1472, 112
        %v1479 = vpop.permute.xlu0 %1478
        %1480 = vrot.lane.b32.xlu0 %v1473, 112
        %v1481 = vpop.permute.xlu0 %1480
        %1482 = vrot.lane.b32.xlu0 %v1474, 112
        %v1483 = vpop.permute.xlu0 %1482
        %v1484 = vsel %vm1020, %v1479, %v1481
        %v1485 = vsel %vm1020, %v1481, %v1483
        %v1488 = vadd.f32 %v1466, %v1484
        %v1489 = vadd.f32 %v1467, %v1485
        %1490 = vset.pattern.permute.xlu0 4
        %1491 = vperm.xlu0 %1490, %v1397
        %v1492 = vpop.permute.xlu0 %1491
        %v1494 = vmul.f32 %v1492, %v1409
        %v1495 = vmul.f32 %v1492, %v1405
        %v1496 = vmul.f32 %v1492, %v1410
        %1500 = vrot.lane.b32.xlu0 %v1494, 111
        %v1501 = vpop.permute.xlu0 %1500
        %1502 = vrot.lane.b32.xlu0 %v1495, 111
        %v1503 = vpop.permute.xlu0 %1502
        %1504 = vrot.lane.b32.xlu0 %v1496, 111
        %v1505 = vpop.permute.xlu0 %1504
        %v1506 = vsel %vm1043, %v1501, %v1503
        %v1507 = vsel %vm1043, %v1503, %v1505
        %v1510 = vadd.f32 %v1488, %v1506
        %v1511 = vadd.f32 %v1489, %v1507
        %1512 = vset.pattern.permute.xlu0 5
        %1513 = vperm.xlu0 %1512, %v1397
        %v1514 = vpop.permute.xlu0 %1513
        %v1516 = vmul.f32 %v1514, %v1414
        %v1517 = vmul.f32 %v1514, %v1415
        %v1518 = vmul.f32 %v1514, %v1416
        %1522 = vrot.lane.b32.xlu0 %v1516, 110
        %v1523 = vpop.permute.xlu0 %1522
        %1524 = vrot.lane.b32.xlu0 %v1517, 110
        %v1525 = vpop.permute.xlu0 %1524
        %1526 = vrot.lane.b32.xlu0 %v1518, 110
        %v1527 = vpop.permute.xlu0 %1526
        %v1528 = vsel %vm1066, %v1523, %v1525
        %v1529 = vsel %vm1066, %v1525, %v1527
        %v1532 = vadd.f32 %v1510, %v1528
        %v1533 = vadd.f32 %v1511, %v1529
        %1534 = vset.pattern.permute.xlu0 6
        %1535 = vperm.xlu0 %1534, %v1397
        %v1536 = vpop.permute.xlu0 %1535
        %v1538 = vmul.f32 %v1536, %v1411
        %v1539 = vmul.f32 %v1536, %v1412
        %v1540 = vmul.f32 %v1536, %v1413
        %1544 = vrot.lane.b32.xlu0 %v1538, 96
        %v1545 = vpop.permute.xlu0 %1544
        %1546 = vrot.lane.b32.xlu0 %v1539, 96
        %v1547 = vpop.permute.xlu0 %1546
        %1548 = vrot.lane.b32.xlu0 %v1540, 96
        %v1549 = vpop.permute.xlu0 %1548
        %v1550 = vsel %vm1089, %v1545, %v1547
        %v1551 = vsel %vm1089, %v1547, %v1549
        %v1554 = vadd.f32 %v1532, %v1550
        %v1555 = vadd.f32 %v1533, %v1551
        %1556 = vset.pattern.permute.xlu0 7
        %1557 = vperm.xlu0 %1556, %v1397
        %v1558 = vpop.permute.xlu0 %1557
        %v1560 = vmul.f32 %v1558, %v1409
        %v1561 = vmul.f32 %v1558, %v1405
        %v1562 = vmul.f32 %v1558, %v1410
        %1566 = vrot.lane.b32.xlu0 %v1560, 95
        %v1567 = vpop.permute.xlu0 %1566
        %1568 = vrot.lane.b32.xlu0 %v1561, 95
        %v1569 = vpop.permute.xlu0 %1568
        %1570 = vrot.lane.b32.xlu0 %v1562, 95
        %v1571 = vpop.permute.xlu0 %1570
        %v1572 = vsel %vm1112, %v1567, %v1569
        %v1573 = vsel %vm1112, %v1569, %v1571
        %v1576 = vadd.f32 %v1554, %v1572
        %v1577 = vadd.f32 %v1555, %v1573
        %1578 = vset.pattern.permute.xlu0 8
        %1579 = vperm.xlu0 %1578, %v1397
        %v1580 = vpop.permute.xlu0 %1579
        %v1582 = vmul.f32 %v1580, %v1414
        %v1583 = vmul.f32 %v1580, %v1415
        %v1584 = vmul.f32 %v1580, %v1416
        %1588 = vrot.lane.b32.xlu0 %v1582, 94
        %v1589 = vpop.permute.xlu0 %1588
        %1590 = vrot.lane.b32.xlu0 %v1583, 94
        %v1591 = vpop.permute.xlu0 %1590
        %1592 = vrot.lane.b32.xlu0 %v1584, 94
        %v1593 = vpop.permute.xlu0 %1592
        %v1594 = vsel %vm1135, %v1589, %v1591
        %v1595 = vsel %vm1135, %v1591, %v1593
        %v1598 = vadd.f32 %v1576, %v1594
        %v1599 = vadd.f32 %v1577, %v1595
        %1601 = vset.pattern.permute.xlu0 0
        %1602 = vperm.xlu0 %1601, %v1398
        %v1603 = vpop.permute.xlu0 %1602
        %v1605 = vadd.f32 %v1598, %v1603
        %v1606 = vadd.f32 %v1599, %v1603
        %v1607 = vmin.f32 %v1605, 20.0
        %v1608 = vmin.f32 %v1606, 20.0
        %v1609 = vmul.f32 %v1607, 1.442695
        %v1610 = vpow.pop %v1609
        %v1611 = vmul.f32 %v1608, 1.442695
        %v1612 = vpow.pop %v1611
        %v1613 = vadd.f32 %v1610, 1.0
        %v1614 = vadd.f32 %v1612, 1.0
        %v1615 = vmul.f32 %v1613, %v1613
        %v1616 = vmul.f32 %v1614, %v1614
        %v1617 = vsub.f32 %v1615, 1.0
        %v1618 = vsub.f32 %v1616, 1.0
        %v1619 = vmul.f32 %v1605, %v1617
        %v1620 = vmul.f32 %v1606, %v1618
        %v1621 = vadd.f32 %v1615, 1.0
        %v1622 = vadd.f32 %v1616, 1.0
        %v1623 = vrcp.pop %v1621
        %v1624 = vmul.f32 %v1619, %v1623
        %v1625 = vrcp.pop %v1622
        %v1626 = vmul.f32 %v1620, %v1625
        %v1627 = vld [vmem:[%s19] sm:$0x3]
        %v1628 = vld [vmem:[%s21] sm:$0x3]
        %v1629 = vld [vmem:[%s23] sm:$0xff]
        %v1630 = vld [vmem:[%s25] sm:$0xff]
        %1632 = vset.pattern.permute.xlu0 0
        %1633 = vperm.xlu0 %1632, %v1627
        %v1634 = vpop.permute.xlu0 %1633
        %v1636 = vlaneseq
        %v1637 = vshrl.u32 %v1636, 7
        %v1638 = vsub.s32 0, %v1637
        %v1639 = vrot.slane %v1624, %v1638
        %v1640 = vlaneseq
        %v1641 = vshrl.u32 %v1640, 7
        %v1642 = vsub.s32 0, %v1641
        %v1643 = vrot.slane %v1626, %v1642
        %v1644 = vmul.f32 %v1634, %v1639
        %v1645 = vmul.f32 %v1634, %v1643
        %1646 = vset.pattern.permute.xlu0 1
        %1647 = vperm.xlu0 %1646, %v1627
        %v1648 = vpop.permute.xlu0 %1647
        %v1650 = vlaneseq
        %v1651 = vshrl.u32 %v1650, 7
        %v1652 = vsub.s32 1, %v1651
        %v1653 = vrot.slane %v1624, %v1652
        %v1654 = vlaneseq
        %v1655 = vshrl.u32 %v1654, 7
        %v1656 = vsub.s32 1, %v1655
        %v1657 = vrot.slane %v1626, %v1656
        %v1658 = vmul.f32 %v1648, %v1653
        %v1659 = vmul.f32 %v1648, %v1657
        %v1660 = vadd.f32 %v1644, %v1658
        %v1661 = vadd.f32 %v1645, %v1659
        %1662 = vset.pattern.permute.xlu0 2
        %1663 = vperm.xlu0 %1662, %v1627
        %v1664 = vpop.permute.xlu0 %1663
        %v1666 = vlaneseq
        %v1667 = vshrl.u32 %v1666, 7
        %v1668 = vsub.s32 2, %v1667
        %v1669 = vrot.slane %v1624, %v1668
        %v1670 = vlaneseq
        %v1671 = vshrl.u32 %v1670, 7
        %v1672 = vsub.s32 2, %v1671
        %v1673 = vrot.slane %v1626, %v1672
        %v1674 = vmul.f32 %v1664, %v1669
        %v1675 = vmul.f32 %v1664, %v1673
        %v1676 = vadd.f32 %v1660, %v1674
        %v1677 = vadd.f32 %v1661, %v1675
        %1678 = vset.pattern.permute.xlu0 3
        %1679 = vperm.xlu0 %1678, %v1627
        %v1680 = vpop.permute.xlu0 %1679
        %v1682 = vlaneseq
        %v1683 = vshrl.u32 %v1682, 7
        %v1684 = vsub.s32 3, %v1683
        %v1685 = vrot.slane %v1624, %v1684
        %v1686 = vlaneseq
        %v1687 = vshrl.u32 %v1686, 7
        %v1688 = vsub.s32 3, %v1687
        %v1689 = vrot.slane %v1626, %v1688
        %v1690 = vmul.f32 %v1680, %v1685
        %v1691 = vmul.f32 %v1680, %v1689
        %v1692 = vadd.f32 %v1676, %v1690
        %v1693 = vadd.f32 %v1677, %v1691
        %1694 = vset.pattern.permute.xlu0 4
        %1695 = vperm.xlu0 %1694, %v1627
        %v1696 = vpop.permute.xlu0 %1695
        %v1698 = vlaneseq
        %v1699 = vshrl.u32 %v1698, 7
        %v1700 = vsub.s32 4, %v1699
        %v1701 = vrot.slane %v1624, %v1700
        %v1702 = vlaneseq
        %v1703 = vshrl.u32 %v1702, 7
        %v1704 = vsub.s32 4, %v1703
        %v1705 = vrot.slane %v1626, %v1704
        %v1706 = vmul.f32 %v1696, %v1701
        %v1707 = vmul.f32 %v1696, %v1705
        %v1708 = vadd.f32 %v1692, %v1706
        %v1709 = vadd.f32 %v1693, %v1707
        %1710 = vset.pattern.permute.xlu0 5
        %1711 = vperm.xlu0 %1710, %v1627
        %v1712 = vpop.permute.xlu0 %1711
        %v1714 = vlaneseq
        %v1715 = vshrl.u32 %v1714, 7
        %v1716 = vsub.s32 5, %v1715
        %v1717 = vrot.slane %v1624, %v1716
        %v1718 = vlaneseq
        %v1719 = vshrl.u32 %v1718, 7
        %v1720 = vsub.s32 5, %v1719
        %v1721 = vrot.slane %v1626, %v1720
        %v1722 = vmul.f32 %v1712, %v1717
        %v1723 = vmul.f32 %v1712, %v1721
        %v1724 = vadd.f32 %v1708, %v1722
        %v1725 = vadd.f32 %v1709, %v1723
        %1726 = vset.pattern.permute.xlu0 6
        %1727 = vperm.xlu0 %1726, %v1627
        %v1728 = vpop.permute.xlu0 %1727
        %v1730 = vlaneseq
        %v1731 = vshrl.u32 %v1730, 7
        %v1732 = vsub.s32 6, %v1731
        %v1733 = vrot.slane %v1624, %v1732
        %v1734 = vlaneseq
        %v1735 = vshrl.u32 %v1734, 7
        %v1736 = vsub.s32 6, %v1735
        %v1737 = vrot.slane %v1626, %v1736
        %v1738 = vmul.f32 %v1728, %v1733
        %v1739 = vmul.f32 %v1728, %v1737
        %v1740 = vadd.f32 %v1724, %v1738
        %v1741 = vadd.f32 %v1725, %v1739
        %1742 = vset.pattern.permute.xlu0 7
        %1743 = vperm.xlu0 %1742, %v1627
        %v1744 = vpop.permute.xlu0 %1743
        %v1746 = vlaneseq
        %v1747 = vshrl.u32 %v1746, 7
        %v1748 = vsub.s32 7, %v1747
        %v1749 = vrot.slane %v1624, %v1748
        %v1750 = vlaneseq
        %v1751 = vshrl.u32 %v1750, 7
        %v1752 = vsub.s32 7, %v1751
        %v1753 = vrot.slane %v1626, %v1752
        %v1754 = vmul.f32 %v1744, %v1749
        %v1755 = vmul.f32 %v1744, %v1753
        %v1756 = vadd.f32 %v1740, %v1754
        %v1757 = vadd.f32 %v1741, %v1755
        %vm1758 = vcmask 1041408
        %v1759 = vsel %vm1758, %v1756, 0.0
        %v1760 = vsel %vm1758, %v1757, 0.0
        %v1761 = vadd.f32 %v1759, %v1760
        %1762 = vadd.xlane.f32.xlu0 %v1761
        %v1763 = vpop.xlane.xlu0 %1762
        %v1764 = vmul.f32 %v1763, 0.00390625
        %v1765 = vadd.f32 %v1764, %v1628
        %v1766 = vmin.f32 %v1765, 20.0
        %v1767 = vmul.f32 %v1766, 1.442695
        %v1768 = vpow.pop %v1767
        %v1769 = vadd.f32 %v1768, 1.0
        %v1770 = vmul.f32 %v1769, %v1769
        %v1771 = vsub.f32 %v1770, 1.0
        %v1772 = vmul.f32 %v1765, %v1771
        %v1773 = vadd.f32 %v1770, 1.0
        %v1774 = vrcp.pop %v1773
        %v1775 = vmul.f32 %v1772, %v1774
        %1777 = vset.pattern.permute.xlu0 0
        %1778 = vperm.xlu0 %1777, %v1629
        %v1779 = vpop.permute.xlu0 %1778
        %s1782 = vtos %v1775
        %v1783 = vstv %s1782
        %v1785 = vmul.f32 %v1779, %v1783
        %1786 = vset.pattern.permute.xlu0 1
        %1787 = vperm.xlu0 %1786, %v1629
        %v1788 = vpop.permute.xlu0 %1787
        %v1790 = vrot.slane %v1775, 1
        %s1791 = vtos %v1790
        %v1792 = vstv %s1791
        %v1794 = vmul.f32 %v1788, %v1792
        %v1795 = vadd.f32 %v1785, %v1794
        %1797 = vset.pattern.permute.xlu0 0
        %1798 = vperm.xlu0 %1797, %v1630
        %v1799 = vpop.permute.xlu0 %1798
        %v1801 = vadd.f32 %v1795, %v1799
        %v1802 = vxor.u32 %v1801, 2147483648
        %v1803 = vmul.f32 %v1802, 1.442695
        %v1804 = vpow.pop %v1803
        %v1805 = vadd.f32 %v1804, 1.0
        %v1806 = vrcp.pop %v1805
        %v1807 = vmul.f32 1.0, %v1806
        %v1808 = vmul.f32 %v1624, %v1807
        %v1809 = vmul.f32 %v1626, %v1807
        %v1810 = vld [vmem:[%s27] sm:$0xff]
        %v1811 = vld [vmem:[%s29] sm:$0xff]
        %1813 = vset.pattern.permute.xlu0 0
        %1814 = vperm.xlu0 %1813, %v1810
        %v1815 = vpop.permute.xlu0 %1814
        %v1817 = vlaneseq
        %v1818 = vshrl.u32 %v1817, 7
        %v1819 = vsub.s32 0, %v1818
        %v1820 = vrot.slane %v1808, %v1819
        %v1821 = vlaneseq
        %v1822 = vshrl.u32 %v1821, 7
        %v1823 = vsub.s32 0, %v1822
        %v1824 = vrot.slane %v1809, %v1823
        %v1825 = vmul.f32 %v1815, %v1820
        %v1826 = vmul.f32 %v1815, %v1824
        %1827 = vset.pattern.permute.xlu0 1
        %1828 = vperm.xlu0 %1827, %v1810
        %v1829 = vpop.permute.xlu0 %1828
        %v1831 = vlaneseq
        %v1832 = vshrl.u32 %v1831, 7
        %v1833 = vsub.s32 1, %v1832
        %v1834 = vrot.slane %v1808, %v1833
        %v1835 = vlaneseq
        %v1836 = vshrl.u32 %v1835, 7
        %v1837 = vsub.s32 1, %v1836
        %v1838 = vrot.slane %v1809, %v1837
        %v1839 = vmul.f32 %v1829, %v1834
        %v1840 = vmul.f32 %v1829, %v1838
        %v1841 = vadd.f32 %v1825, %v1839
        %v1842 = vadd.f32 %v1826, %v1840
        %1843 = vset.pattern.permute.xlu0 2
        %1844 = vperm.xlu0 %1843, %v1810
        %v1845 = vpop.permute.xlu0 %1844
        %v1847 = vlaneseq
        %v1848 = vshrl.u32 %v1847, 7
        %v1849 = vsub.s32 2, %v1848
        %v1850 = vrot.slane %v1808, %v1849
        %v1851 = vlaneseq
        %v1852 = vshrl.u32 %v1851, 7
        %v1853 = vsub.s32 2, %v1852
        %v1854 = vrot.slane %v1809, %v1853
        %v1855 = vmul.f32 %v1845, %v1850
        %v1856 = vmul.f32 %v1845, %v1854
        %v1857 = vadd.f32 %v1841, %v1855
        %v1858 = vadd.f32 %v1842, %v1856
        %1859 = vset.pattern.permute.xlu0 3
        %1860 = vperm.xlu0 %1859, %v1810
        %v1861 = vpop.permute.xlu0 %1860
        %v1863 = vlaneseq
        %v1864 = vshrl.u32 %v1863, 7
        %v1865 = vsub.s32 3, %v1864
        %v1866 = vrot.slane %v1808, %v1865
        %v1867 = vlaneseq
        %v1868 = vshrl.u32 %v1867, 7
        %v1869 = vsub.s32 3, %v1868
        %v1870 = vrot.slane %v1809, %v1869
        %v1871 = vmul.f32 %v1861, %v1866
        %v1872 = vmul.f32 %v1861, %v1870
        %v1873 = vadd.f32 %v1857, %v1871
        %v1874 = vadd.f32 %v1858, %v1872
        %1875 = vset.pattern.permute.xlu0 4
        %1876 = vperm.xlu0 %1875, %v1810
        %v1877 = vpop.permute.xlu0 %1876
        %v1879 = vlaneseq
        %v1880 = vshrl.u32 %v1879, 7
        %v1881 = vsub.s32 4, %v1880
        %v1882 = vrot.slane %v1808, %v1881
        %v1883 = vlaneseq
        %v1884 = vshrl.u32 %v1883, 7
        %v1885 = vsub.s32 4, %v1884
        %v1886 = vrot.slane %v1809, %v1885
        %v1887 = vmul.f32 %v1877, %v1882
        %v1888 = vmul.f32 %v1877, %v1886
        %v1889 = vadd.f32 %v1873, %v1887
        %v1890 = vadd.f32 %v1874, %v1888
        %1891 = vset.pattern.permute.xlu0 5
        %1892 = vperm.xlu0 %1891, %v1810
        %v1893 = vpop.permute.xlu0 %1892
        %v1895 = vlaneseq
        %v1896 = vshrl.u32 %v1895, 7
        %v1897 = vsub.s32 5, %v1896
        %v1898 = vrot.slane %v1808, %v1897
        %v1899 = vlaneseq
        %v1900 = vshrl.u32 %v1899, 7
        %v1901 = vsub.s32 5, %v1900
        %v1902 = vrot.slane %v1809, %v1901
        %v1903 = vmul.f32 %v1893, %v1898
        %v1904 = vmul.f32 %v1893, %v1902
        %v1905 = vadd.f32 %v1889, %v1903
        %v1906 = vadd.f32 %v1890, %v1904
        %1907 = vset.pattern.permute.xlu0 6
        %1908 = vperm.xlu0 %1907, %v1810
        %v1909 = vpop.permute.xlu0 %1908
        %v1911 = vlaneseq
        %v1912 = vshrl.u32 %v1911, 7
        %v1913 = vsub.s32 6, %v1912
        %v1914 = vrot.slane %v1808, %v1913
        %v1915 = vlaneseq
        %v1916 = vshrl.u32 %v1915, 7
        %v1917 = vsub.s32 6, %v1916
        %v1918 = vrot.slane %v1809, %v1917
        %v1919 = vmul.f32 %v1909, %v1914
        %v1920 = vmul.f32 %v1909, %v1918
        %v1921 = vadd.f32 %v1905, %v1919
        %v1922 = vadd.f32 %v1906, %v1920
        %1923 = vset.pattern.permute.xlu0 7
        %1924 = vperm.xlu0 %1923, %v1810
        %v1925 = vpop.permute.xlu0 %1924
        %v1927 = vlaneseq
        %v1928 = vshrl.u32 %v1927, 7
        %v1929 = vsub.s32 7, %v1928
        %v1930 = vrot.slane %v1808, %v1929
        %v1931 = vlaneseq
        %v1932 = vshrl.u32 %v1931, 7
        %v1933 = vsub.s32 7, %v1932
        %v1934 = vrot.slane %v1809, %v1933
        %v1935 = vmul.f32 %v1925, %v1930
        %v1936 = vmul.f32 %v1925, %v1934
        %v1937 = vadd.f32 %v1921, %v1935
        %v1938 = vadd.f32 %v1922, %v1936
        %1940 = vset.pattern.permute.xlu0 0
        %1941 = vperm.xlu0 %1940, %v1811
        %v1942 = vpop.permute.xlu0 %1941
        %v1944 = vadd.f32 %v1937, %v1942
        %v1945 = vadd.f32 %v1938, %v1942
        %v1946 = vadd.f32 %v1944, %v1239
        %v1947 = vadd.f32 %v1945, %v1240
        %v1948 = vld [vmem:[%s31] sm:$0xff]
        %v1949 = vld [vmem:[%s33] sm:$0xff]
        %1952 = vrot.lane.b32.xlu0 %v1946, 17
        %v1953 = vpop.permute.xlu0 %1952
        %1954 = vrot.lane.b32.xlu0 %v1947, 17
        %v1955 = vpop.permute.xlu0 %1954
        %v1956 = vsel %vm938, %v1953, %v1955
        %v1960 = vsel %vm938, 0.0, %v1953
        %v1961 = vsel %vm938, %v1955, 0.0
        %v1962 = vmul.f32 %v1960, %v917
        %v1963 = vmul.f32 %v1956, %v918
        %v1964 = vmul.f32 %v1961, %v919
        %v1965 = vmul.f32 %v1960, %v926
        %v1966 = vmul.f32 %v1956, %v927
        %v1967 = vmul.f32 %v1961, %v928
        %1969 = vset.pattern.permute.xlu0 0
        %1970 = vperm.xlu0 %1969, %v1948
        %v1971 = vpop.permute.xlu0 %1970
        %v1973 = vmul.f32 %v1971, %v1962
        %v1974 = vmul.f32 %v1971, %v1963
        %1975 = vset.pattern.permute.xlu0 1
        %1976 = vperm.xlu0 %1975, %v1948
        %v1977 = vpop.permute.xlu0 %1976
        %v1979 = vmul.f32 %v1977, %v1960
        %v1980 = vmul.f32 %v1977, %v1956
        %v1981 = vmul.f32 %v1977, %v1961
        %1985 = vrot.lane.b32.xlu0 %v1979, 127
        %v1986 = vpop.permute.xlu0 %1985
        %1987 = vrot.lane.b32.xlu0 %v1980, 127
        %v1988 = vpop.permute.xlu0 %1987
        %1989 = vrot.lane.b32.xlu0 %v1981, 127
        %v1990 = vpop.permute.xlu0 %1989
        %v1991 = vsel %vm974, %v1986, %v1988
        %v1992 = vsel %vm974, %v1988, %v1990
        %v1995 = vadd.f32 %v1973, %v1991
        %v1996 = vadd.f32 %v1974, %v1992
        %1997 = vset.pattern.permute.xlu0 2
        %1998 = vperm.xlu0 %1997, %v1948
        %v1999 = vpop.permute.xlu0 %1998
        %v2001 = vmul.f32 %v1999, %v1965
        %v2002 = vmul.f32 %v1999, %v1966
        %v2003 = vmul.f32 %v1999, %v1967
        %2007 = vrot.lane.b32.xlu0 %v2001, 126
        %v2008 = vpop.permute.xlu0 %2007
        %2009 = vrot.lane.b32.xlu0 %v2002, 126
        %v2010 = vpop.permute.xlu0 %2009
        %2011 = vrot.lane.b32.xlu0 %v2003, 126
        %v2012 = vpop.permute.xlu0 %2011
        %v2013 = vsel %vm997, %v2008, %v2010
        %v2014 = vsel %vm997, %v2010, %v2012
        %v2017 = vadd.f32 %v1995, %v2013
        %v2018 = vadd.f32 %v1996, %v2014
        %2019 = vset.pattern.permute.xlu0 3
        %2020 = vperm.xlu0 %2019, %v1948
        %v2021 = vpop.permute.xlu0 %2020
        %v2023 = vmul.f32 %v2021, %v1962
        %v2024 = vmul.f32 %v2021, %v1963
        %v2025 = vmul.f32 %v2021, %v1964
        %2029 = vrot.lane.b32.xlu0 %v2023, 112
        %v2030 = vpop.permute.xlu0 %2029
        %2031 = vrot.lane.b32.xlu0 %v2024, 112
        %v2032 = vpop.permute.xlu0 %2031
        %2033 = vrot.lane.b32.xlu0 %v2025, 112
        %v2034 = vpop.permute.xlu0 %2033
        %v2035 = vsel %vm1020, %v2030, %v2032
        %v2036 = vsel %vm1020, %v2032, %v2034
        %v2039 = vadd.f32 %v2017, %v2035
        %v2040 = vadd.f32 %v2018, %v2036
        %2041 = vset.pattern.permute.xlu0 4
        %2042 = vperm.xlu0 %2041, %v1948
        %v2043 = vpop.permute.xlu0 %2042
        %v2045 = vmul.f32 %v2043, %v1960
        %v2046 = vmul.f32 %v2043, %v1956
        %v2047 = vmul.f32 %v2043, %v1961
        %2051 = vrot.lane.b32.xlu0 %v2045, 111
        %v2052 = vpop.permute.xlu0 %2051
        %2053 = vrot.lane.b32.xlu0 %v2046, 111
        %v2054 = vpop.permute.xlu0 %2053
        %2055 = vrot.lane.b32.xlu0 %v2047, 111
        %v2056 = vpop.permute.xlu0 %2055
        %v2057 = vsel %vm1043, %v2052, %v2054
        %v2058 = vsel %vm1043, %v2054, %v2056
        %v2061 = vadd.f32 %v2039, %v2057
        %v2062 = vadd.f32 %v2040, %v2058
        %2063 = vset.pattern.permute.xlu0 5
        %2064 = vperm.xlu0 %2063, %v1948
        %v2065 = vpop.permute.xlu0 %2064
        %v2067 = vmul.f32 %v2065, %v1965
        %v2068 = vmul.f32 %v2065, %v1966
        %v2069 = vmul.f32 %v2065, %v1967
        %2073 = vrot.lane.b32.xlu0 %v2067, 110
        %v2074 = vpop.permute.xlu0 %2073
        %2075 = vrot.lane.b32.xlu0 %v2068, 110
        %v2076 = vpop.permute.xlu0 %2075
        %2077 = vrot.lane.b32.xlu0 %v2069, 110
        %v2078 = vpop.permute.xlu0 %2077
        %v2079 = vsel %vm1066, %v2074, %v2076
        %v2080 = vsel %vm1066, %v2076, %v2078
        %v2083 = vadd.f32 %v2061, %v2079
        %v2084 = vadd.f32 %v2062, %v2080
        %2085 = vset.pattern.permute.xlu0 6
        %2086 = vperm.xlu0 %2085, %v1948
        %v2087 = vpop.permute.xlu0 %2086
        %v2089 = vmul.f32 %v2087, %v1962
        %v2090 = vmul.f32 %v2087, %v1963
        %v2091 = vmul.f32 %v2087, %v1964
        %2095 = vrot.lane.b32.xlu0 %v2089, 96
        %v2096 = vpop.permute.xlu0 %2095
        %2097 = vrot.lane.b32.xlu0 %v2090, 96
        %v2098 = vpop.permute.xlu0 %2097
        %2099 = vrot.lane.b32.xlu0 %v2091, 96
        %v2100 = vpop.permute.xlu0 %2099
        %v2101 = vsel %vm1089, %v2096, %v2098
        %v2102 = vsel %vm1089, %v2098, %v2100
        %v2105 = vadd.f32 %v2083, %v2101
        %v2106 = vadd.f32 %v2084, %v2102
        %2107 = vset.pattern.permute.xlu0 7
        %2108 = vperm.xlu0 %2107, %v1948
        %v2109 = vpop.permute.xlu0 %2108
        %v2111 = vmul.f32 %v2109, %v1960
        %v2112 = vmul.f32 %v2109, %v1956
        %v2113 = vmul.f32 %v2109, %v1961
        %2117 = vrot.lane.b32.xlu0 %v2111, 95
        %v2118 = vpop.permute.xlu0 %2117
        %2119 = vrot.lane.b32.xlu0 %v2112, 95
        %v2120 = vpop.permute.xlu0 %2119
        %2121 = vrot.lane.b32.xlu0 %v2113, 95
        %v2122 = vpop.permute.xlu0 %2121
        %v2123 = vsel %vm1112, %v2118, %v2120
        %v2124 = vsel %vm1112, %v2120, %v2122
        %v2127 = vadd.f32 %v2105, %v2123
        %v2128 = vadd.f32 %v2106, %v2124
        %2129 = vset.pattern.permute.xlu0 8
        %2130 = vperm.xlu0 %2129, %v1948
        %v2131 = vpop.permute.xlu0 %2130
        %v2133 = vmul.f32 %v2131, %v1965
        %v2134 = vmul.f32 %v2131, %v1966
        %v2135 = vmul.f32 %v2131, %v1967
        %2139 = vrot.lane.b32.xlu0 %v2133, 94
        %v2140 = vpop.permute.xlu0 %2139
        %2141 = vrot.lane.b32.xlu0 %v2134, 94
        %v2142 = vpop.permute.xlu0 %2141
        %2143 = vrot.lane.b32.xlu0 %v2135, 94
        %v2144 = vpop.permute.xlu0 %2143
        %v2145 = vsel %vm1135, %v2140, %v2142
        %v2146 = vsel %vm1135, %v2142, %v2144
        %v2149 = vadd.f32 %v2127, %v2145
        %v2150 = vadd.f32 %v2128, %v2146
        %2152 = vset.pattern.permute.xlu0 0
        %2153 = vperm.xlu0 %2152, %v1949
        %v2154 = vpop.permute.xlu0 %2153
        %v2156 = vadd.f32 %v2149, %v2154
        %v2157 = vadd.f32 %v2150, %v2154
        %v2158 = vmin.f32 %v2156, 20.0
        %v2159 = vmin.f32 %v2157, 20.0
        %v2160 = vmul.f32 %v2158, 1.442695
        %v2161 = vpow.pop %v2160
        %v2162 = vmul.f32 %v2159, 1.442695
        %v2163 = vpow.pop %v2162
        %v2164 = vadd.f32 %v2161, 1.0
        %v2165 = vadd.f32 %v2163, 1.0
        %v2166 = vmul.f32 %v2164, %v2164
        %v2167 = vmul.f32 %v2165, %v2165
        %v2168 = vsub.f32 %v2166, 1.0
        %v2169 = vsub.f32 %v2167, 1.0
        %v2170 = vmul.f32 %v2156, %v2168
        %v2171 = vmul.f32 %v2157, %v2169
        %v2172 = vadd.f32 %v2166, 1.0
        %v2173 = vadd.f32 %v2167, 1.0
        %v2174 = vrcp.pop %v2172
        %v2175 = vmul.f32 %v2170, %v2174
        %v2176 = vrcp.pop %v2173
        %v2177 = vmul.f32 %v2171, %v2176
        %v2178 = vld [vmem:[%s35] sm:$0xff]
        %v2179 = vld [vmem:[%s37] sm:$0xff]
        %2181 = vset.pattern.permute.xlu0 0
        %2182 = vperm.xlu0 %2181, %v2178
        %v2183 = vpop.permute.xlu0 %2182
        %v2185 = vlaneseq
        %v2186 = vshrl.u32 %v2185, 7
        %v2187 = vsub.s32 0, %v2186
        %v2188 = vrot.slane %v2175, %v2187
        %v2189 = vlaneseq
        %v2190 = vshrl.u32 %v2189, 7
        %v2191 = vsub.s32 0, %v2190
        %v2192 = vrot.slane %v2177, %v2191
        %v2193 = vmul.f32 %v2183, %v2188
        %v2194 = vmul.f32 %v2183, %v2192
        %2195 = vset.pattern.permute.xlu0 1
        %2196 = vperm.xlu0 %2195, %v2178
        %v2197 = vpop.permute.xlu0 %2196
        %v2199 = vlaneseq
        %v2200 = vshrl.u32 %v2199, 7
        %v2201 = vsub.s32 1, %v2200
        %v2202 = vrot.slane %v2175, %v2201
        %v2203 = vlaneseq
        %v2204 = vshrl.u32 %v2203, 7
        %v2205 = vsub.s32 1, %v2204
        %v2206 = vrot.slane %v2177, %v2205
        %v2207 = vmul.f32 %v2197, %v2202
        %v2208 = vmul.f32 %v2197, %v2206
        %v2209 = vadd.f32 %v2193, %v2207
        %v2210 = vadd.f32 %v2194, %v2208
        %2211 = vset.pattern.permute.xlu0 2
        %2212 = vperm.xlu0 %2211, %v2178
        %v2213 = vpop.permute.xlu0 %2212
        %v2215 = vlaneseq
        %v2216 = vshrl.u32 %v2215, 7
        %v2217 = vsub.s32 2, %v2216
        %v2218 = vrot.slane %v2175, %v2217
        %v2219 = vlaneseq
        %v2220 = vshrl.u32 %v2219, 7
        %v2221 = vsub.s32 2, %v2220
        %v2222 = vrot.slane %v2177, %v2221
        %v2223 = vmul.f32 %v2213, %v2218
        %v2224 = vmul.f32 %v2213, %v2222
        %v2225 = vadd.f32 %v2209, %v2223
        %v2226 = vadd.f32 %v2210, %v2224
        %2227 = vset.pattern.permute.xlu0 3
        %2228 = vperm.xlu0 %2227, %v2178
        %v2229 = vpop.permute.xlu0 %2228
        %v2231 = vlaneseq
        %v2232 = vshrl.u32 %v2231, 7
        %v2233 = vsub.s32 3, %v2232
        %v2234 = vrot.slane %v2175, %v2233
        %v2235 = vlaneseq
        %v2236 = vshrl.u32 %v2235, 7
        %v2237 = vsub.s32 3, %v2236
        %v2238 = vrot.slane %v2177, %v2237
        %v2239 = vmul.f32 %v2229, %v2234
        %v2240 = vmul.f32 %v2229, %v2238
        %v2241 = vadd.f32 %v2225, %v2239
        %v2242 = vadd.f32 %v2226, %v2240
        %2243 = vset.pattern.permute.xlu0 4
        %2244 = vperm.xlu0 %2243, %v2178
        %v2245 = vpop.permute.xlu0 %2244
        %v2247 = vlaneseq
        %v2248 = vshrl.u32 %v2247, 7
        %v2249 = vsub.s32 4, %v2248
        %v2250 = vrot.slane %v2175, %v2249
        %v2251 = vlaneseq
        %v2252 = vshrl.u32 %v2251, 7
        %v2253 = vsub.s32 4, %v2252
        %v2254 = vrot.slane %v2177, %v2253
        %v2255 = vmul.f32 %v2245, %v2250
        %v2256 = vmul.f32 %v2245, %v2254
        %v2257 = vadd.f32 %v2241, %v2255
        %v2258 = vadd.f32 %v2242, %v2256
        %2259 = vset.pattern.permute.xlu0 5
        %2260 = vperm.xlu0 %2259, %v2178
        %v2261 = vpop.permute.xlu0 %2260
        %v2263 = vlaneseq
        %v2264 = vshrl.u32 %v2263, 7
        %v2265 = vsub.s32 5, %v2264
        %v2266 = vrot.slane %v2175, %v2265
        %v2267 = vlaneseq
        %v2268 = vshrl.u32 %v2267, 7
        %v2269 = vsub.s32 5, %v2268
        %v2270 = vrot.slane %v2177, %v2269
        %v2271 = vmul.f32 %v2261, %v2266
        %v2272 = vmul.f32 %v2261, %v2270
        %v2273 = vadd.f32 %v2257, %v2271
        %v2274 = vadd.f32 %v2258, %v2272
        %2275 = vset.pattern.permute.xlu0 6
        %2276 = vperm.xlu0 %2275, %v2178
        %v2277 = vpop.permute.xlu0 %2276
        %v2279 = vlaneseq
        %v2280 = vshrl.u32 %v2279, 7
        %v2281 = vsub.s32 6, %v2280
        %v2282 = vrot.slane %v2175, %v2281
        %v2283 = vlaneseq
        %v2284 = vshrl.u32 %v2283, 7
        %v2285 = vsub.s32 6, %v2284
        %v2286 = vrot.slane %v2177, %v2285
        %v2287 = vmul.f32 %v2277, %v2282
        %v2288 = vmul.f32 %v2277, %v2286
        %v2289 = vadd.f32 %v2273, %v2287
        %v2290 = vadd.f32 %v2274, %v2288
        %2291 = vset.pattern.permute.xlu0 7
        %2292 = vperm.xlu0 %2291, %v2178
        %v2293 = vpop.permute.xlu0 %2292
        %v2295 = vlaneseq
        %v2296 = vshrl.u32 %v2295, 7
        %v2297 = vsub.s32 7, %v2296
        %v2298 = vrot.slane %v2175, %v2297
        %v2299 = vlaneseq
        %v2300 = vshrl.u32 %v2299, 7
        %v2301 = vsub.s32 7, %v2300
        %v2302 = vrot.slane %v2177, %v2301
        %v2303 = vmul.f32 %v2293, %v2298
        %v2304 = vmul.f32 %v2293, %v2302
        %v2305 = vadd.f32 %v2289, %v2303
        %v2306 = vadd.f32 %v2290, %v2304
        %2308 = vset.pattern.permute.xlu0 0
        %2309 = vperm.xlu0 %2308, %v2179
        %v2310 = vpop.permute.xlu0 %2309
        %v2312 = vadd.f32 %v2305, %v2310
        %v2313 = vadd.f32 %v2306, %v2310
        %v2314 = vadd.f32 %v2312, %v1946
        %v2315 = vadd.f32 %v2313, %v1947
        %v2316 = vld [vmem:[%s39] sm:$0xff]
        %v2317 = vld [vmem:[%s41] sm:$0xff]
        %2319 = vset.pattern.permute.xlu0 0
        %2320 = vperm.xlu0 %2319, %v2316
        %v2321 = vpop.permute.xlu0 %2320
        %v2323 = vlaneseq
        %v2324 = vshrl.u32 %v2323, 7
        %v2325 = vsub.s32 0, %v2324
        %v2326 = vrot.slane %v2314, %v2325
        %v2327 = vlaneseq
        %v2328 = vshrl.u32 %v2327, 7
        %v2329 = vsub.s32 0, %v2328
        %v2330 = vrot.slane %v2315, %v2329
        %v2331 = vmul.f32 %v2321, %v2326
        %v2332 = vmul.f32 %v2321, %v2330
        %2333 = vset.pattern.permute.xlu0 1
        %2334 = vperm.xlu0 %2333, %v2316
        %v2335 = vpop.permute.xlu0 %2334
        %v2337 = vlaneseq
        %v2338 = vshrl.u32 %v2337, 7
        %v2339 = vsub.s32 1, %v2338
        %v2340 = vrot.slane %v2314, %v2339
        %v2341 = vlaneseq
        %v2342 = vshrl.u32 %v2341, 7
        %v2343 = vsub.s32 1, %v2342
        %v2344 = vrot.slane %v2315, %v2343
        %v2345 = vmul.f32 %v2335, %v2340
        %v2346 = vmul.f32 %v2335, %v2344
        %v2347 = vadd.f32 %v2331, %v2345
        %v2348 = vadd.f32 %v2332, %v2346
        %2349 = vset.pattern.permute.xlu0 2
        %2350 = vperm.xlu0 %2349, %v2316
        %v2351 = vpop.permute.xlu0 %2350
        %v2353 = vlaneseq
        %v2354 = vshrl.u32 %v2353, 7
        %v2355 = vsub.s32 2, %v2354
        %v2356 = vrot.slane %v2314, %v2355
        %v2357 = vlaneseq
        %v2358 = vshrl.u32 %v2357, 7
        %v2359 = vsub.s32 2, %v2358
        %v2360 = vrot.slane %v2315, %v2359
        %v2361 = vmul.f32 %v2351, %v2356
        %v2362 = vmul.f32 %v2351, %v2360
        %v2363 = vadd.f32 %v2347, %v2361
        %v2364 = vadd.f32 %v2348, %v2362
        %2365 = vset.pattern.permute.xlu0 3
        %2366 = vperm.xlu0 %2365, %v2316
        %v2367 = vpop.permute.xlu0 %2366
        %v2369 = vlaneseq
        %v2370 = vshrl.u32 %v2369, 7
        %v2371 = vsub.s32 3, %v2370
        %v2372 = vrot.slane %v2314, %v2371
        %v2373 = vlaneseq
        %v2374 = vshrl.u32 %v2373, 7
        %v2375 = vsub.s32 3, %v2374
        %v2376 = vrot.slane %v2315, %v2375
        %v2377 = vmul.f32 %v2367, %v2372
        %v2378 = vmul.f32 %v2367, %v2376
        %v2379 = vadd.f32 %v2363, %v2377
        %v2380 = vadd.f32 %v2364, %v2378
        %2381 = vset.pattern.permute.xlu0 4
        %2382 = vperm.xlu0 %2381, %v2316
        %v2383 = vpop.permute.xlu0 %2382
        %v2385 = vlaneseq
        %v2386 = vshrl.u32 %v2385, 7
        %v2387 = vsub.s32 4, %v2386
        %v2388 = vrot.slane %v2314, %v2387
        %v2389 = vlaneseq
        %v2390 = vshrl.u32 %v2389, 7
        %v2391 = vsub.s32 4, %v2390
        %v2392 = vrot.slane %v2315, %v2391
        %v2393 = vmul.f32 %v2383, %v2388
        %v2394 = vmul.f32 %v2383, %v2392
        %v2395 = vadd.f32 %v2379, %v2393
        %v2396 = vadd.f32 %v2380, %v2394
        %2397 = vset.pattern.permute.xlu0 5
        %2398 = vperm.xlu0 %2397, %v2316
        %v2399 = vpop.permute.xlu0 %2398
        %v2401 = vlaneseq
        %v2402 = vshrl.u32 %v2401, 7
        %v2403 = vsub.s32 5, %v2402
        %v2404 = vrot.slane %v2314, %v2403
        %v2405 = vlaneseq
        %v2406 = vshrl.u32 %v2405, 7
        %v2407 = vsub.s32 5, %v2406
        %v2408 = vrot.slane %v2315, %v2407
        %v2409 = vmul.f32 %v2399, %v2404
        %v2410 = vmul.f32 %v2399, %v2408
        %v2411 = vadd.f32 %v2395, %v2409
        %v2412 = vadd.f32 %v2396, %v2410
        %2413 = vset.pattern.permute.xlu0 6
        %2414 = vperm.xlu0 %2413, %v2316
        %v2415 = vpop.permute.xlu0 %2414
        %v2417 = vlaneseq
        %v2418 = vshrl.u32 %v2417, 7
        %v2419 = vsub.s32 6, %v2418
        %v2420 = vrot.slane %v2314, %v2419
        %v2421 = vlaneseq
        %v2422 = vshrl.u32 %v2421, 7
        %v2423 = vsub.s32 6, %v2422
        %v2424 = vrot.slane %v2315, %v2423
        %v2425 = vmul.f32 %v2415, %v2420
        %v2426 = vmul.f32 %v2415, %v2424
        %v2427 = vadd.f32 %v2411, %v2425
        %v2428 = vadd.f32 %v2412, %v2426
        %2429 = vset.pattern.permute.xlu0 7
        %2430 = vperm.xlu0 %2429, %v2316
        %v2431 = vpop.permute.xlu0 %2430
        %v2433 = vlaneseq
        %v2434 = vshrl.u32 %v2433, 7
        %v2435 = vsub.s32 7, %v2434
        %v2436 = vrot.slane %v2314, %v2435
        %v2437 = vlaneseq
        %v2438 = vshrl.u32 %v2437, 7
        %v2439 = vsub.s32 7, %v2438
        %v2440 = vrot.slane %v2315, %v2439
        %v2441 = vmul.f32 %v2431, %v2436
        %v2442 = vmul.f32 %v2431, %v2440
        %v2443 = vadd.f32 %v2427, %v2441
        %v2444 = vadd.f32 %v2428, %v2442
        %2446 = vset.pattern.permute.xlu0 0
        %2447 = vperm.xlu0 %2446, %v2317
        %v2448 = vpop.permute.xlu0 %2447
        %v2450 = vadd.f32 %v2443, %v2448
        %v2451 = vadd.f32 %v2444, %v2448
        %v2452 = vmin.f32 %v2450, 20.0
        %v2453 = vmin.f32 %v2451, 20.0
        %v2454 = vmul.f32 %v2452, 1.442695
        %v2455 = vpow.pop %v2454
        %v2456 = vmul.f32 %v2453, 1.442695
        %v2457 = vpow.pop %v2456
        %v2458 = vadd.f32 %v2455, 1.0
        %v2459 = vadd.f32 %v2457, 1.0
        %v2460 = vmul.f32 %v2458, %v2458
        %v2461 = vmul.f32 %v2459, %v2459
        %v2462 = vsub.f32 %v2460, 1.0
        %v2463 = vsub.f32 %v2461, 1.0
        %v2464 = vmul.f32 %v2450, %v2462
        %v2465 = vmul.f32 %v2451, %v2463
        %v2466 = vadd.f32 %v2460, 1.0
        %v2467 = vadd.f32 %v2461, 1.0
        %v2468 = vrcp.pop %v2466
        %v2469 = vmul.f32 %v2464, %v2468
        %v2470 = vrcp.pop %v2467
        %v2471 = vmul.f32 %v2465, %v2470
        %v2472 = vld [vmem:[%s43] sm:$0xff]
        %v2473 = vld [vmem:[%s45] sm:$0xff]
        %2476 = vrot.lane.b32.xlu0 %v2469, 17
        %v2477 = vpop.permute.xlu0 %2476
        %2478 = vrot.lane.b32.xlu0 %v2471, 17
        %v2479 = vpop.permute.xlu0 %2478
        %v2480 = vsel %vm938, %v2477, %v2479
        %v2484 = vsel %vm938, 0.0, %v2477
        %v2485 = vsel %vm938, %v2479, 0.0
        %v2486 = vmul.f32 %v2484, %v917
        %v2487 = vmul.f32 %v2480, %v918
        %v2488 = vmul.f32 %v2485, %v919
        %v2489 = vmul.f32 %v2484, %v926
        %v2490 = vmul.f32 %v2480, %v927
        %v2491 = vmul.f32 %v2485, %v928
        %2493 = vset.pattern.permute.xlu0 0
        %2494 = vperm.xlu0 %2493, %v2472
        %v2495 = vpop.permute.xlu0 %2494
        %v2497 = vmul.f32 %v2495, %v2486
        %v2498 = vmul.f32 %v2495, %v2487
        %2499 = vset.pattern.permute.xlu0 1
        %2500 = vperm.xlu0 %2499, %v2472
        %v2501 = vpop.permute.xlu0 %2500
        %v2503 = vmul.f32 %v2501, %v2484
        %v2504 = vmul.f32 %v2501, %v2480
        %v2505 = vmul.f32 %v2501, %v2485
        %2509 = vrot.lane.b32.xlu0 %v2503, 127
        %v2510 = vpop.permute.xlu0 %2509
        %2511 = vrot.lane.b32.xlu0 %v2504, 127
        %v2512 = vpop.permute.xlu0 %2511
        %2513 = vrot.lane.b32.xlu0 %v2505, 127
        %v2514 = vpop.permute.xlu0 %2513
        %v2515 = vsel %vm974, %v2510, %v2512
        %v2516 = vsel %vm974, %v2512, %v2514
        %v2519 = vadd.f32 %v2497, %v2515
        %v2520 = vadd.f32 %v2498, %v2516
        %2521 = vset.pattern.permute.xlu0 2
        %2522 = vperm.xlu0 %2521, %v2472
        %v2523 = vpop.permute.xlu0 %2522
        %v2525 = vmul.f32 %v2523, %v2489
        %v2526 = vmul.f32 %v2523, %v2490
        %v2527 = vmul.f32 %v2523, %v2491
        %2531 = vrot.lane.b32.xlu0 %v2525, 126
        %v2532 = vpop.permute.xlu0 %2531
        %2533 = vrot.lane.b32.xlu0 %v2526, 126
        %v2534 = vpop.permute.xlu0 %2533
        %2535 = vrot.lane.b32.xlu0 %v2527, 126
        %v2536 = vpop.permute.xlu0 %2535
        %v2537 = vsel %vm997, %v2532, %v2534
        %v2538 = vsel %vm997, %v2534, %v2536
        %v2541 = vadd.f32 %v2519, %v2537
        %v2542 = vadd.f32 %v2520, %v2538
        %2543 = vset.pattern.permute.xlu0 3
        %2544 = vperm.xlu0 %2543, %v2472
        %v2545 = vpop.permute.xlu0 %2544
        %v2547 = vmul.f32 %v2545, %v2486
        %v2548 = vmul.f32 %v2545, %v2487
        %v2549 = vmul.f32 %v2545, %v2488
        %2553 = vrot.lane.b32.xlu0 %v2547, 112
        %v2554 = vpop.permute.xlu0 %2553
        %2555 = vrot.lane.b32.xlu0 %v2548, 112
        %v2556 = vpop.permute.xlu0 %2555
        %2557 = vrot.lane.b32.xlu0 %v2549, 112
        %v2558 = vpop.permute.xlu0 %2557
        %v2559 = vsel %vm1020, %v2554, %v2556
        %v2560 = vsel %vm1020, %v2556, %v2558
        %v2563 = vadd.f32 %v2541, %v2559
        %v2564 = vadd.f32 %v2542, %v2560
        %2565 = vset.pattern.permute.xlu0 4
        %2566 = vperm.xlu0 %2565, %v2472
        %v2567 = vpop.permute.xlu0 %2566
        %v2569 = vmul.f32 %v2567, %v2484
        %v2570 = vmul.f32 %v2567, %v2480
        %v2571 = vmul.f32 %v2567, %v2485
        %2575 = vrot.lane.b32.xlu0 %v2569, 111
        %v2576 = vpop.permute.xlu0 %2575
        %2577 = vrot.lane.b32.xlu0 %v2570, 111
        %v2578 = vpop.permute.xlu0 %2577
        %2579 = vrot.lane.b32.xlu0 %v2571, 111
        %v2580 = vpop.permute.xlu0 %2579
        %v2581 = vsel %vm1043, %v2576, %v2578
        %v2582 = vsel %vm1043, %v2578, %v2580
        %v2585 = vadd.f32 %v2563, %v2581
        %v2586 = vadd.f32 %v2564, %v2582
        %2587 = vset.pattern.permute.xlu0 5
        %2588 = vperm.xlu0 %2587, %v2472
        %v2589 = vpop.permute.xlu0 %2588
        %v2591 = vmul.f32 %v2589, %v2489
        %v2592 = vmul.f32 %v2589, %v2490
        %v2593 = vmul.f32 %v2589, %v2491
        %2597 = vrot.lane.b32.xlu0 %v2591, 110
        %v2598 = vpop.permute.xlu0 %2597
        %2599 = vrot.lane.b32.xlu0 %v2592, 110
        %v2600 = vpop.permute.xlu0 %2599
        %2601 = vrot.lane.b32.xlu0 %v2593, 110
        %v2602 = vpop.permute.xlu0 %2601
        %v2603 = vsel %vm1066, %v2598, %v2600
        %v2604 = vsel %vm1066, %v2600, %v2602
        %v2607 = vadd.f32 %v2585, %v2603
        %v2608 = vadd.f32 %v2586, %v2604
        %2609 = vset.pattern.permute.xlu0 6
        %2610 = vperm.xlu0 %2609, %v2472
        %v2611 = vpop.permute.xlu0 %2610
        %v2613 = vmul.f32 %v2611, %v2486
        %v2614 = vmul.f32 %v2611, %v2487
        %v2615 = vmul.f32 %v2611, %v2488
        %2619 = vrot.lane.b32.xlu0 %v2613, 96
        %v2620 = vpop.permute.xlu0 %2619
        %2621 = vrot.lane.b32.xlu0 %v2614, 96
        %v2622 = vpop.permute.xlu0 %2621
        %2623 = vrot.lane.b32.xlu0 %v2615, 96
        %v2624 = vpop.permute.xlu0 %2623
        %v2625 = vsel %vm1089, %v2620, %v2622
        %v2626 = vsel %vm1089, %v2622, %v2624
        %v2629 = vadd.f32 %v2607, %v2625
        %v2630 = vadd.f32 %v2608, %v2626
        %2631 = vset.pattern.permute.xlu0 7
        %2632 = vperm.xlu0 %2631, %v2472
        %v2633 = vpop.permute.xlu0 %2632
        %v2635 = vmul.f32 %v2633, %v2484
        %v2636 = vmul.f32 %v2633, %v2480
        %v2637 = vmul.f32 %v2633, %v2485
        %2641 = vrot.lane.b32.xlu0 %v2635, 95
        %v2642 = vpop.permute.xlu0 %2641
        %2643 = vrot.lane.b32.xlu0 %v2636, 95
        %v2644 = vpop.permute.xlu0 %2643
        %2645 = vrot.lane.b32.xlu0 %v2637, 95
        %v2646 = vpop.permute.xlu0 %2645
        %v2647 = vsel %vm1112, %v2642, %v2644
        %v2648 = vsel %vm1112, %v2644, %v2646
        %v2651 = vadd.f32 %v2629, %v2647
        %v2652 = vadd.f32 %v2630, %v2648
        %2653 = vset.pattern.permute.xlu0 8
        %2654 = vperm.xlu0 %2653, %v2472
        %v2655 = vpop.permute.xlu0 %2654
        %v2657 = vmul.f32 %v2655, %v2489
        %v2658 = vmul.f32 %v2655, %v2490
        %v2659 = vmul.f32 %v2655, %v2491
        %2663 = vrot.lane.b32.xlu0 %v2657, 94
        %v2664 = vpop.permute.xlu0 %2663
        %2665 = vrot.lane.b32.xlu0 %v2658, 94
        %v2666 = vpop.permute.xlu0 %2665
        %2667 = vrot.lane.b32.xlu0 %v2659, 94
        %v2668 = vpop.permute.xlu0 %2667
        %v2669 = vsel %vm1135, %v2664, %v2666
        %v2670 = vsel %vm1135, %v2666, %v2668
        %v2673 = vadd.f32 %v2651, %v2669
        %v2674 = vadd.f32 %v2652, %v2670
        %2676 = vset.pattern.permute.xlu0 0
        %2677 = vperm.xlu0 %2676, %v2473
        %v2678 = vpop.permute.xlu0 %2677
        %v2680 = vadd.f32 %v2673, %v2678
        %v2681 = vadd.f32 %v2674, %v2678
        %v2682 = vmin.f32 %v2680, 20.0
        %v2683 = vmin.f32 %v2681, 20.0
        %v2684 = vmul.f32 %v2682, 1.442695
        %v2685 = vpow.pop %v2684
        %v2686 = vmul.f32 %v2683, 1.442695
        %v2687 = vpow.pop %v2686
        %v2688 = vadd.f32 %v2685, 1.0
        %v2689 = vadd.f32 %v2687, 1.0
        %v2690 = vmul.f32 %v2688, %v2688
        %v2691 = vmul.f32 %v2689, %v2689
        %v2692 = vsub.f32 %v2690, 1.0
        %v2693 = vsub.f32 %v2691, 1.0
        %v2694 = vmul.f32 %v2680, %v2692
        %v2695 = vmul.f32 %v2681, %v2693
        %v2696 = vadd.f32 %v2690, 1.0
        %v2697 = vadd.f32 %v2691, 1.0
        %v2698 = vrcp.pop %v2696
        %v2699 = vmul.f32 %v2694, %v2698
        %v2700 = vrcp.pop %v2697
        %v2701 = vmul.f32 %v2695, %v2700
        %v2702 = vld [vmem:[%s47] sm:$0x3]
        %v2703 = vld [vmem:[%s49] sm:$0x3]
        %v2704 = vld [vmem:[%s51] sm:$0xff]
        %v2705 = vld [vmem:[%s53] sm:$0xff]
        %2707 = vset.pattern.permute.xlu0 0
        %2708 = vperm.xlu0 %2707, %v2702
        %v2709 = vpop.permute.xlu0 %2708
        %v2711 = vlaneseq
        %v2712 = vshrl.u32 %v2711, 7
        %v2713 = vsub.s32 0, %v2712
        %v2714 = vrot.slane %v2699, %v2713
        %v2715 = vlaneseq
        %v2716 = vshrl.u32 %v2715, 7
        %v2717 = vsub.s32 0, %v2716
        %v2718 = vrot.slane %v2701, %v2717
        %v2719 = vmul.f32 %v2709, %v2714
        %v2720 = vmul.f32 %v2709, %v2718
        %2721 = vset.pattern.permute.xlu0 1
        %2722 = vperm.xlu0 %2721, %v2702
        %v2723 = vpop.permute.xlu0 %2722
        %v2725 = vlaneseq
        %v2726 = vshrl.u32 %v2725, 7
        %v2727 = vsub.s32 1, %v2726
        %v2728 = vrot.slane %v2699, %v2727
        %v2729 = vlaneseq
        %v2730 = vshrl.u32 %v2729, 7
        %v2731 = vsub.s32 1, %v2730
        %v2732 = vrot.slane %v2701, %v2731
        %v2733 = vmul.f32 %v2723, %v2728
        %v2734 = vmul.f32 %v2723, %v2732
        %v2735 = vadd.f32 %v2719, %v2733
        %v2736 = vadd.f32 %v2720, %v2734
        %2737 = vset.pattern.permute.xlu0 2
        %2738 = vperm.xlu0 %2737, %v2702
        %v2739 = vpop.permute.xlu0 %2738
        %v2741 = vlaneseq
        %v2742 = vshrl.u32 %v2741, 7
        %v2743 = vsub.s32 2, %v2742
        %v2744 = vrot.slane %v2699, %v2743
        %v2745 = vlaneseq
        %v2746 = vshrl.u32 %v2745, 7
        %v2747 = vsub.s32 2, %v2746
        %v2748 = vrot.slane %v2701, %v2747
        %v2749 = vmul.f32 %v2739, %v2744
        %v2750 = vmul.f32 %v2739, %v2748
        %v2751 = vadd.f32 %v2735, %v2749
        %v2752 = vadd.f32 %v2736, %v2750
        %2753 = vset.pattern.permute.xlu0 3
        %2754 = vperm.xlu0 %2753, %v2702
        %v2755 = vpop.permute.xlu0 %2754
        %v2757 = vlaneseq
        %v2758 = vshrl.u32 %v2757, 7
        %v2759 = vsub.s32 3, %v2758
        %v2760 = vrot.slane %v2699, %v2759
        %v2761 = vlaneseq
        %v2762 = vshrl.u32 %v2761, 7
        %v2763 = vsub.s32 3, %v2762
        %v2764 = vrot.slane %v2701, %v2763
        %v2765 = vmul.f32 %v2755, %v2760
        %v2766 = vmul.f32 %v2755, %v2764
        %v2767 = vadd.f32 %v2751, %v2765
        %v2768 = vadd.f32 %v2752, %v2766
        %2769 = vset.pattern.permute.xlu0 4
        %2770 = vperm.xlu0 %2769, %v2702
        %v2771 = vpop.permute.xlu0 %2770
        %v2773 = vlaneseq
        %v2774 = vshrl.u32 %v2773, 7
        %v2775 = vsub.s32 4, %v2774
        %v2776 = vrot.slane %v2699, %v2775
        %v2777 = vlaneseq
        %v2778 = vshrl.u32 %v2777, 7
        %v2779 = vsub.s32 4, %v2778
        %v2780 = vrot.slane %v2701, %v2779
        %v2781 = vmul.f32 %v2771, %v2776
        %v2782 = vmul.f32 %v2771, %v2780
        %v2783 = vadd.f32 %v2767, %v2781
        %v2784 = vadd.f32 %v2768, %v2782
        %2785 = vset.pattern.permute.xlu0 5
        %2786 = vperm.xlu0 %2785, %v2702
        %v2787 = vpop.permute.xlu0 %2786
        %v2789 = vlaneseq
        %v2790 = vshrl.u32 %v2789, 7
        %v2791 = vsub.s32 5, %v2790
        %v2792 = vrot.slane %v2699, %v2791
        %v2793 = vlaneseq
        %v2794 = vshrl.u32 %v2793, 7
        %v2795 = vsub.s32 5, %v2794
        %v2796 = vrot.slane %v2701, %v2795
        %v2797 = vmul.f32 %v2787, %v2792
        %v2798 = vmul.f32 %v2787, %v2796
        %v2799 = vadd.f32 %v2783, %v2797
        %v2800 = vadd.f32 %v2784, %v2798
        %2801 = vset.pattern.permute.xlu0 6
        %2802 = vperm.xlu0 %2801, %v2702
        %v2803 = vpop.permute.xlu0 %2802
        %v2805 = vlaneseq
        %v2806 = vshrl.u32 %v2805, 7
        %v2807 = vsub.s32 6, %v2806
        %v2808 = vrot.slane %v2699, %v2807
        %v2809 = vlaneseq
        %v2810 = vshrl.u32 %v2809, 7
        %v2811 = vsub.s32 6, %v2810
        %v2812 = vrot.slane %v2701, %v2811
        %v2813 = vmul.f32 %v2803, %v2808
        %v2814 = vmul.f32 %v2803, %v2812
        %v2815 = vadd.f32 %v2799, %v2813
        %v2816 = vadd.f32 %v2800, %v2814
        %2817 = vset.pattern.permute.xlu0 7
        %2818 = vperm.xlu0 %2817, %v2702
        %v2819 = vpop.permute.xlu0 %2818
        %v2821 = vlaneseq
        %v2822 = vshrl.u32 %v2821, 7
        %v2823 = vsub.s32 7, %v2822
        %v2824 = vrot.slane %v2699, %v2823
        %v2825 = vlaneseq
        %v2826 = vshrl.u32 %v2825, 7
        %v2827 = vsub.s32 7, %v2826
        %v2828 = vrot.slane %v2701, %v2827
        %v2829 = vmul.f32 %v2819, %v2824
        %v2830 = vmul.f32 %v2819, %v2828
        %v2831 = vadd.f32 %v2815, %v2829
        %v2832 = vadd.f32 %v2816, %v2830
        %v2833 = vsel %vm1758, %v2831, 0.0
        %v2834 = vsel %vm1758, %v2832, 0.0
        %v2835 = vadd.f32 %v2833, %v2834
        %2836 = vadd.xlane.f32.xlu0 %v2835
        %v2837 = vpop.xlane.xlu0 %2836
        %v2838 = vmul.f32 %v2837, 0.00390625
        %v2839 = vadd.f32 %v2838, %v2703
        %v2840 = vmin.f32 %v2839, 20.0
        %v2841 = vmul.f32 %v2840, 1.442695
        %v2842 = vpow.pop %v2841
        %v2843 = vadd.f32 %v2842, 1.0
        %v2844 = vmul.f32 %v2843, %v2843
        %v2845 = vsub.f32 %v2844, 1.0
        %v2846 = vmul.f32 %v2839, %v2845
        %v2847 = vadd.f32 %v2844, 1.0
        %v2848 = vrcp.pop %v2847
        %v2849 = vmul.f32 %v2846, %v2848
        %2851 = vset.pattern.permute.xlu0 0
        %2852 = vperm.xlu0 %2851, %v2704
        %v2853 = vpop.permute.xlu0 %2852
        %s2856 = vtos %v2849
        %v2857 = vstv %s2856
        %v2859 = vmul.f32 %v2853, %v2857
        %2860 = vset.pattern.permute.xlu0 1
        %2861 = vperm.xlu0 %2860, %v2704
        %v2862 = vpop.permute.xlu0 %2861
        %v2864 = vrot.slane %v2849, 1
        %s2865 = vtos %v2864
        %v2866 = vstv %s2865
        %v2868 = vmul.f32 %v2862, %v2866
        %v2869 = vadd.f32 %v2859, %v2868
        %2871 = vset.pattern.permute.xlu0 0
        %2872 = vperm.xlu0 %2871, %v2705
        %v2873 = vpop.permute.xlu0 %2872
        %v2875 = vadd.f32 %v2869, %v2873
        %v2876 = vxor.u32 %v2875, 2147483648
        %v2877 = vmul.f32 %v2876, 1.442695
        %v2878 = vpow.pop %v2877
        %v2879 = vadd.f32 %v2878, 1.0
        %v2880 = vrcp.pop %v2879
        %v2881 = vmul.f32 1.0, %v2880
        %v2882 = vmul.f32 %v2699, %v2881
        %v2883 = vmul.f32 %v2701, %v2881
        %v2884 = vld [vmem:[%s55] sm:$0xff]
        %v2885 = vld [vmem:[%s57] sm:$0xff]
        %2887 = vset.pattern.permute.xlu0 0
        %2888 = vperm.xlu0 %2887, %v2884
        %v2889 = vpop.permute.xlu0 %2888
        %v2891 = vlaneseq
        %v2892 = vshrl.u32 %v2891, 7
        %v2893 = vsub.s32 0, %v2892
        %v2894 = vrot.slane %v2882, %v2893
        %v2895 = vlaneseq
        %v2896 = vshrl.u32 %v2895, 7
        %v2897 = vsub.s32 0, %v2896
        %v2898 = vrot.slane %v2883, %v2897
        %v2899 = vmul.f32 %v2889, %v2894
        %v2900 = vmul.f32 %v2889, %v2898
        %2901 = vset.pattern.permute.xlu0 1
        %2902 = vperm.xlu0 %2901, %v2884
        %v2903 = vpop.permute.xlu0 %2902
        %v2905 = vlaneseq
        %v2906 = vshrl.u32 %v2905, 7
        %v2907 = vsub.s32 1, %v2906
        %v2908 = vrot.slane %v2882, %v2907
        %v2909 = vlaneseq
        %v2910 = vshrl.u32 %v2909, 7
        %v2911 = vsub.s32 1, %v2910
        %v2912 = vrot.slane %v2883, %v2911
        %v2913 = vmul.f32 %v2903, %v2908
        %v2914 = vmul.f32 %v2903, %v2912
        %v2915 = vadd.f32 %v2899, %v2913
        %v2916 = vadd.f32 %v2900, %v2914
        %2917 = vset.pattern.permute.xlu0 2
        %2918 = vperm.xlu0 %2917, %v2884
        %v2919 = vpop.permute.xlu0 %2918
        %v2921 = vlaneseq
        %v2922 = vshrl.u32 %v2921, 7
        %v2923 = vsub.s32 2, %v2922
        %v2924 = vrot.slane %v2882, %v2923
        %v2925 = vlaneseq
        %v2926 = vshrl.u32 %v2925, 7
        %v2927 = vsub.s32 2, %v2926
        %v2928 = vrot.slane %v2883, %v2927
        %v2929 = vmul.f32 %v2919, %v2924
        %v2930 = vmul.f32 %v2919, %v2928
        %v2931 = vadd.f32 %v2915, %v2929
        %v2932 = vadd.f32 %v2916, %v2930
        %2933 = vset.pattern.permute.xlu0 3
        %2934 = vperm.xlu0 %2933, %v2884
        %v2935 = vpop.permute.xlu0 %2934
        %v2937 = vlaneseq
        %v2938 = vshrl.u32 %v2937, 7
        %v2939 = vsub.s32 3, %v2938
        %v2940 = vrot.slane %v2882, %v2939
        %v2941 = vlaneseq
        %v2942 = vshrl.u32 %v2941, 7
        %v2943 = vsub.s32 3, %v2942
        %v2944 = vrot.slane %v2883, %v2943
        %v2945 = vmul.f32 %v2935, %v2940
        %v2946 = vmul.f32 %v2935, %v2944
        %v2947 = vadd.f32 %v2931, %v2945
        %v2948 = vadd.f32 %v2932, %v2946
        %2949 = vset.pattern.permute.xlu0 4
        %2950 = vperm.xlu0 %2949, %v2884
        %v2951 = vpop.permute.xlu0 %2950
        %v2953 = vlaneseq
        %v2954 = vshrl.u32 %v2953, 7
        %v2955 = vsub.s32 4, %v2954
        %v2956 = vrot.slane %v2882, %v2955
        %v2957 = vlaneseq
        %v2958 = vshrl.u32 %v2957, 7
        %v2959 = vsub.s32 4, %v2958
        %v2960 = vrot.slane %v2883, %v2959
        %v2961 = vmul.f32 %v2951, %v2956
        %v2962 = vmul.f32 %v2951, %v2960
        %v2963 = vadd.f32 %v2947, %v2961
        %v2964 = vadd.f32 %v2948, %v2962
        %2965 = vset.pattern.permute.xlu0 5
        %2966 = vperm.xlu0 %2965, %v2884
        %v2967 = vpop.permute.xlu0 %2966
        %v2969 = vlaneseq
        %v2970 = vshrl.u32 %v2969, 7
        %v2971 = vsub.s32 5, %v2970
        %v2972 = vrot.slane %v2882, %v2971
        %v2973 = vlaneseq
        %v2974 = vshrl.u32 %v2973, 7
        %v2975 = vsub.s32 5, %v2974
        %v2976 = vrot.slane %v2883, %v2975
        %v2977 = vmul.f32 %v2967, %v2972
        %v2978 = vmul.f32 %v2967, %v2976
        %v2979 = vadd.f32 %v2963, %v2977
        %v2980 = vadd.f32 %v2964, %v2978
        %2981 = vset.pattern.permute.xlu0 6
        %2982 = vperm.xlu0 %2981, %v2884
        %v2983 = vpop.permute.xlu0 %2982
        %v2985 = vlaneseq
        %v2986 = vshrl.u32 %v2985, 7
        %v2987 = vsub.s32 6, %v2986
        %v2988 = vrot.slane %v2882, %v2987
        %v2989 = vlaneseq
        %v2990 = vshrl.u32 %v2989, 7
        %v2991 = vsub.s32 6, %v2990
        %v2992 = vrot.slane %v2883, %v2991
        %v2993 = vmul.f32 %v2983, %v2988
        %v2994 = vmul.f32 %v2983, %v2992
        %v2995 = vadd.f32 %v2979, %v2993
        %v2996 = vadd.f32 %v2980, %v2994
        %2997 = vset.pattern.permute.xlu0 7
        %2998 = vperm.xlu0 %2997, %v2884
        %v2999 = vpop.permute.xlu0 %2998
        %v3001 = vlaneseq
        %v3002 = vshrl.u32 %v3001, 7
        %v3003 = vsub.s32 7, %v3002
        %v3004 = vrot.slane %v2882, %v3003
        %v3005 = vlaneseq
        %v3006 = vshrl.u32 %v3005, 7
        %v3007 = vsub.s32 7, %v3006
        %v3008 = vrot.slane %v2883, %v3007
        %v3009 = vmul.f32 %v2999, %v3004
        %v3010 = vmul.f32 %v2999, %v3008
        %v3011 = vadd.f32 %v2995, %v3009
        %v3012 = vadd.f32 %v2996, %v3010
        %3014 = vset.pattern.permute.xlu0 0
        %3015 = vperm.xlu0 %3014, %v2885
        %v3016 = vpop.permute.xlu0 %3015
        %v3018 = vadd.f32 %v3011, %v3016
        %v3019 = vadd.f32 %v3012, %v3016
        %v3020 = vadd.f32 %v3018, %v2314
        %v3021 = vadd.f32 %v3019, %v2315
        %3022 = vst [vmem:[%s895] sm:$0xff] %v3020
        %3023 = vst [vmem:[%s895 + $0x8] sm:$0xff] %v3021
        %s3024 = sand.u32 %s695, 1
        %s3025 = scalar_lea.sflag [#allocation3], %s3024
        %s3026 = sand.u32 %s695, 1
        %s3027 = smul.addr %s3026, 16
        %s3028 = scalar_lea.vmem [#allocation2], %s3027
        // Predicated region
        $region137: #{tpu_custom_call.1} parent=135 // pred_check
          %p3029 = pneg %p705
        $region138: #{tpu_custom_call.1} parent=135 // pred_check_branch
          %3031 = sbr.rel (%p3029) target = $region140
        $region139: #{tpu_custom_call.1} parent=135 // pred_region
          %s3033 = ssub.s32 256, 256
          %3034 = vsyncadd %s3025, %s3033
          %s3035 = smul.addr %s73, 2
          %s3036 = smul.addr %s3035, 128
          %s3037 = scalar_lea.hbm %s59, %s3036
          %s3039 = sshll.u32 %s3028, 4
          %s3040 = int_to_ptr.vmem [resolvable:$true] %s3039
          %3042 = dma.vmem_to_hbm [thread:$0]  %s3040, 256, %s3037, %s3025
        $region140: #{tpu_custom_call.1} parent=135 // pred_fallthru
          _
      $region136: #{tpu_custom_call.1} parent=5 // pred_fallthru
        _
      %p3043 = scmp.le.s32.totalorder 2, %s68
      // Predicated region
      $region141: #{tpu_custom_call.1} parent=5 // pred_check
        %p3044 = pneg %p3043
      $region142: #{tpu_custom_call.1} parent=5 // pred_check_branch
        %3046 = sbr.rel (%p3044) target = $region144
      $region143: #{tpu_custom_call.1} parent=5 // pred_region
        %s3047 = ssub.s32 %s68, 2
        // Predicated region
        $region145: #{tpu_custom_call.1} parent=143 // pred_check
          %p3048 = pneg %p711
        $region146: #{tpu_custom_call.1} parent=143 // pred_check_branch
          %3050 = sbr.rel (%p3048) target = $region148
        $region147: #{tpu_custom_call.1} parent=143 // pred_region
          %s3051 = sand.u32 %s696, 1
          %s3052 = scalar_lea.sflag [#allocation3], %s3051
          %s3053 = sand.u32 %s696, 1
          %s3054 = smul.addr %s3053, 16
          %s3055 = scalar_lea.vmem [#allocation2], %s3054
          %3056 = dma.done %s3052, 256
        $region148: #{tpu_custom_call.1} parent=143 // pred_fallthru
          _
      $region144: #{tpu_custom_call.1} parent=5 // pred_fallthru
        _
    $region6: #{tpu_custom_call.1} parent=1 // loop_footer
      %s72 = sadd.s32 1, %s68
    $region7: #{tpu_custom_call.1} parent=1 // loop_footer_branch
      %67 = sbr.rel target = $region3
    $region8: #{tpu_custom_call.1} parent=1 // loop_exit
      _
    %3057 = vsyncpa [#allocation3], 1
    %s3058 = scalar_lea.sflag [#allocation3], 1
    %3059 = vsyncpa %s3058, 1

</llo_original>
